<compile_context>
chip_gen: v7x
topology: tpu7x:2x2x1
jax: 0.10.0
libtpu: 0.0.40
codegen_flags: <defaults>
</compile_context>

<pallas_src>
import functools

import jax
import jax.numpy as jnp
from jax import lax
from jax.experimental import pallas as pl
from jax.experimental.pallas import tpu as pltpu

EPS = 1e-5  # nn.BatchNorm1d default


def _round_up(x, m):
    return (x + m - 1) // m * m


def _bn_fold(s, q, gamma, beta, inv_n):
    """Fold biased batch statistics into per-channel scale/shift: y = h*scale + shift."""
    # TODO(synk): E[h^2]-E[h]^2 in f32 can cancel for very large B*L; consider per-tile
    #             Welford merges if that regime matters.
    mean = s * inv_n
    var = jnp.maximum(q * inv_n - mean * mean, 0.0)
    scale = gamma * lax.rsqrt(var + EPS)
    shift = beta - mean * scale
    return scale, shift


def _stats_kernel(L, tile_l, inv_n, x_ref, w1_ref, w2_ref, bn_ref, slopes_ref, out_ref,
                  s1_ref, q1_ref, s2_ref, q2_ref, fold1_ref):
    p = pl.program_id(0)
    b = pl.program_id(1)
    t = pl.program_id(2)
    nb = pl.num_programs(1)
    nt = pl.num_programs(2)

    @pl.when((p == 0) & (b == 0) & (t == 0))
    def _init():
        for r in (s1_ref, q1_ref, s2_ref, q2_ref):
            r[...] = jnp.zeros_like(r)

    h1 = jnp.dot(x_ref[0], w1_ref[...], preferred_element_type=jnp.float32)

    @pl.when(p == 0)
    def _phase0():
        # padded rows of x are exactly zero -> their h1 rows are zero -> moments unaffected
        s1_ref[...] += jnp.sum(h1, axis=0, keepdims=True)
        q1_ref[...] += jnp.sum(h1 * h1, axis=0, keepdims=True)

    @pl.when((p == 1) & (b == 0) & (t == 0))
    def _fold_bn1_once():
        bn = bn_ref[...]
        sc1, sh1 = _bn_fold(s1_ref[...], q1_ref[...], bn[0:1, :], bn[1:2, :], inv_n)
        fold1_ref[...] = jnp.concatenate([sc1, sh1], axis=0)

    @pl.when(p == 1)
    def _phase1():
        h = h1 * fold1_ref[0:1, :] + fold1_ref[1:2, :]           # folded BN1 (hoisted fold)
        a1 = slopes_ref[0]
        h = jnp.where(h >= 0.0, h, a1 * h)                       # PReLU1

        def accumulate(hm):
            h2 = jnp.dot(hm.astype(w2_ref.dtype), w2_ref[...],
                         preferred_element_type=jnp.float32)
            s2_ref[...] += jnp.sum(h2, axis=0, keepdims=True)
            q2_ref[...] += jnp.sum(h2 * h2, axis=0, keepdims=True)

        if L % tile_l == 0:                                      # no partial tile exists
            accumulate(h)
        else:                                                    # mask only the last tile
            @pl.when(t < nt - 1)
            def _full_tile():
                accumulate(h)

            @pl.when(t == nt - 1)
            def _partial_tile():
                lpos = lax.broadcasted_iota(jnp.int32, (h.shape[0], 1), 0) + t * tile_l
                accumulate(jnp.where(lpos < L, h, 0.0))

    @pl.when((p == 1) & (b == nb - 1) & (t == nt - 1))
    def _finalize():
        bn = bn_ref[...]
        sc2, sh2 = _bn_fold(s2_ref[...], q2_ref[...], bn[2:3, :], bn[3:4, :], inv_n)
        out_ref[...] = jnp.concatenate([fold1_ref[...], sc2, sh2], axis=0)


def _transform_kernel(downsample, x_ref, w1_ref, w2_ref, st_ref, slopes_ref, *rest):
    if downsample:
        wd_ref, o_ref, y_scr = rest
    else:
        o_ref, y_scr = rest

    x = x_ref[0]                                                 # (tile_l, Cin_p)
    st = st_ref[...]                                             # (4, Cout_p) f32
    sc1, sh1 = st[0:1, :], st[1:2, :]
    sc2, sh2 = st[2:3, :], st[3:4, :]

    h = jnp.dot(x, w1_ref[...], preferred_element_type=jnp.float32)
    h = h * sc1 + sh1                                            # folded BN1
    a1 = slopes_ref[0]
    h = jnp.where(h >= 0.0, h, a1 * h)                           # PReLU1

    y = jnp.dot(h.astype(w2_ref.dtype), w2_ref[...],
                preferred_element_type=jnp.float32)
    y = y * sc2 + sh2                                            # folded BN2

    if downsample:                                               # residual path
        y = y + jnp.dot(x, wd_ref[...], preferred_element_type=jnp.float32)
    else:
        y = y + x.astype(jnp.float32)                            # identity: no matmul

    a2 = slopes_ref[1]
    y = jnp.where(y >= 0.0, y, a2 * y)                           # PReLU2

    # MaxPool1d(kernel=3, stride=3): stride-3 sublane reads from VMEM scratch.
    # TODO(synk): shrink this round trip (sublane rolls / bf16 scratch / PReLU-after-pool).
    y_scr[...] = y
    q = y_scr.shape[0] // 3
    p0 = y_scr[pl.ds(0, q, stride=3), :]
    p1 = y_scr[pl.ds(1, q, stride=3), :]
    p2 = y_scr[pl.ds(2, q, stride=3), :]
    o_ref[0] = jnp.maximum(jnp.maximum(p0, p1), p2).astype(o_ref.dtype)


def _plan(L, Cin_p, Cout_p, mm_itemsize, downsample, requested_tile_l):
    """Pick tile_l (multiple of 48) and a generation-aware VMEM limit."""
    try:
        phys = int(getattr(pltpu.get_tpu_info(), "vmem_capacity_bytes", 128 << 20))
    except Exception:
        phys = 128 << 20
    cap = max(16 << 20, min(48 << 20, phys * 3 // 8))   # ~24 MiB on v7x, 48 MiB on v5e/v6e

    def usage(t):
        q = t // 3
        x_buf = 2 * t * Cin_p * mm_itemsize                       # streamed x, double-buffered
        o_buf = 2 * q * Cout_p * 4                                # streamed f32 output tiles
        w_buf = 2 * (Cin_p * Cout_p + Cout_p * Cout_p
                     + (Cin_p * Cout_p if downsample else 0)) * mm_itemsize
        rows = (2 * 4 + 8) * Cout_p * 4                           # bn/stats rows + row scratch
        scr = t * Cout_p * 4                                      # pool scratch
        live = 4 * t * Cout_p * 4                                 # f32 intermediates headroom
        return x_buf + o_buf + w_buf + rows + scr + live

    if requested_tile_l is None:
        lim = _round_up(L, 48)
        tile_l = 48
        for mult in range(1, 25):                                 # up to 1152 rows
            t = 48 * mult
            if t > lim or usage(t) > cap:
                break
            tile_l = t
    else:
        tile_l = requested_tile_l
    assert tile_l % 48 == 0, "tile_l must be a multiple of 48 (pool=3 x sublane packing)"
    vmem_bytes = int(min(cap, max(16 << 20, usage(tile_l) * 3 // 2 + (2 << 20))))
    return tile_l, vmem_bytes


@functools.partial(jax.jit, static_argnums=(2, 3))
def _resblock_impl(x_ncl, params, tile_l, matmul_dtype):
    B, Cin, L = x_ncl.shape
    Cout = params["w1"].shape[0]
    downsample = "wd" in params
    if not downsample:
        assert Cin == Cout, "identity residual requires in_dims == out_dims"

    f32 = jnp.float32
    mm = matmul_dtype
    itemsize = jnp.dtype(mm).itemsize
    Cin_p = _round_up(Cin, 128)
    Cout_p = _round_up(Cout, 128)

    tile_l, vmem_bytes = _plan(L, Cin_p, Cout_p, itemsize, downsample, tile_l)
    L_p = _round_up(L, tile_l)
    T = L_p // tile_l
    qrows = tile_l // 3
    Lp = L // 3

    # Ingest relayout: one fused transpose + cast + pad (single HBM read/write under jit).
    x_pad = jnp.pad(jnp.transpose(x_ncl, (0, 2, 1)).astype(mm),
                    ((0, 0), (0, L_p - L), (0, Cin_p - Cin)))

    def pad_weight(w, rows, cols):        # torch (Cout, Cin) -> padded (Cin_p, Cout_p)
        wt = jnp.transpose(w).astype(mm)
        return jnp.pad(wt, ((0, rows - wt.shape[0]), (0, cols - wt.shape[1])))

    def pad_row(v):
        v = v.astype(f32).reshape(1, -1)
        return jnp.pad(v, ((0, 0), (0, Cout_p - v.shape[1])))

    w1p = pad_weight(params["w1"], Cin_p, Cout_p)
    w2p = pad_weight(params["w2"], Cout_p, Cout_p)
    bn_ab = jnp.concatenate([pad_row(params["g1"]), pad_row(params["b1"]),
                             pad_row(params["g2"]), pad_row(params["b2"])], axis=0)
    slopes = jnp.concatenate([params["a1"].reshape(-1),
                              params["a2"].reshape(-1)]).astype(f32)
    inv_n = 1.0 / float(B * L)

    smem_full = pl.BlockSpec(memory_space=pltpu.MemorySpace.SMEM)

    # ---- pass 1: global BN1 / BN2 statistics (sequential 2-phase reduction) ----
    stats = pl.pallas_call(
        functools.partial(_stats_kernel, L, tile_l, inv_n),
        out_shape=jax.ShapeDtypeStruct((4, Cout_p), f32),
        grid=(2, B, T),
        in_specs=[
            pl.BlockSpec((1, tile_l, Cin_p), lambda p, b, t: (b, t, 0)),
            pl.BlockSpec((Cin_p, Cout_p), lambda p, b, t: (0, 0)),
            pl.BlockSpec((Cout_p, Cout_p), lambda p, b, t: (0, 0)),
            pl.BlockSpec((4, Cout_p), lambda p, b, t: (0, 0)),
            smem_full,
        ],
        out_specs=pl.BlockSpec((4, Cout_p), lambda p, b, t: (0, 0)),
        scratch_shapes=[pltpu.VMEM((1, Cout_p), f32) for _ in range(4)]
                       + [pltpu.VMEM((2, Cout_p), f32)],
        compiler_params=pltpu.CompilerParams(
            dimension_semantics=("arbitrary", "arbitrary", "arbitrary"),
            vmem_limit_bytes=vmem_bytes),
    )(x_pad, w1p, w2p, bn_ab, slopes)

    # ---- pass 2: per-tile transform + pool (independent tiles -> megacore parallel) ----
    operands = [x_pad, w1p, w2p, stats, slopes]
    in_specs = [
        pl.BlockSpec((1, tile_l, Cin_p), lambda b, t: (b, t, 0)),
        pl.BlockSpec((Cin_p, Cout_p), lambda b, t: (0, 0)),
        pl.BlockSpec((Cout_p, Cout_p), lambda b, t: (0, 0)),
        pl.BlockSpec((4, Cout_p), lambda b, t: (0, 0)),
        smem_full,
    ]
    if downsample:
        operands.append(pad_weight(params["wd"], Cin_p, Cout_p))
        in_specs.append(pl.BlockSpec((Cin_p, Cout_p), lambda b, t: (0, 0)))

    out_pad = pl.pallas_call(
        functools.partial(_transform_kernel, downsample),
        out_shape=jax.ShapeDtypeStruct((B, L_p // 3, Cout_p), f32),
        grid=(B, T),
        in_specs=in_specs,
        out_specs=pl.BlockSpec((1, qrows, Cout_p), lambda b, t: (b, t, 0)),
        scratch_shapes=[pltpu.VMEM((tile_l, Cout_p), f32)],
        compiler_params=pltpu.CompilerParams(
            dimension_semantics=("parallel", "parallel"),
            vmem_limit_bytes=vmem_bytes),
    )(*operands)

    # Crop padding + back to PyTorch NCL layout: one fused slice+transpose under jit.
    return jnp.transpose(out_pad[:, :Lp, :Cout], (0, 2, 1))


def resblock_forward(x_ncl, params, *, tile_l=None, matmul_dtype=jnp.bfloat16):
    """ResBlock forward. x_ncl: (B, Cin, L) f32 (PyTorch NCL). Returns (B, Cout, L//3) f32."""
    return _resblock_impl(x_ncl, params, tile_l, matmul_dtype)


def make_params(key, in_dims, out_dims):
    ks = jax.random.split(key, 7)
    p = {
        "w1": 0.2 * jax.random.normal(ks[0], (out_dims, in_dims), jnp.float32),
        "w2": 0.2 * jax.random.normal(ks[1], (out_dims, out_dims), jnp.float32),
        "g1": 1.0 + 0.1 * jax.random.normal(ks[2], (out_dims,), jnp.float32),
        "b1": 0.1 * jax.random.normal(ks[3], (out_dims,), jnp.float32),
        "g2": 1.0 + 0.1 * jax.random.normal(ks[4], (out_dims,), jnp.float32),
        "b2": 0.1 * jax.random.normal(ks[5], (out_dims,), jnp.float32),
        "a1": jnp.full((1,), 0.25, jnp.float32),   # PyTorch PReLU default
        "a2": jnp.full((1,), 0.10, jnp.float32),   # distinct slope to catch a1/a2 mixups
    }
    if in_dims != out_dims:
        p["wd"] = 0.2 * jax.random.normal(ks[6], (out_dims, in_dims), jnp.float32)
    return p


def resblock_ref(x, p, matmul_dtype=jnp.float32):
    """Pure-JAX reference mirroring the PyTorch module (training-mode BatchNorm, NCL)."""
    mm = matmul_dtype
    f32 = jnp.float32
    hi = lax.Precision.HIGHEST

    def conv(w, a):
        return jnp.einsum("oc,bcl->bol", w.astype(mm), a.astype(mm),
                          precision=hi, preferred_element_type=f32)

    def bn(h, g, b):
        m = h.mean(axis=(0, 2), keepdims=True)
        v = ((h - m) ** 2).mean(axis=(0, 2), keepdims=True)
        return (h - m) / jnp.sqrt(v + EPS) * g.reshape(1, -1, 1) + b.reshape(1, -1, 1)

    y = conv(p["w1"], x)
    y = bn(y, p["g1"], p["b1"])
    y = jnp.where(y >= 0, y, p["a1"][0] * y)
    y = conv(p["w2"], y)
    y = bn(y, p["g2"], p["b2"])
    if "wd" in p:
        y = y + conv(p["wd"], x)
    else:
        y = y + x.astype(mm).astype(f32)
    y = jnp.where(y >= 0, y, p["a2"][0] * y)
    B, C, L = y.shape
    Lp = L // 3
    return jnp.max(y[:, :, : Lp * 3].reshape(B, C, Lp, 3), axis=3)


if __name__ == "__main__":
    key = jax.random.PRNGKey(0)
    kx, kp1, kp2 = jax.random.split(key, 3)

    B, L = 2, 100
    Cin, Cout = 4, 8
    x = jax.random.normal(kx, (B, Cin, L), jnp.float32)
    params = make_params(kp1, Cin, Cout)

    # Case 1: default path — bf16 streaming, auto tile_l, downsample residual.
    y = jax.block_until_ready(resblock_forward(x, params))
    y_ref = resblock_ref(x, params, matmul_dtype=jnp.bfloat16)
    assert y.shape == (B, Cout, L // 3), y.shape
    assert jnp.allclose(y, y_ref, atol=2e-2, rtol=2e-2), \
        float(jnp.max(jnp.abs(y - y_ref)))

    # Case 2: f32 matmuls, small multi-tile grid (exercises masked last tile + accumulation).
    y32 = jax.block_until_ready(
        resblock_forward(x, params, tile_l=48, matmul_dtype=jnp.float32))
    y32_ref = resblock_ref(x, params)
    assert jnp.allclose(y32, y32_ref, atol=1e-4, rtol=1e-4), \
        float(jnp.max(jnp.abs(y32 - y32_ref)))

    # Case 3: in_dims == out_dims -> identity residual, no downsample matmul at all.
    params_id = make_params(kp2, Cout, Cout)
    x2 = jax.random.normal(kx, (B, Cout, L), jnp.float32)
    y_id = jax.block_until_ready(resblock_forward(x2, params_id))
    y_id_ref = resblock_ref(x2, params_id, matmul_dtype=jnp.bfloat16)
    assert jnp.allclose(y_id, y_id_ref, atol=2e-2, rtol=2e-2), \
        float(jnp.max(jnp.abs(y_id - y_id_ref)))

    print("KERNEL_OK")
</pallas_src>

<mosaic_0001>
module attributes {stable_mosaic.version = 11 : i64} {
  func.func @_transform_kernel(%arg0: i32, %arg1: i32, %arg2: memref<1x144x128xbf16, #tpu.memory_space<vmem>>, %arg3: memref<128x128xbf16, #tpu.memory_space<vmem>>, %arg4: memref<128x128xbf16, #tpu.memory_space<vmem>>, %arg5: memref<4x128xf32, #tpu.memory_space<vmem>>, %arg6: memref<2xf32, #tpu.memory_space<smem>>, %arg7: memref<128x128xbf16, #tpu.memory_space<vmem>>, %arg8: memref<1x48x128xf32, #tpu.memory_space<vmem>>, %arg9: memref<144x128xf32, #tpu.memory_space<vmem>>) attributes {dimension_semantics = [#tpu.dimension_semantics<parallel>, #tpu.dimension_semantics<parallel>], iteration_bounds = array<i64: 2, 1>, scalar_prefetch = 0 : i64, scratch_operands = 1 : i64, tpu.core_type = #tpu.core_type<tc>, window_params = [{transform_indices = @transform_0, window_bounds = array<i64: 1, 144, 128>}, {pipeline_mode = #tpu.pipeline_mode<synchronous>, transform_indices = @transform_1, window_bounds = array<i64: 128, 128>}, {pipeline_mode = #tpu.pipeline_mode<synchronous>, transform_indices = @transform_2, window_bounds = array<i64: 128, 128>}, {pipeline_mode = #tpu.pipeline_mode<synchronous>, transform_indices = @transform_3, window_bounds = array<i64: 4, 128>}, {transform_indices = @transform_4, window_bounds = array<i64: 2>}, {pipeline_mode = #tpu.pipeline_mode<synchronous>, transform_indices = @transform_5, window_bounds = array<i64: 128, 128>}, {transform_indices = @transform_6, window_bounds = array<i64: 1, 48, 128>}]} {
    %c0 = arith.constant 0 : index
    %c0_0 = arith.constant 0 : index
    %c0_1 = arith.constant 0 : index
    %0 = vector.load %arg2[%c0, %c0_0, %c0_1] : memref<1x144x128xbf16, #tpu.memory_space<vmem>>, vector<1x144x128xbf16>
    %1 = vector.shape_cast %0 : vector<1x144x128xbf16> to vector<144x128xbf16>
    %c0_2 = arith.constant 0 : index
    %c0_3 = arith.constant 0 : index
    %2 = vector.load %arg5[%c0_2, %c0_3] : memref<4x128xf32, #tpu.memory_space<vmem>>, vector<4x128xf32>
    %3 = vector.extract_strided_slice %2 {offsets = [0, 0], sizes = [1, 128], strides = [1, 1]} : vector<4x128xf32> to vector<1x128xf32>
    %4 = vector.extract_strided_slice %2 {offsets = [1, 0], sizes = [1, 128], strides = [1, 1]} : vector<4x128xf32> to vector<1x128xf32>
    %5 = vector.extract_strided_slice %2 {offsets = [2, 0], sizes = [1, 128], strides = [1, 1]} : vector<4x128xf32> to vector<1x128xf32>
    %6 = vector.extract_strided_slice %2 {offsets = [3, 0], sizes = [1, 128], strides = [1, 1]} : vector<4x128xf32> to vector<1x128xf32>
    %c0_4 = arith.constant 0 : index
    %c0_5 = arith.constant 0 : index
    %7 = vector.load %arg3[%c0_4, %c0_5] : memref<128x128xbf16, #tpu.memory_space<vmem>>, vector<128x128xbf16>
    %cst = arith.constant dense<0.000000e+00> : vector<144x128xf32>
    %8 = tpu.matmul %1, %7, %cst {dimension_numbers = #tpu.dot_dimension_numbers<[1], [0], [0], [1], [0, 0, 1, 1], [], []>} : vector<144x128xbf16>, vector<128x128xbf16>, vector<144x128xf32> -> vector<144x128xf32>
    %9 = vector.broadcast %3 : vector<1x128xf32> to vector<144x128xf32>
    %10 = arith.mulf %8, %9 : vector<144x128xf32>
    %11 = vector.broadcast %4 : vector<1x128xf32> to vector<144x128xf32>
    %12 = arith.addf %10, %11 : vector<144x128xf32>
    %c0_6 = arith.constant 0 : index
    %13 = memref.load %arg6[%c0_6] : memref<2xf32, #tpu.memory_space<smem>>
    %cst_7 = arith.constant 0.000000e+00 : f32
    %14 = vector.broadcast %cst_7 : f32 to vector<144x128xf32>
    %15 = arith.cmpf oge, %12, %14 : vector<144x128xf32>
    %16 = vector.broadcast %13 : f32 to vector<144x128xf32>
    %17 = arith.mulf %16, %12 : vector<144x128xf32>
    %18 = arith.select %15, %12, %17 : vector<144x128xi1>, vector<144x128xf32>
    %19 = arith.truncf %18 : vector<144x128xf32> to vector<144x128xbf16>
    %c0_8 = arith.constant 0 : index
    %c0_9 = arith.constant 0 : index
    %20 = vector.load %arg4[%c0_8, %c0_9] : memref<128x128xbf16, #tpu.memory_space<vmem>>, vector<128x128xbf16>
    %cst_10 = arith.constant dense<0.000000e+00> : vector<144x128xf32>
    %21 = tpu.matmul %19, %20, %cst_10 {dimension_numbers = #tpu.dot_dimension_numbers<[1], [0], [0], [1], [0, 0, 1, 1], [], []>} : vector<144x128xbf16>, vector<128x128xbf16>, vector<144x128xf32> -> vector<144x128xf32>
    %22 = vector.broadcast %5 : vector<1x128xf32> to vector<144x128xf32>
    %23 = arith.mulf %21, %22 : vector<144x128xf32>
    %24 = vector.broadcast %6 : vector<1x128xf32> to vector<144x128xf32>
    %25 = arith.addf %23, %24 : vector<144x128xf32>
    %c0_11 = arith.constant 0 : index
    %c0_12 = arith.constant 0 : index
    %26 = vector.load %arg7[%c0_11, %c0_12] : memref<128x128xbf16, #tpu.memory_space<vmem>>, vector<128x128xbf16>
    %cst_13 = arith.constant dense<0.000000e+00> : vector<144x128xf32>
    %27 = tpu.matmul %1, %26, %cst_13 {dimension_numbers = #tpu.dot_dimension_numbers<[1], [0], [0], [1], [0, 0, 1, 1], [], []>} : vector<144x128xbf16>, vector<128x128xbf16>, vector<144x128xf32> -> vector<144x128xf32>
    %28 = arith.addf %25, %27 : vector<144x128xf32>
    %c1 = arith.constant 1 : index
    %29 = memref.load %arg6[%c1] : memref<2xf32, #tpu.memory_space<smem>>
    %cst_14 = arith.constant 0.000000e+00 : f32
    %30 = vector.broadcast %cst_14 : f32 to vector<144x128xf32>
    %31 = arith.cmpf oge, %28, %30 : vector<144x128xf32>
    %32 = vector.broadcast %29 : f32 to vector<144x128xf32>
    %33 = arith.mulf %32, %28 : vector<144x128xf32>
    %34 = arith.select %31, %28, %33 : vector<144x128xi1>, vector<144x128xf32>
    %c0_15 = arith.constant 0 : index
    %c0_16 = arith.constant 0 : index
    %35 = vector.load %arg9[%c0_15, %c0_16] : memref<144x128xf32, #tpu.memory_space<vmem>>, vector<144x128xf32>
    tpu.vector_store %arg9[%c0_15, %c0_16], %34 {strides = array<i32>} : memref<144x128xf32, #tpu.memory_space<vmem>>, vector<144x128xf32>,
    %c0_17 = arith.constant 0 : index
    %c0_18 = arith.constant 0 : index
    %36 = tpu.strided_load %arg9[%c0_17, %c0_18] {strides = array<i32: 3, 1>} : memref<144x128xf32, #tpu.memory_space<vmem>>, vector<48x128xf32>
    %c1_19 = arith.constant 1 : index
    %c0_20 = arith.constant 0 : index
    %37 = tpu.strided_load %arg9[%c1_19, %c0_20] {strides = array<i32: 3, 1>} : memref<144x128xf32, #tpu.memory_space<vmem>>, vector<48x128xf32>
    %c2 = arith.constant 2 : index
    %c0_21 = arith.constant 0 : index
    %38 = tpu.strided_load %arg9[%c2, %c0_21] {strides = array<i32: 3, 1>} : memref<144x128xf32, #tpu.memory_space<vmem>>, vector<48x128xf32>
    %39 = arith.maximumf %36, %37 : vector<48x128xf32>
    %40 = arith.maximumf %39, %38 : vector<48x128xf32>
    %c0_22 = arith.constant 0 : index
    %c0_23 = arith.constant 0 : index
    %c0_24 = arith.constant 0 : index
    %41 = vector.load %arg8[%c0_22, %c0_23, %c0_24] : memref<1x48x128xf32, #tpu.memory_space<vmem>>, vector<1x48x128xf32>
    %42 = vector.shape_cast %41 : vector<1x48x128xf32> to vector<48x128xf32>
    %43 = vector.shape_cast %40 : vector<48x128xf32> to vector<1x48x128xf32>
    tpu.vector_store %arg8[%c0_22, %c0_23, %c0_24], %43 {strides = array<i32>} : memref<1x48x128xf32, #tpu.memory_space<vmem>>, vector<1x48x128xf32>,
    return
  }
  func.func @transform_0(%arg0: i32, %arg1: i32) -> (i32, i32, i32) {
    %c0_i32 = arith.constant 0 : i32
    %c0_i32_0 = arith.constant 0 : i32
    return %arg0, %arg1, %c0_i32 : i32, i32, i32
  }
  func.func @transform_1(%arg0: i32, %arg1: i32) -> (i32, i32) {
    %c0_i32 = arith.constant 0 : i32
    %c0_i32_0 = arith.constant 0 : i32
    %c0_i32_1 = arith.constant 0 : i32
    return %c0_i32, %c0_i32_0 : i32, i32
  }
  func.func @transform_2(%arg0: i32, %arg1: i32) -> (i32, i32) {
    %c0_i32 = arith.constant 0 : i32
    %c0_i32_0 = arith.constant 0 : i32
    %c0_i32_1 = arith.constant 0 : i32
    return %c0_i32, %c0_i32_0 : i32, i32
  }
  func.func @transform_3(%arg0: i32, %arg1: i32) -> (i32, i32) {
    %c0_i32 = arith.constant 0 : i32
    %c0_i32_0 = arith.constant 0 : i32
    %c0_i32_1 = arith.constant 0 : i32
    return %c0_i32, %c0_i32_0 : i32, i32
  }
  func.func @transform_4(%arg0: i32, %arg1: i32) -> i32 {
    %c0_i32 = arith.constant 0 : i32
    %c0_i32_0 = arith.constant 0 : i32
    return %c0_i32 : i32
  }
  func.func @transform_5(%arg0: i32, %arg1: i32) -> (i32, i32) {
    %c0_i32 = arith.constant 0 : i32
    %c0_i32_0 = arith.constant 0 : i32
    %c0_i32_1 = arith.constant 0 : i32
    return %c0_i32, %c0_i32_0 : i32, i32
  }
  func.func @transform_6(%arg0: i32, %arg1: i32) -> (i32, i32, i32) {
    %c0_i32 = arith.constant 0 : i32
    %c0_i32_0 = arith.constant 0 : i32
    return %arg0, %arg1, %c0_i32 : i32, i32, i32
  }
}

module attributes {stable_mosaic.version = 11 : i64} {
  func.func @_stats_kernel(%arg0: i32, %arg1: i32, %arg2: i32, %arg3: memref<1x144x128xbf16, #tpu.memory_space<vmem>>, %arg4: memref<128x128xbf16, #tpu.memory_space<vmem>>, %arg5: memref<128x128xbf16, #tpu.memory_space<vmem>>, %arg6: memref<4x128xf32, #tpu.memory_space<vmem>>, %arg7: memref<2xf32, #tpu.memory_space<smem>>, %arg8: memref<4x128xf32, #tpu.memory_space<vmem>>, %arg9: memref<1x128xf32, #tpu.memory_space<vmem>>, %arg10: memref<1x128xf32, #tpu.memory_space<vmem>>, %arg11: memref<1x128xf32, #tpu.memory_space<vmem>>, %arg12: memref<1x128xf32, #tpu.memory_space<vmem>>, %arg13: memref<2x128xf32, #tpu.memory_space<vmem>>) attributes {dimension_semantics = [#tpu.dimension_semantics<arbitrary>, #tpu.dimension_semantics<arbitrary>, #tpu.dimension_semantics<arbitrary>], iteration_bounds = array<i64: 2, 2, 1>, scalar_prefetch = 0 : i64, scratch_operands = 5 : i64, tpu.core_type = #tpu.core_type<tc>, window_params = [{transform_indices = @transform_0, window_bounds = array<i64: 1, 144, 128>}, {pipeline_mode = #tpu.pipeline_mode<synchronous>, transform_indices = @transform_1, window_bounds = array<i64: 128, 128>}, {pipeline_mode = #tpu.pipeline_mode<synchronous>, transform_indices = @transform_2, window_bounds = array<i64: 128, 128>}, {pipeline_mode = #tpu.pipeline_mode<synchronous>, transform_indices = @transform_3, window_bounds = array<i64: 4, 128>}, {transform_indices = @transform_4, window_bounds = array<i64: 2>}, {pipeline_mode = #tpu.pipeline_mode<synchronous>, transform_indices = @transform_5, window_bounds = array<i64: 4, 128>}]} {
    %c0_i32 = arith.constant 0 : i32
    %0 = arith.cmpi eq, %arg0, %c0_i32 : i32
    %c0_i32_0 = arith.constant 0 : i32
    %1 = arith.cmpi eq, %arg1, %c0_i32_0 : i32
    %2 = arith.andi %0, %1 : i1
    %c0_i32_1 = arith.constant 0 : i32
    %3 = arith.cmpi eq, %arg2, %c0_i32_1 : i32
    %4 = arith.andi %2, %3 : i1
    %5 = arith.extui %4 : i1 to i32
    %c0_i32_2 = arith.constant 0 : i32
    %6 = arith.cmpi ne, %5, %c0_i32_2 : i32
    scf.if %6 {
      %cst_18 = arith.constant 0.000000e+00 : f32
      %31 = vector.broadcast %cst_18 : f32 to vector<1x128xf32>
      %c0_19 = arith.constant 0 : index
      %c0_20 = arith.constant 0 : index
      %32 = vector.load %arg9[%c0_19, %c0_20] : memref<1x128xf32, #tpu.memory_space<vmem>>, vector<1x128xf32>
      tpu.vector_store %arg9[%c0_19, %c0_20], %31 {strides = array<i32>} : memref<1x128xf32, #tpu.memory_space<vmem>>, vector<1x128xf32>,
      %cst_21 = arith.constant 0.000000e+00 : f32
      %33 = vector.broadcast %cst_21 : f32 to vector<1x128xf32>
      %c0_22 = arith.constant 0 : index
      %c0_23 = arith.constant 0 : index
      %34 = vector.load %arg10[%c0_22, %c0_23] : memref<1x128xf32, #tpu.memory_space<vmem>>, vector<1x128xf32>
      tpu.vector_store %arg10[%c0_22, %c0_23], %33 {strides = array<i32>} : memref<1x128xf32, #tpu.memory_space<vmem>>, vector<1x128xf32>,
      %cst_24 = arith.constant 0.000000e+00 : f32
      %35 = vector.broadcast %cst_24 : f32 to vector<1x128xf32>
      %c0_25 = arith.constant 0 : index
      %c0_26 = arith.constant 0 : index
      %36 = vector.load %arg11[%c0_25, %c0_26] : memref<1x128xf32, #tpu.memory_space<vmem>>, vector<1x128xf32>
      tpu.vector_store %arg11[%c0_25, %c0_26], %35 {strides = array<i32>} : memref<1x128xf32, #tpu.memory_space<vmem>>, vector<1x128xf32>,
      %cst_27 = arith.constant 0.000000e+00 : f32
      %37 = vector.broadcast %cst_27 : f32 to vector<1x128xf32>
      %c0_28 = arith.constant 0 : index
      %c0_29 = arith.constant 0 : index
      %38 = vector.load %arg12[%c0_28, %c0_29] : memref<1x128xf32, #tpu.memory_space<vmem>>, vector<1x128xf32>
      tpu.vector_store %arg12[%c0_28, %c0_29], %37 {strides = array<i32>} : memref<1x128xf32, #tpu.memory_space<vmem>>, vector<1x128xf32>,
    } else {
    }
    %c0 = arith.constant 0 : index
    %c0_3 = arith.constant 0 : index
    %c0_4 = arith.constant 0 : index
    %7 = vector.load %arg3[%c0, %c0_3, %c0_4] : memref<1x144x128xbf16, #tpu.memory_space<vmem>>, vector<1x144x128xbf16>
    %8 = vector.shape_cast %7 : vector<1x144x128xbf16> to vector<144x128xbf16>
    %c0_5 = arith.constant 0 : index
    %c0_6 = arith.constant 0 : index
    %9 = vector.load %arg4[%c0_5, %c0_6] : memref<128x128xbf16, #tpu.memory_space<vmem>>, vector<128x128xbf16>
    %cst = arith.constant dense<0.000000e+00> : vector<144x128xf32>
    %10 = tpu.matmul %8, %9, %cst {dimension_numbers = #tpu.dot_dimension_numbers<[1], [0], [0], [1], [0, 0, 1, 1], [], []>} : vector<144x128xbf16>, vector<128x128xbf16>, vector<144x128xf32> -> vector<144x128xf32>
    %c0_i32_7 = arith.constant 0 : i32
    %11 = arith.cmpi eq, %arg0, %c0_i32_7 : i32
    %12 = arith.extui %11 : i1 to i32
    %c0_i32_8 = arith.constant 0 : i32
    %13 = arith.cmpi ne, %12, %c0_i32_8 : i32
    scf.if %13 {
      %c0_18 = arith.constant 0 : index
      %c0_19 = arith.constant 0 : index
      %31 = vector.load %arg9[%c0_18, %c0_19] : memref<1x128xf32, #tpu.memory_space<vmem>>, vector<1x128xf32>
      %cst_20 = arith.constant dense<0.000000e+00> : vector<128xf32>
      %32 = vector.multi_reduction <add>, %10, %cst_20 [0] : vector<144x128xf32> to vector<128xf32>
      %33 = vector.shape_cast %32 : vector<128xf32> to vector<1x128xf32>
      %34 = arith.addf %31, %33 : vector<1x128xf32>
      %c0_21 = arith.constant 0 : index
      %c0_22 = arith.constant 0 : index
      %35 = vector.load %arg9[%c0_21, %c0_22] : memref<1x128xf32, #tpu.memory_space<vmem>>, vector<1x128xf32>
      tpu.vector_store %arg9[%c0_21, %c0_22], %34 {strides = array<i32>} : memref<1x128xf32, #tpu.memory_space<vmem>>, vector<1x128xf32>,
      %c0_23 = arith.constant 0 : index
      %c0_24 = arith.constant 0 : index
      %36 = vector.load %arg10[%c0_23, %c0_24] : memref<1x128xf32, #tpu.memory_space<vmem>>, vector<1x128xf32>
      %37 = arith.mulf %10, %10 : vector<144x128xf32>
      %cst_25 = arith.constant dense<0.000000e+00> : vector<128xf32>
      %38 = vector.multi_reduction <add>, %37, %cst_25 [0] : vector<144x128xf32> to vector<128xf32>
      %39 = vector.shape_cast %38 : vector<128xf32> to vector<1x128xf32>
      %40 = arith.addf %36, %39 : vector<1x128xf32>
      %c0_26 = arith.constant 0 : index
      %c0_27 = arith.constant 0 : index
      %41 = vector.load %arg10[%c0_26, %c0_27] : memref<1x128xf32, #tpu.memory_space<vmem>>, vector<1x128xf32>
      tpu.vector_store %arg10[%c0_26, %c0_27], %40 {strides = array<i32>} : memref<1x128xf32, #tpu.memory_space<vmem>>, vector<1x128xf32>,
    } else {
    }
    %c1_i32 = arith.constant 1 : i32
    %14 = arith.cmpi eq, %arg0, %c1_i32 : i32
    %c0_i32_9 = arith.constant 0 : i32
    %15 = arith.cmpi eq, %arg1, %c0_i32_9 : i32
    %16 = arith.andi %14, %15 : i1
    %c0_i32_10 = arith.constant 0 : i32
    %17 = arith.cmpi eq, %arg2, %c0_i32_10 : i32
    %18 = arith.andi %16, %17 : i1
    %19 = arith.extui %18 : i1 to i32
    %c0_i32_11 = arith.constant 0 : i32
    %20 = arith.cmpi ne, %19, %c0_i32_11 : i32
    scf.if %20 {
      %c0_18 = arith.constant 0 : index
      %c0_19 = arith.constant 0 : index
      %31 = vector.load %arg6[%c0_18, %c0_19] : memref<4x128xf32, #tpu.memory_space<vmem>>, vector<4x128xf32>
      %c0_20 = arith.constant 0 : index
      %c0_21 = arith.constant 0 : index
      %32 = vector.load %arg9[%c0_20, %c0_21] : memref<1x128xf32, #tpu.memory_space<vmem>>, vector<1x128xf32>
      %c0_22 = arith.constant 0 : index
      %c0_23 = arith.constant 0 : index
      %33 = vector.load %arg10[%c0_22, %c0_23] : memref<1x128xf32, #tpu.memory_space<vmem>>, vector<1x128xf32>
      %34 = vector.extract_strided_slice %31 {offsets = [0, 0], sizes = [1, 128], strides = [1, 1]} : vector<4x128xf32> to vector<1x128xf32>
      %35 = vector.extract_strided_slice %31 {offsets = [1, 0], sizes = [1, 128], strides = [1, 1]} : vector<4x128xf32> to vector<1x128xf32>
      %cst_24 = arith.constant 5.000000e-03 : f32
      %36 = vector.broadcast %cst_24 : f32 to vector<1x128xf32>
      %37 = arith.mulf %32, %36 : vector<1x128xf32>
      %cst_25 = arith.constant 5.000000e-03 : f32
      %38 = vector.broadcast %cst_25 : f32 to vector<1x128xf32>
      %39 = arith.mulf %33, %38 : vector<1x128xf32>
      %40 = arith.mulf %37, %37 : vector<1x128xf32>
      %41 = arith.subf %39, %40 : vector<1x128xf32>
      %cst_26 = arith.constant 0.000000e+00 : f32
      %42 = vector.broadcast %cst_26 : f32 to vector<1x128xf32>
      %43 = arith.maximumf %41, %42 : vector<1x128xf32>
      %cst_27 = arith.constant 9.99999974E-6 : f32
      %44 = vector.broadcast %cst_27 : f32 to vector<1x128xf32>
      %45 = arith.addf %43, %44 : vector<1x128xf32>
      %46 = math.rsqrt %45 : vector<1x128xf32>
      %47 = arith.mulf %34, %46 : vector<1x128xf32>
      %48 = arith.mulf %37, %47 : vector<1x128xf32>
      %49 = arith.subf %35, %48 : vector<1x128xf32>
      %50 = tpu.concatenate %47, %49 in 0 : vector<1x128xf32>, vector<1x128xf32> -> vector<2x128xf32>
      %c0_28 = arith.constant 0 : index
      %c0_29 = arith.constant 0 : index
      %51 = vector.load %arg13[%c0_28, %c0_29] : memref<2x128xf32, #tpu.memory_space<vmem>>, vector<2x128xf32>
      tpu.vector_store %arg13[%c0_28, %c0_29], %50 {strides = array<i32>} : memref<2x128xf32, #tpu.memory_space<vmem>>, vector<2x128xf32>,
    } else {
    }
    %c1_i32_12 = arith.constant 1 : i32
    %21 = arith.cmpi eq, %arg0, %c1_i32_12 : i32
    %22 = arith.extui %21 : i1 to i32
    %c0_i32_13 = arith.constant 0 : i32
    %23 = arith.cmpi ne, %22, %c0_i32_13 : i32
    scf.if %23 {
      %c0_18 = arith.constant 0 : index
      %c0_19 = arith.constant 0 : index
      %31 = vector.load %arg13[%c0_18, %c0_19] : memref<2x128xf32, #tpu.memory_space<vmem>>, vector<1x128xf32>
      %32 = vector.broadcast %31 : vector<1x128xf32> to vector<144x128xf32>
      %33 = arith.mulf %10, %32 : vector<144x128xf32>
      %c1 = arith.constant 1 : index
      %c0_20 = arith.constant 0 : index
      %34 = vector.load %arg13[%c1, %c0_20] : memref<2x128xf32, #tpu.memory_space<vmem>>, vector<1x128xf32>
      %35 = vector.broadcast %34 : vector<1x128xf32> to vector<144x128xf32>
      %36 = arith.addf %33, %35 : vector<144x128xf32>
      %c0_21 = arith.constant 0 : index
      %37 = memref.load %arg7[%c0_21] : memref<2xf32, #tpu.memory_space<smem>>
      %cst_22 = arith.constant 0.000000e+00 : f32
      %38 = vector.broadcast %cst_22 : f32 to vector<144x128xf32>
      %39 = arith.cmpf oge, %36, %38 : vector<144x128xf32>
      %40 = vector.broadcast %37 : f32 to vector<144x128xf32>
      %41 = arith.mulf %40, %36 : vector<144x128xf32>
      %42 = arith.select %39, %36, %41 : vector<144x128xi1>, vector<144x128xf32>
      %c0_i32_23 = arith.constant 0 : i32
      %43 = arith.cmpi slt, %arg2, %c0_i32_23 : i32
      %44 = arith.extui %43 : i1 to i32
      %c0_i32_24 = arith.constant 0 : i32
      %45 = arith.cmpi ne, %44, %c0_i32_24 : i32
      scf.if %45 {
        %49 = arith.truncf %42 : vector<144x128xf32> to vector<144x128xbf16>
        %c0_27 = arith.constant 0 : index
        %c0_28 = arith.constant 0 : index
        %50 = vector.load %arg5[%c0_27, %c0_28] : memref<128x128xbf16, #tpu.memory_space<vmem>>, vector<128x128xbf16>
        %cst_29 = arith.constant dense<0.000000e+00> : vector<144x128xf32>
        %51 = tpu.matmul %49, %50, %cst_29 {dimension_numbers = #tpu.dot_dimension_numbers<[1], [0], [0], [1], [0, 0, 1, 1], [], []>} : vector<144x128xbf16>, vector<128x128xbf16>, vector<144x128xf32> -> vector<144x128xf32>
        %c0_30 = arith.constant 0 : index
        %c0_31 = arith.constant 0 : index
        %52 = vector.load %arg11[%c0_30, %c0_31] : memref<1x128xf32, #tpu.memory_space<vmem>>, vector<1x128xf32>
        %cst_32 = arith.constant dense<0.000000e+00> : vector<128xf32>
        %53 = vector.multi_reduction <add>, %51, %cst_32 [0] : vector<144x128xf32> to vector<128xf32>
        %54 = vector.shape_cast %53 : vector<128xf32> to vector<1x128xf32>
        %55 = arith.addf %52, %54 : vector<1x128xf32>
        %c0_33 = arith.constant 0 : index
        %c0_34 = arith.constant 0 : index
        %56 = vector.load %arg11[%c0_33, %c0_34] : memref<1x128xf32, #tpu.memory_space<vmem>>, vector<1x128xf32>
        tpu.vector_store %arg11[%c0_33, %c0_34], %55 {strides = array<i32>} : memref<1x128xf32, #tpu.memory_space<vmem>>, vector<1x128xf32>,
        %c0_35 = arith.constant 0 : index
        %c0_36 = arith.constant 0 : index
        %57 = vector.load %arg12[%c0_35, %c0_36] : memref<1x128xf32, #tpu.memory_space<vmem>>, vector<1x128xf32>
        %58 = arith.mulf %51, %51 : vector<144x128xf32>
        %cst_37 = arith.constant dense<0.000000e+00> : vector<128xf32>
        %59 = vector.multi_reduction <add>, %58, %cst_37 [0] : vector<144x128xf32> to vector<128xf32>
        %60 = vector.shape_cast %59 : vector<128xf32> to vector<1x128xf32>
        %61 = arith.addf %57, %60 : vector<1x128xf32>
        %c0_38 = arith.constant 0 : index
        %c0_39 = arith.constant 0 : index
        %62 = vector.load %arg12[%c0_38, %c0_39] : memref<1x128xf32, #tpu.memory_space<vmem>>, vector<1x128xf32>
        tpu.vector_store %arg12[%c0_38, %c0_39], %61 {strides = array<i32>} : memref<1x128xf32, #tpu.memory_space<vmem>>, vector<1x128xf32>,
      } else {
      }
      %c0_i32_25 = arith.constant 0 : i32
      %46 = arith.cmpi eq, %arg2, %c0_i32_25 : i32
      %47 = arith.extui %46 : i1 to i32
      %c0_i32_26 = arith.constant 0 : i32
      %48 = arith.cmpi ne, %47, %c0_i32_26 : i32
      scf.if %48 {
        %49 = tpu.iota {dimensions = array<i32: 0>} : vector<144x1xi32>
        %c144_i32 = arith.constant 144 : i32
        %50 = arith.muli %arg2, %c144_i32 : i32
        %51 = vector.broadcast %50 : i32 to vector<144x1xi32>
        %52 = arith.addi %49, %51 : vector<144x1xi32>
        %c100_i32 = arith.constant 100 : i32
        %53 = vector.broadcast %c100_i32 : i32 to vector<144x1xi32>
        %54 = arith.cmpi slt, %52, %53 : vector<144x1xi32>
        %cst_27 = arith.constant 0.000000e+00 : f32
        %55 = vector.shape_cast %54 : vector<144x1xi1> to vector<144x1xi1>
        %56 = vector.broadcast %55 : vector<144x1xi1> to vector<144x128xi1>
        %57 = vector.broadcast %cst_27 : f32 to vector<144x128xf32>
        %58 = arith.select %56, %42, %57 : vector<144x128xi1>, vector<144x128xf32>
        %59 = arith.truncf %58 : vector<144x128xf32> to vector<144x128xbf16>
        %c0_28 = arith.constant 0 : index
        %c0_29 = arith.constant 0 : index
        %60 = vector.load %arg5[%c0_28, %c0_29] : memref<128x128xbf16, #tpu.memory_space<vmem>>, vector<128x128xbf16>
        %cst_30 = arith.constant dense<0.000000e+00> : vector<144x128xf32>
        %61 = tpu.matmul %59, %60, %cst_30 {dimension_numbers = #tpu.dot_dimension_numbers<[1], [0], [0], [1], [0, 0, 1, 1], [], []>} : vector<144x128xbf16>, vector<128x128xbf16>, vector<144x128xf32> -> vector<144x128xf32>
        %c0_31 = arith.constant 0 : index
        %c0_32 = arith.constant 0 : index
        %62 = vector.load %arg11[%c0_31, %c0_32] : memref<1x128xf32, #tpu.memory_space<vmem>>, vector<1x128xf32>
        %cst_33 = arith.constant dense<0.000000e+00> : vector<128xf32>
        %63 = vector.multi_reduction <add>, %61, %cst_33 [0] : vector<144x128xf32> to vector<128xf32>
        %64 = vector.shape_cast %63 : vector<128xf32> to vector<1x128xf32>
        %65 = arith.addf %62, %64 : vector<1x128xf32>
        %c0_34 = arith.constant 0 : index
        %c0_35 = arith.constant 0 : index
        %66 = vector.load %arg11[%c0_34, %c0_35] : memref<1x128xf32, #tpu.memory_space<vmem>>, vector<1x128xf32>
        tpu.vector_store %arg11[%c0_34, %c0_35], %65 {strides = array<i32>} : memref<1x128xf32, #tpu.memory_space<vmem>>, vector<1x128xf32>,
        %c0_36 = arith.constant 0 : index
        %c0_37 = arith.constant 0 : index
        %67 = vector.load %arg12[%c0_36, %c0_37] : memref<1x128xf32, #tpu.memory_space<vmem>>, vector<1x128xf32>
        %68 = arith.mulf %61, %61 : vector<144x128xf32>
        %cst_38 = arith.constant dense<0.000000e+00> : vector<128xf32>
        %69 = vector.multi_reduction <add>, %68, %cst_38 [0] : vector<144x128xf32> to vector<128xf32>
        %70 = vector.shape_cast %69 : vector<128xf32> to vector<1x128xf32>
        %71 = arith.addf %67, %70 : vector<1x128xf32>
        %c0_39 = arith.constant 0 : index
        %c0_40 = arith.constant 0 : index
        %72 = vector.load %arg12[%c0_39, %c0_40] : memref<1x128xf32, #tpu.memory_space<vmem>>, vector<1x128xf32>
        tpu.vector_store %arg12[%c0_39, %c0_40], %71 {strides = array<i32>} : memref<1x128xf32, #tpu.memory_space<vmem>>, vector<1x128xf32>,
      } else {
      }
    } else {
    }
    %c1_i32_14 = arith.constant 1 : i32
    %24 = arith.cmpi eq, %arg0, %c1_i32_14 : i32
    %c1_i32_15 = arith.constant 1 : i32
    %25 = arith.cmpi eq, %arg1, %c1_i32_15 : i32
    %26 = arith.andi %24, %25 : i1
    %c0_i32_16 = arith.constant 0 : i32
    %27 = arith.cmpi eq, %arg2, %c0_i32_16 : i32
    %28 = arith.andi %26, %27 : i1
    %29 = arith.extui %28 : i1 to i32
    %c0_i32_17 = arith.constant 0 : i32
    %30 = arith.cmpi ne, %29, %c0_i32_17 : i32
    scf.if %30 {
      %c0_18 = arith.constant 0 : index
      %c0_19 = arith.constant 0 : index
      %31 = vector.load %arg6[%c0_18, %c0_19] : memref<4x128xf32, #tpu.memory_space<vmem>>, vector<4x128xf32>
      %c0_20 = arith.constant 0 : index
      %c0_21 = arith.constant 0 : index
      %32 = vector.load %arg11[%c0_20, %c0_21] : memref<1x128xf32, #tpu.memory_space<vmem>>, vector<1x128xf32>
      %c0_22 = arith.constant 0 : index
      %c0_23 = arith.constant 0 : index
      %33 = vector.load %arg12[%c0_22, %c0_23] : memref<1x128xf32, #tpu.memory_space<vmem>>, vector<1x128xf32>
      %34 = vector.extract_strided_slice %31 {offsets = [2, 0], sizes = [1, 128], strides = [1, 1]} : vector<4x128xf32> to vector<1x128xf32>
      %35 = vector.extract_strided_slice %31 {offsets = [3, 0], sizes = [1, 128], strides = [1, 1]} : vector<4x128xf32> to vector<1x128xf32>
      %cst_24 = arith.constant 5.000000e-03 : f32
      %36 = vector.broadcast %cst_24 : f32 to vector<1x128xf32>
      %37 = arith.mulf %32, %36 : vector<1x128xf32>
      %cst_25 = arith.constant 5.000000e-03 : f32
      %38 = vector.broadcast %cst_25 : f32 to vector<1x128xf32>
      %39 = arith.mulf %33, %38 : vector<1x128xf32>
      %40 = arith.mulf %37, %37 : vector<1x128xf32>
      %41 = arith.subf %39, %40 : vector<1x128xf32>
      %cst_26 = arith.constant 0.000000e+00 : f32
      %42 = vector.broadcast %cst_26 : f32 to vector<1x128xf32>
      %43 = arith.maximumf %41, %42 : vector<1x128xf32>
      %cst_27 = arith.constant 9.99999974E-6 : f32
      %44 = vector.broadcast %cst_27 : f32 to vector<1x128xf32>
      %45 = arith.addf %43, %44 : vector<1x128xf32>
      %46 = math.rsqrt %45 : vector<1x128xf32>
      %47 = arith.mulf %34, %46 : vector<1x128xf32>
      %48 = arith.mulf %37, %47 : vector<1x128xf32>
      %49 = arith.subf %35, %48 : vector<1x128xf32>
      %c0_28 = arith.constant 0 : index
      %c0_29 = arith.constant 0 : index
      %50 = vector.load %arg13[%c0_28, %c0_29] : memref<2x128xf32, #tpu.memory_space<vmem>>, vector<2x128xf32>
      %51 = tpu.concatenate %50, %47, %49 in 0 : vector<2x128xf32>, vector<1x128xf32>, vector<1x128xf32> -> vector<4x128xf32>
      %c0_30 = arith.constant 0 : index
      %c0_31 = arith.constant 0 : index
      %52 = vector.load %arg8[%c0_30, %c0_31] : memref<4x128xf32, #tpu.memory_space<vmem>>, vector<4x128xf32>
      tpu.vector_store %arg8[%c0_30, %c0_31], %51 {strides = array<i32>} : memref<4x128xf32, #tpu.memory_space<vmem>>, vector<4x128xf32>,
    } else {
    }
    return
  }
  func.func @transform_0(%arg0: i32, %arg1: i32, %arg2: i32) -> (i32, i32, i32) {
    %c0_i32 = arith.constant 0 : i32
    %c0_i32_0 = arith.constant 0 : i32
    return %arg1, %arg2, %c0_i32 : i32, i32, i32
  }
  func.func @transform_1(%arg0: i32, %arg1: i32, %arg2: i32) -> (i32, i32) {
    %c0_i32 = arith.constant 0 : i32
    %c0_i32_0 = arith.constant 0 : i32
    %c0_i32_1 = arith.constant 0 : i32
    return %c0_i32, %c0_i32_0 : i32, i32
  }
  func.func @transform_2(%arg0: i32, %arg1: i32, %arg2: i32) -> (i32, i32) {
    %c0_i32 = arith.constant 0 : i32
    %c0_i32_0 = arith.constant 0 : i32
    %c0_i32_1 = arith.constant 0 : i32
    return %c0_i32, %c0_i32_0 : i32, i32
  }
  func.func @transform_3(%arg0: i32, %arg1: i32, %arg2: i32) -> (i32, i32) {
    %c0_i32 = arith.constant 0 : i32
    %c0_i32_0 = arith.constant 0 : i32
    %c0_i32_1 = arith.constant 0 : i32
    return %c0_i32, %c0_i32_0 : i32, i32
  }
  func.func @transform_4(%arg0: i32, %arg1: i32, %arg2: i32) -> i32 {
    %c0_i32 = arith.constant 0 : i32
    %c0_i32_0 = arith.constant 0 : i32
    return %c0_i32 : i32
  }
  func.func @transform_5(%arg0: i32, %arg1: i32, %arg2: i32) -> (i32, i32) {
    %c0_i32 = arith.constant 0 : i32
    %c0_i32_0 = arith.constant 0 : i32
    %c0_i32_1 = arith.constant 0 : i32
    return %c0_i32, %c0_i32_0 : i32, i32
  }
}

</mosaic_0001>

<llo_original>
// kernel: _resblock_impl.3
$region0: #{_resblock_impl.3}
  #allocation0 [shape = 'u32[]', space=smem, size = 0x4, offset = 0x4, fixed_abs, tag = 'smem constant byte address 0x4 - core index']
  #allocation1 [shape = 'u32[144,128]{1,0:T(1,128)}', space=vmem, size = 0x12000, scoped, tag = 'internal scratch']
  #allocation2 [shape = 'f32[144,128]{1,0:T(8,128)}', space=vmem, size = 0x12000, scoped, tag = 'scratch operand']
  %s0 = inlined_call_operand.vmem [shape: bf16[2,144,128], index: 0, kind: input, shape index: {}]
  %s1 = inlined_call_operand.vmem [shape: bf16[128,128], index: 1, kind: input, shape index: {}]
  %s2 = inlined_call_operand.vmem [shape: bf16[128,128], index: 2, kind: input, shape index: {}]
  %s3 = inlined_call_operand.vmem [shape: f32[4,128], index: 3, kind: input, shape index: {}]
  %s4 = inlined_call_operand.vmem [shape: f32[2], index: 4, kind: input, shape index: {}]
  %s5 = inlined_call_operand.vmem [shape: bf16[128,128], index: 5, kind: input, shape index: {}]
  %s6 = inlined_call_operand.vmem [shape: f32[2,48,128], index: 6, kind: output, shape index: {}]
  %s7 = sld [smem:[#allocation0]]
  $region61: #{_resblock_impl.3} parent=0
    _
  %s9 = ssub.s32 1, %s7
  %s10 = scalar_select 0, %s9, %s7
  $region1: #{_resblock_impl.3} parent=0
    #allocation3 [shape = 'u8[512]{0}', space=smem, size = 0x200, scoped, tag = 'input window, operand 4, single buffered']
    #allocation4 [shape = 's32[2]{0}', space=sflag, size = 0x8, scoped, tag = 'scoped memory for _resblock_impl.3']
    %11 = vsyncpa [#allocation4], 0
    loop: start=0, step=1, limit=4
    $region2: #{_resblock_impl.3} parent=1 // loop_pre_header
      _
    $region3: #{_resblock_impl.3} parent=1 // loop_header
      %s13 = sphi 0, %s17
      %p14 = scmp.ge.s32.totalorder %s13, 4
      %s20 = sphi 0, %s32
      %s21 = sphi 0, %s28
      %s22 = sphi 0, %s20
      %s23 = sphi 0, %s21
      %s24 = sphi 0, %s22
      %s25 = sphi 0, %s23
      %s37 = sphi 0, %s39
      %s40 = sphi 0, %s37
      %s41 = sphi 0, %s40
      %s57 = sphi 0, %s41
      %s61 = sphi 0, %s61
      %s63 = sphi 0, %s61
      %s64 = sphi 0, %s63
      %s78 = sphi 0, %s64
      %s82 = sphi 0, %s82
      %s84 = sphi 0, %s82
      %s85 = sphi 0, %s84
      %s99 = sphi 0, %s85
      %s103 = sphi 0, %s103
      %s105 = sphi 0, %s103
      %s106 = sphi 0, %s105
      %s120 = sphi 0, %s106
      %s124 = sphi 0, %s124
      %s126 = sphi 0, %s124
      %s127 = sphi 0, %s126
      %s141 = sphi 0, %s127
      %s145 = sphi 0, %s145
      %s147 = sphi 0, %s145
      %s148 = sphi 0, %s147
      %s162 = sphi 0, %s148
      %s170 = sphi 0, %s172
      %s173 = sphi 0, %s170
      %s174 = sphi 0, %s173
      %s190 = sphi 0, %s174
    $region4: #{_resblock_impl.3} parent=1 // loop_header_branch
      %16 = sbr.rel (%p14) target = $region8
    $region5: #{_resblock_impl.3} parent=1 // loop_body
      %s18 = ssub.s32 %s13, 1
      %s19 = ssub.s32 %s13, 2
      %s26 = sadd.s32 1, %s21
      %p27 = scmp.ge.s32.totalorder %s26, 1
      %s28 = scalar_select %p27, 0, %s26
      %s29 = sadd.s32 1, %s20
      %s30 = scalar_select %p27, %s29, %s20
      %p31 = scmp.ge.s32.totalorder %s30, 2
      %s32 = scalar_select %p31, 0, %s30
      %s33 = ssub.s32 %s20, %s32
      %s34 = ssub.s32 %s21, %s28
      %s35 = sor.u32 %s33, %s34
      %p36 = scmp.eq.s32.totalorder %s35, 0
      %s38 = sadd.s32 %s37, 1
      %s39 = scalar_select %p36, %s37, %s38
      %p42 = pneg %p36
      %p43 = scmp.eq.s32.totalorder %s13, 1
      %p44 = por %p42, %p43
      %p45 = scmp.ne.s32.totalorder %s37, %s40
      %p46 = scmp.eq.s32.totalorder %s13, 0
      %p47 = por %p45, %p46
      %p48 = scmp.ne.s32.totalorder %s37, %s40
      %p49 = scmp.eq.s32.totalorder %s18, 1
      %p50 = por %p48, %p49
      %p51 = scmp.ne.s32.totalorder %s40, %s41
      %p52 = scmp.eq.s32.totalorder %s18, 0
      %p53 = por %p51, %p52
      %p54 = scmp.ne.s32.totalorder %s40, %s41
      %p55 = scmp.eq.s32.totalorder %s19, 1
      %p56 = por %p54, %p55
      %p58 = scmp.ne.s32.totalorder %s41, %s57
      %p59 = scmp.eq.s32.totalorder %s19, 0
      %p60 = por %p58, %p59
      %s62 = sadd.s32 %s61, 1
      %p65 = scmp.eq.s32.totalorder %s13, 1
      %p66 = scmp.ne.s32.totalorder %s61, %s63
      %p67 = scmp.eq.s32.totalorder %s13, 0
      %p68 = por %p66, %p67
      %p69 = scmp.ne.s32.totalorder %s61, %s63
      %p70 = scmp.eq.s32.totalorder %s18, 1
      %p71 = por %p69, %p70
      %p72 = scmp.ne.s32.totalorder %s63, %s64
      %p73 = scmp.eq.s32.totalorder %s18, 0
      %p74 = por %p72, %p73
      %p75 = scmp.ne.s32.totalorder %s63, %s64
      %p76 = scmp.eq.s32.totalorder %s19, 1
      %p77 = por %p75, %p76
      %p79 = scmp.ne.s32.totalorder %s64, %s78
      %p80 = scmp.eq.s32.totalorder %s19, 0
      %p81 = por %p79, %p80
      %s83 = sadd.s32 %s82, 1
      %p86 = scmp.eq.s32.totalorder %s13, 1
      %p87 = scmp.ne.s32.totalorder %s82, %s84
      %p88 = scmp.eq.s32.totalorder %s13, 0
      %p89 = por %p87, %p88
      %p90 = scmp.ne.s32.totalorder %s82, %s84
      %p91 = scmp.eq.s32.totalorder %s18, 1
      %p92 = por %p90, %p91
      %p93 = scmp.ne.s32.totalorder %s84, %s85
      %p94 = scmp.eq.s32.totalorder %s18, 0
      %p95 = por %p93, %p94
      %p96 = scmp.ne.s32.totalorder %s84, %s85
      %p97 = scmp.eq.s32.totalorder %s19, 1
      %p98 = por %p96, %p97
      %p100 = scmp.ne.s32.totalorder %s85, %s99
      %p101 = scmp.eq.s32.totalorder %s19, 0
      %p102 = por %p100, %p101
      %s104 = sadd.s32 %s103, 1
      %p107 = scmp.eq.s32.totalorder %s13, 1
      %p108 = scmp.ne.s32.totalorder %s103, %s105
      %p109 = scmp.eq.s32.totalorder %s13, 0
      %p110 = por %p108, %p109
      %p111 = scmp.ne.s32.totalorder %s103, %s105
      %p112 = scmp.eq.s32.totalorder %s18, 1
      %p113 = por %p111, %p112
      %p114 = scmp.ne.s32.totalorder %s105, %s106
      %p115 = scmp.eq.s32.totalorder %s18, 0
      %p116 = por %p114, %p115
      %p117 = scmp.ne.s32.totalorder %s105, %s106
      %p118 = scmp.eq.s32.totalorder %s19, 1
      %p119 = por %p117, %p118
      %p121 = scmp.ne.s32.totalorder %s106, %s120
      %p122 = scmp.eq.s32.totalorder %s19, 0
      %p123 = por %p121, %p122
      %s125 = sadd.s32 %s124, 1
      %p128 = scmp.eq.s32.totalorder %s13, 1
      %p129 = scmp.ne.s32.totalorder %s124, %s126
      %p130 = scmp.eq.s32.totalorder %s13, 0
      %p131 = por %p129, %p130
      %p132 = scmp.ne.s32.totalorder %s124, %s126
      %p133 = scmp.eq.s32.totalorder %s18, 1
      %p134 = por %p132, %p133
      %p135 = scmp.ne.s32.totalorder %s126, %s127
      %p136 = scmp.eq.s32.totalorder %s18, 0
      %p137 = por %p135, %p136
      %p138 = scmp.ne.s32.totalorder %s126, %s127
      %p139 = scmp.eq.s32.totalorder %s19, 1
      %p140 = por %p138, %p139
      %p142 = scmp.ne.s32.totalorder %s127, %s141
      %p143 = scmp.eq.s32.totalorder %s19, 0
      %p144 = por %p142, %p143
      %s146 = sadd.s32 %s145, 1
      %p149 = scmp.eq.s32.totalorder %s13, 1
      %p150 = scmp.ne.s32.totalorder %s145, %s147
      %p151 = scmp.eq.s32.totalorder %s13, 0
      %p152 = por %p150, %p151
      %p153 = scmp.ne.s32.totalorder %s145, %s147
      %p154 = scmp.eq.s32.totalorder %s18, 1
      %p155 = por %p153, %p154
      %p156 = scmp.ne.s32.totalorder %s147, %s148
      %p157 = scmp.eq.s32.totalorder %s18, 0
      %p158 = por %p156, %p157
      %p159 = scmp.ne.s32.totalorder %s147, %s148
      %p160 = scmp.eq.s32.totalorder %s19, 1
      %p161 = por %p159, %p160
      %p163 = scmp.ne.s32.totalorder %s148, %s162
      %p164 = scmp.eq.s32.totalorder %s19, 0
      %p165 = por %p163, %p164
      %s166 = ssub.s32 %s20, %s32
      %s167 = ssub.s32 %s21, %s28
      %s168 = sor.u32 %s166, %s167
      %p169 = scmp.eq.s32.totalorder %s168, 0
      %s171 = sadd.s32 %s170, 1
      %s172 = scalar_select %p169, %s170, %s171
      %p175 = pneg %p169
      %p176 = scmp.eq.s32.totalorder %s13, 1
      %p177 = por %p175, %p176
      %p178 = scmp.ne.s32.totalorder %s170, %s173
      %p179 = scmp.eq.s32.totalorder %s13, 0
      %p180 = por %p178, %p179
      %p181 = scmp.ne.s32.totalorder %s170, %s173
      %p182 = scmp.eq.s32.totalorder %s18, 1
      %p183 = por %p181, %p182
      %p184 = scmp.ne.s32.totalorder %s173, %s174
      %p185 = scmp.eq.s32.totalorder %s18, 0
      %p186 = por %p184, %p185
      %p187 = scmp.ne.s32.totalorder %s173, %s174
      %p188 = scmp.eq.s32.totalorder %s19, 1
      %p189 = por %p187, %p188
      %p191 = scmp.ne.s32.totalorder %s174, %s190
      %p192 = scmp.eq.s32.totalorder %s19, 0
      %p193 = por %p191, %p192
      %p194 = scmp.le.s32.totalorder 1, %s13
      %p195 = scmp.lt.s32.totalorder %s13, 3
      %p196 = pnand %p194, %p195
      %p197 = pneg %p196
      // Predicated region
      $region9: #{_resblock_impl.3} parent=5 // pred_check
        _
      $region10: #{_resblock_impl.3} parent=5 // pred_check_branch
        %199 = sbr.rel (%p196) target = $region12
      $region11: #{_resblock_impl.3} parent=5 // pred_region
        %s200 = ssub.s32 %s13, 1
        // Predicated region
        $region13: #{_resblock_impl.3} parent=11 // pred_check
          %p201 = pneg %p74
        $region14: #{_resblock_impl.3} parent=11 // pred_check_branch
          %203 = sbr.rel (%p201) target = $region16
        $region15: #{_resblock_impl.3} parent=11 // pred_region
          _
        $region16: #{_resblock_impl.3} parent=11 // pred_fallthru
          _
        // Predicated region
        $region17: #{_resblock_impl.3} parent=11 // pred_check
          %p204 = pneg %p95
        $region18: #{_resblock_impl.3} parent=11 // pred_check_branch
          %206 = sbr.rel (%p204) target = $region20
        $region19: #{_resblock_impl.3} parent=11 // pred_region
          _
        $region20: #{_resblock_impl.3} parent=11 // pred_fallthru
          _
        // Predicated region
        $region21: #{_resblock_impl.3} parent=11 // pred_check
          %p207 = pneg %p116
        $region22: #{_resblock_impl.3} parent=11 // pred_check_branch
          %209 = sbr.rel (%p207) target = $region24
        $region23: #{_resblock_impl.3} parent=11 // pred_region
          _
        $region24: #{_resblock_impl.3} parent=11 // pred_fallthru
          _
        // Predicated region
        $region25: #{_resblock_impl.3} parent=11 // pred_check
          %p210 = pneg %p137
        $region26: #{_resblock_impl.3} parent=11 // pred_check_branch
          %212 = sbr.rel (%p210) target = $region28
        $region27: #{_resblock_impl.3} parent=11 // pred_region
          %s214 = ssub.s32 16, 16
          %215 = vsyncadd [#allocation4], %s214
          %s217 = sshll.u32 %s4, 4
          %s218 = int_to_ptr.vmem [resolvable:$true] %s217
          %220 = dma.vmem_to_smem %s218, 16, [#allocation3], [#allocation4]
        $region28: #{_resblock_impl.3} parent=11 // pred_fallthru
          _
        // Predicated region
        $region29: #{_resblock_impl.3} parent=11 // pred_check
          %p221 = pneg %p158
        $region30: #{_resblock_impl.3} parent=11 // pred_check_branch
          %223 = sbr.rel (%p221) target = $region32
        $region31: #{_resblock_impl.3} parent=11 // pred_region
          _
        $region32: #{_resblock_impl.3} parent=11 // pred_fallthru
          _
      $region12: #{_resblock_impl.3} parent=5 // pred_fallthru
        _
      %p224 = scmp.lt.s32.totalorder %s13, 2
      // Predicated region
      $region33: #{_resblock_impl.3} parent=5 // pred_check
        %p225 = pneg %p224
      $region34: #{_resblock_impl.3} parent=5 // pred_check_branch
        %227 = sbr.rel (%p225) target = $region36
      $region35: #{_resblock_impl.3} parent=5 // pred_region
        // Predicated region
        $region37: #{_resblock_impl.3} parent=35 // pred_check
          %p228 = pneg %p47
        $region38: #{_resblock_impl.3} parent=35 // pred_check_branch
          %230 = sbr.rel (%p228) target = $region40
        $region39: #{_resblock_impl.3} parent=35 // pred_region
          %s231 = smul.u32 18, %s21
          %p232 = scmp.lt.s32.totalorder %s20, 1
          %s233 = scalar_select %p232, %s20, 1
          %p234 = scmp.lt.s32.totalorder %s231, 17
          %s235 = scalar_select %p234, %s231, 17
          %s236 = smul.addr %s233, 18
          %s237 = sadd.s32 %s235, %s236
          %s238 = smul.addr %s237, 4
          %s239 = scalar_lea.vmem %s0, %s238
          %s240 = smul.u32 18, %s21
        $region40: #{_resblock_impl.3} parent=35 // pred_fallthru
          _
      $region36: #{_resblock_impl.3} parent=5 // pred_fallthru
        _
      %p241 = scmp.le.s32.totalorder 1, %s13
      %p242 = scmp.lt.s32.totalorder %s13, 3
      %p243 = pnand %p241, %p242
      %p244 = pneg %p243
      // Predicated region
      $region41: #{_resblock_impl.3} parent=5 // pred_check
        _
      $region42: #{_resblock_impl.3} parent=5 // pred_check_branch
        %246 = sbr.rel (%p243) target = $region44
      $region43: #{_resblock_impl.3} parent=5 // pred_region
        %s247 = ssub.s32 %s13, 1
        // Predicated region
        $region45: #{_resblock_impl.3} parent=43 // pred_check
          %p248 = pneg %p137
        $region46: #{_resblock_impl.3} parent=43 // pred_check_branch
          %250 = sbr.rel (%p248) target = $region48
        $region47: #{_resblock_impl.3} parent=43 // pred_region
          %251 = dma.done [#allocation4], 16
        $region48: #{_resblock_impl.3} parent=43 // pred_fallthru
          _
        %252 = sfence
        %s253 = smul.u32 18, %s23
        %p254 = scmp.lt.s32.totalorder %s22, 1
        %s255 = scalar_select %p254, %s22, 1
        %p256 = scmp.lt.s32.totalorder %s253, 17
        %s257 = scalar_select %p256, %s253, 17
        %s258 = smul.addr %s255, 18
        %s259 = sadd.s32 %s257, %s258
        %s260 = smul.addr %s259, 4
        %s261 = scalar_lea.vmem %s0, %s260
        %p262 = pneg %p53
        %p263 = pneg %p50
        %p264 = pneg %p74
        %p265 = pneg %p71
        %p266 = pneg %p95
        %p267 = pneg %p92
        %p268 = pneg %p116
        %p269 = pneg %p113
        %p270 = pneg %p137
        %p271 = pneg %p134
        %p272 = pneg %p158
        %p273 = pneg %p155
        %p274 = pneg %p186
        %p275 = pneg %p183
        %s276 = smul.u32 6, %s23
        %p277 = scmp.lt.s32.totalorder %s22, 1
        %s278 = scalar_select %p277, %s22, 1
        %p279 = scmp.lt.s32.totalorder %s276, 5
        %s280 = scalar_select %p279, %s276, 5
        %s281 = smul.addr %s278, 6
        %s282 = sadd.s32 %s280, %s281
        %s283 = smul.addr %s282, 8
        %s284 = scalar_lea.vmem %s6, %s283
        %s285 = smul.u32 18, %s23
        %p286 = scmp.lt.s32.totalorder %s22, 1
        %s287 = scalar_select %p286, %s22, 1
        %p288 = scmp.lt.s32.totalorder %s285, 17
        %s289 = scalar_select %p288, %s285, 17
        %s290 = smul.addr %s287, 18
        %s291 = sadd.s32 %s289, %s290
        %s292 = smul.addr %s291, 4
        %s293 = scalar_lea.vmem %s0, %s292
        %s294 = smul.u32 18, %s23
        %s295 = smul.u32 6, %s23
        %p296 = scmp.lt.s32.totalorder %s22, 1
        %s297 = scalar_select %p296, %s22, 1
        %p298 = scmp.lt.s32.totalorder %s295, 5
        %s299 = scalar_select %p298, %s295, 5
        %s300 = smul.addr %s297, 6
        %s301 = sadd.s32 %s299, %s300
        %s302 = smul.addr %s301, 8
        %s303 = scalar_lea.vmem %s6, %s302
        %s304 = smul.u32 6, %s23
        %v306 = vld [vmem:[%s293] sm:$0xf]
        %v307 = vld [vmem:[%s293 + $0x4] sm:$0xf]
        %v308 = vld [vmem:[%s293 + $0x8] sm:$0xf]
        %v309 = vld [vmem:[%s293 + $0xc] sm:$0xf]
        %v310 = vld [vmem:[%s293 + $0x10] sm:$0xf]
        %v311 = vld [vmem:[%s293 + $0x14] sm:$0xf]
        %v312 = vld [vmem:[%s293 + $0x18] sm:$0xf]
        %v313 = vld [vmem:[%s293 + $0x1c] sm:$0xf]
        %v314 = vld [vmem:[%s293 + $0x20] sm:$0xf]
        %v315 = vld [vmem:[%s293 + $0x24] sm:$0xf]
        %v316 = vld [vmem:[%s293 + $0x28] sm:$0xf]
        %v317 = vld [vmem:[%s293 + $0x2c] sm:$0xf]
        %v318 = vld [vmem:[%s293 + $0x30] sm:$0xf]
        %v319 = vld [vmem:[%s293 + $0x34] sm:$0xf]
        %v320 = vld [vmem:[%s293 + $0x38] sm:$0xf]
        %v321 = vld [vmem:[%s293 + $0x3c] sm:$0xf]
        %v322 = vld [vmem:[%s293 + $0x40] sm:$0xf]
        %v323 = vld [vmem:[%s293 + $0x44] sm:$0xf]
        %v324 = vld [vmem:[%s3] sm:$0xf]
        %v325 = vld [vmem:[%s1] sm:$0xf]
        %v326 = vld [vmem:[%s1 + $0x4] sm:$0xf]
        %v327 = vld [vmem:[%s1 + $0x8] sm:$0xf]
        %v328 = vld [vmem:[%s1 + $0xc] sm:$0xf]
        %v329 = vld [vmem:[%s1 + $0x10] sm:$0xf]
        %v330 = vld [vmem:[%s1 + $0x14] sm:$0xf]
        %v331 = vld [vmem:[%s1 + $0x18] sm:$0xf]
        %v332 = vld [vmem:[%s1 + $0x1c] sm:$0xf]
        %v333 = vld [vmem:[%s1 + $0x20] sm:$0xf]
        %v334 = vld [vmem:[%s1 + $0x24] sm:$0xf]
        %v335 = vld [vmem:[%s1 + $0x28] sm:$0xf]
        %v336 = vld [vmem:[%s1 + $0x2c] sm:$0xf]
        %v337 = vld [vmem:[%s1 + $0x30] sm:$0xf]
        %v338 = vld [vmem:[%s1 + $0x34] sm:$0xf]
        %v339 = vld [vmem:[%s1 + $0x38] sm:$0xf]
        %v340 = vld [vmem:[%s1 + $0x3c] sm:$0xf]
        %v359 = vunpack.c.l.b16 %v306
        %v360 = vunpack.c.l.b16 %v307
        %v361 = vunpack.c.l.b16 %v308
        %v362 = vunpack.c.l.b16 %v309
        %v363 = vunpack.c.l.b16 %v310
        %v364 = vunpack.c.l.b16 %v311
        %v365 = vunpack.c.l.b16 %v312
        %v366 = vunpack.c.l.b16 %v313
        %v367 = vunpack.c.l.b16 %v314
        %v368 = vunpack.c.l.b16 %v315
        %v369 = vunpack.c.l.b16 %v316
        %v370 = vunpack.c.l.b16 %v317
        %v371 = vunpack.c.l.b16 %v318
        %v372 = vunpack.c.l.b16 %v319
        %v373 = vunpack.c.l.b16 %v320
        %v374 = vunpack.c.l.b16 %v321
        %v375 = vunpack.c.l.b16 %v322
        %v376 = vunpack.c.l.b16 %v323
        %v377 = vpack.c.b16 %v360, %v359
        %v378 = vpack.c.b16 %v362, %v361
        %v379 = vpack.c.b16 %v364, %v363
        %v380 = vpack.c.b16 %v366, %v365
        %v381 = vpack.c.b16 %v368, %v367
        %v382 = vpack.c.b16 %v370, %v369
        %v383 = vpack.c.b16 %v372, %v371
        %v384 = vpack.c.b16 %v374, %v373
        %v385 = vpack.c.b16 %v376, %v375
        %v411 = vunpack.c.l.b16 %v325
        %v412 = vunpack.c.l.b16 %v326
        %v413 = vunpack.c.l.b16 %v327
        %v414 = vunpack.c.l.b16 %v328
        %v415 = vunpack.c.l.b16 %v329
        %v416 = vunpack.c.l.b16 %v330
        %v417 = vunpack.c.l.b16 %v331
        %v418 = vunpack.c.l.b16 %v332
        %v419 = vunpack.c.l.b16 %v333
        %v420 = vunpack.c.l.b16 %v334
        %v421 = vunpack.c.l.b16 %v335
        %v422 = vunpack.c.l.b16 %v336
        %v423 = vunpack.c.l.b16 %v337
        %v424 = vunpack.c.l.b16 %v338
        %v425 = vunpack.c.l.b16 %v339
        %v426 = vunpack.c.l.b16 %v340
        %v427 = vpack.c.b16 %v412, %v411
        %v428 = vpack.c.b16 %v414, %v413
        %v429 = vpack.c.b16 %v416, %v415
        %v430 = vpack.c.b16 %v418, %v417
        %v431 = vpack.c.b16 %v420, %v419
        %v432 = vpack.c.b16 %v422, %v421
        %v433 = vpack.c.b16 %v424, %v423
        %v434 = vpack.c.b16 %v426, %v425
        %443 = vmatprep.subr.bf16.mxu0 0
        %444 = vmatpush1.bf16.msra.mxu0 %v427
        %445 = vmatprep.subr.bf16.mxu0 0
        %446 = vmatpush1.bf16.msra.mxu0 %v428
        %447 = vmatprep.subr.bf16.mxu0 0
        %448 = vmatpush1.bf16.msra.mxu0 %v429
        %449 = vmatprep.subr.bf16.mxu0 0
        %450 = vmatpush1.bf16.msra.mxu0 %v430
        %451 = vmatprep.subr.bf16.mxu0 0
        %452 = vmatpush1.bf16.msra.mxu0 %v431
        %453 = vmatprep.subr.bf16.mxu0 0
        %454 = vmatpush1.bf16.msra.mxu0 %v432
        %455 = vmatprep.subr.bf16.mxu0 0
        %456 = vmatpush1.bf16.msra.mxu0 %v433
        %457 = vmatprep.subr.bf16.mxu0 0
        %458 = vmatpush1.bf16.msra.mxu0 %v434
        %459 = vmatprep.subr.bf16.mxu0 0
        %460 = vmatpush1.bf16.msra.mxu0 0
        %461 = vmatprep.subr.bf16.mxu0 0
        %462 = vmatpush1.bf16.msra.mxu0 0
        %463 = vmatprep.subr.bf16.mxu0 0
        %464 = vmatpush1.bf16.msra.mxu0 0
        %465 = vmatprep.subr.bf16.mxu0 0
        %466 = vmatpush1.bf16.msra.mxu0 0
        %467 = vmatprep.subr.bf16.mxu0 0
        %468 = vmatpush1.bf16.msra.mxu0 0
        %469 = vmatprep.subr.bf16.mxu0 0
        %470 = vmatpush1.bf16.msra.mxu0 0
        %471 = vmatprep.subr.bf16.mxu0 0
        %472 = vmatpush1.bf16.msra.mxu0 0
        %473 = vmatprep.subr.bf16.mxu0 0
        %474 = vmatpush1.bf16.msra.mxu0 0
        %475 = vmatprep.mubr.bf16.mxu0 0
        %476 = vmatmul.mubr.bf16.gmra.mrb[0].mxu0 %v377
        %v477 = vpop.f32.mrb[0].mxu0
        %v478 = vadd.f32 0.0, %v477
        %v479 = vpop.f32.mrb[0].mxu0
        %v480 = vpop.f32.mrb[0].mxu0
        %v481 = vadd.f32 0.0, %v480
        %v482 = vpop.f32.mrb[0].mxu0
        %483 = vmatprep.mubr.bf16.mxu0 0
        %484 = vmatmul.mubr.bf16.gmra.mrb[0].mxu0 %v378
        %v485 = vpop.f32.mrb[0].mxu0
        %v486 = vadd.f32 0.0, %v485
        %v487 = vpop.f32.mrb[0].mxu0
        %v488 = vpop.f32.mrb[0].mxu0
        %v489 = vadd.f32 0.0, %v488
        %v490 = vpop.f32.mrb[0].mxu0
        %491 = vmatprep.mubr.bf16.mxu0 0
        %492 = vmatmul.mubr.bf16.gmra.mrb[0].mxu0 %v379
        %v493 = vpop.f32.mrb[0].mxu0
        %v494 = vadd.f32 0.0, %v493
        %v495 = vpop.f32.mrb[0].mxu0
        %v496 = vpop.f32.mrb[0].mxu0
        %v497 = vadd.f32 0.0, %v496
        %v498 = vpop.f32.mrb[0].mxu0
        %499 = vmatprep.mubr.bf16.mxu0 0
        %500 = vmatmul.mubr.bf16.gmra.mrb[0].mxu0 %v380
        %v501 = vpop.f32.mrb[0].mxu0
        %v502 = vadd.f32 0.0, %v501
        %v503 = vpop.f32.mrb[0].mxu0
        %v504 = vpop.f32.mrb[0].mxu0
        %v505 = vadd.f32 0.0, %v504
        %v506 = vpop.f32.mrb[0].mxu0
        %507 = vmatprep.mubr.bf16.mxu0 0
        %508 = vmatmul.mubr.bf16.gmra.mrb[0].mxu0 %v381
        %v509 = vpop.f32.mrb[0].mxu0
        %v510 = vadd.f32 0.0, %v509
        %v511 = vpop.f32.mrb[0].mxu0
        %v512 = vpop.f32.mrb[0].mxu0
        %v513 = vadd.f32 0.0, %v512
        %v514 = vpop.f32.mrb[0].mxu0
        %515 = vmatprep.mubr.bf16.mxu0 0
        %516 = vmatmul.mubr.bf16.gmra.mrb[0].mxu0 %v382
        %v517 = vpop.f32.mrb[0].mxu0
        %v518 = vadd.f32 0.0, %v517
        %v519 = vpop.f32.mrb[0].mxu0
        %v520 = vpop.f32.mrb[0].mxu0
        %v521 = vadd.f32 0.0, %v520
        %v522 = vpop.f32.mrb[0].mxu0
        %523 = vmatprep.mubr.bf16.mxu0 0
        %524 = vmatmul.mubr.bf16.gmra.mrb[0].mxu0 %v383
        %v525 = vpop.f32.mrb[0].mxu0
        %v526 = vadd.f32 0.0, %v525
        %v527 = vpop.f32.mrb[0].mxu0
        %v528 = vpop.f32.mrb[0].mxu0
        %v529 = vadd.f32 0.0, %v528
        %v530 = vpop.f32.mrb[0].mxu0
        %531 = vmatprep.mubr.bf16.mxu0 0
        %532 = vmatmul.mubr.bf16.gmra.mrb[0].mxu0 %v384
        %v533 = vpop.f32.mrb[0].mxu0
        %v534 = vadd.f32 0.0, %v533
        %v535 = vpop.f32.mrb[0].mxu0
        %v536 = vpop.f32.mrb[0].mxu0
        %v537 = vadd.f32 0.0, %v536
        %v538 = vpop.f32.mrb[0].mxu0
        %539 = vmatprep.mubr.bf16.mxu0 0
        %540 = vmatmul.mubr.bf16.gmra.mrb[0].mxu0 %v385
        %v541 = vpop.f32.mrb[0].mxu0
        %v542 = vadd.f32 0.0, %v541
        %v543 = vpop.f32.mrb[0].mxu0
        %v544 = vpop.f32.mrb[0].mxu0
        %v545 = vadd.f32 0.0, %v544
        %v546 = vpop.f32.mrb[0].mxu0
        %547 = vdwg.mxu0
        %v548 = vlaneseq
        %v549 = vshrl.u32 %v548, 7
        %v550 = vsub.s32 0, %v549
        %v551 = vrot.slane %v324, %v550
        %v552 = vmul.f32 %v478, %v551
        %v553 = vmul.f32 %v481, %v551
        %v554 = vmul.f32 %v486, %v551
        %v555 = vmul.f32 %v489, %v551
        %v556 = vmul.f32 %v494, %v551
        %v557 = vmul.f32 %v497, %v551
        %v558 = vmul.f32 %v502, %v551
        %v559 = vmul.f32 %v505, %v551
        %v560 = vmul.f32 %v510, %v551
        %v561 = vmul.f32 %v513, %v551
        %v562 = vmul.f32 %v518, %v551
        %v563 = vmul.f32 %v521, %v551
        %v564 = vmul.f32 %v526, %v551
        %v565 = vmul.f32 %v529, %v551
        %v566 = vmul.f32 %v534, %v551
        %v567 = vmul.f32 %v537, %v551
        %v568 = vmul.f32 %v542, %v551
        %v569 = vmul.f32 %v545, %v551
        %v570 = vlaneseq
        %v571 = vshrl.u32 %v570, 7
        %v572 = vsub.s32 1, %v571
        %v573 = vrot.slane %v324, %v572
        %v574 = vadd.f32 %v552, %v573
        %v575 = vadd.f32 %v553, %v573
        %v576 = vadd.f32 %v554, %v573
        %v577 = vadd.f32 %v555, %v573
        %v578 = vadd.f32 %v556, %v573
        %v579 = vadd.f32 %v557, %v573
        %v580 = vadd.f32 %v558, %v573
        %v581 = vadd.f32 %v559, %v573
        %v582 = vadd.f32 %v560, %v573
        %v583 = vadd.f32 %v561, %v573
        %v584 = vadd.f32 %v562, %v573
        %v585 = vadd.f32 %v563, %v573
        %v586 = vadd.f32 %v564, %v573
        %v587 = vadd.f32 %v565, %v573
        %v588 = vadd.f32 %v566, %v573
        %v589 = vadd.f32 %v567, %v573
        %v590 = vadd.f32 %v568, %v573
        %v591 = vadd.f32 %v569, %v573
        %s592 = sld [smem:[#allocation3]]
        %vm593 = vcmp.ge.f32.partialorder %v574, 0.0
        %vm594 = vcmp.ge.f32.partialorder %v575, 0.0
        %vm595 = vcmp.ge.f32.partialorder %v576, 0.0
        %vm596 = vcmp.ge.f32.partialorder %v577, 0.0
        %vm597 = vcmp.ge.f32.partialorder %v578, 0.0
        %vm598 = vcmp.ge.f32.partialorder %v579, 0.0
        %vm599 = vcmp.ge.f32.partialorder %v580, 0.0
        %vm600 = vcmp.ge.f32.partialorder %v581, 0.0
        %vm601 = vcmp.ge.f32.partialorder %v582, 0.0
        %vm602 = vcmp.ge.f32.partialorder %v583, 0.0
        %vm603 = vcmp.ge.f32.partialorder %v584, 0.0
        %vm604 = vcmp.ge.f32.partialorder %v585, 0.0
        %vm605 = vcmp.ge.f32.partialorder %v586, 0.0
        %vm606 = vcmp.ge.f32.partialorder %v587, 0.0
        %vm607 = vcmp.ge.f32.partialorder %v588, 0.0
        %vm608 = vcmp.ge.f32.partialorder %v589, 0.0
        %vm609 = vcmp.ge.f32.partialorder %v590, 0.0
        %vm610 = vcmp.ge.f32.partialorder %v591, 0.0
        %v611 = vstv %s592
        %v612 = vmul.f32 %v611, %v574
        %v613 = vmul.f32 %v611, %v575
        %v614 = vmul.f32 %v611, %v576
        %v615 = vmul.f32 %v611, %v577
        %v616 = vmul.f32 %v611, %v578
        %v617 = vmul.f32 %v611, %v579
        %v618 = vmul.f32 %v611, %v580
        %v619 = vmul.f32 %v611, %v581
        %v620 = vmul.f32 %v611, %v582
        %v621 = vmul.f32 %v611, %v583
        %v622 = vmul.f32 %v611, %v584
        %v623 = vmul.f32 %v611, %v585
        %v624 = vmul.f32 %v611, %v586
        %v625 = vmul.f32 %v611, %v587
        %v626 = vmul.f32 %v611, %v588
        %v627 = vmul.f32 %v611, %v589
        %v628 = vmul.f32 %v611, %v590
        %v629 = vmul.f32 %v611, %v591
        %v630 = vsel %vm593, %v574, %v612
        %v631 = vsel %vm594, %v575, %v613
        %v632 = vsel %vm595, %v576, %v614
        %v633 = vsel %vm596, %v577, %v615
        %v634 = vsel %vm597, %v578, %v616
        %v635 = vsel %vm598, %v579, %v617
        %v636 = vsel %vm599, %v580, %v618
        %v637 = vsel %vm600, %v581, %v619
        %v638 = vsel %vm601, %v582, %v620
        %v639 = vsel %vm602, %v583, %v621
        %v640 = vsel %vm603, %v584, %v622
        %v641 = vsel %vm604, %v585, %v623
        %v642 = vsel %vm605, %v586, %v624
        %v643 = vsel %vm606, %v587, %v625
        %v644 = vsel %vm607, %v588, %v626
        %v645 = vsel %vm608, %v589, %v627
        %v646 = vsel %vm609, %v590, %v628
        %v647 = vsel %vm610, %v591, %v629
        %v648 = vpack.c.bf16 %v631, %v630
        %v649 = vpack.c.bf16 %v633, %v632
        %v650 = vpack.c.bf16 %v635, %v634
        %v651 = vpack.c.bf16 %v637, %v636
        %v652 = vpack.c.bf16 %v639, %v638
        %v653 = vpack.c.bf16 %v641, %v640
        %v654 = vpack.c.bf16 %v643, %v642
        %v655 = vpack.c.bf16 %v645, %v644
        %v656 = vpack.c.bf16 %v647, %v646
        %v657 = vld [vmem:[%s2] sm:$0xf]
        %v658 = vld [vmem:[%s2 + $0x4] sm:$0xf]
        %v659 = vld [vmem:[%s2 + $0x8] sm:$0xf]
        %v660 = vld [vmem:[%s2 + $0xc] sm:$0xf]
        %v661 = vld [vmem:[%s2 + $0x10] sm:$0xf]
        %v662 = vld [vmem:[%s2 + $0x14] sm:$0xf]
        %v663 = vld [vmem:[%s2 + $0x18] sm:$0xf]
        %v664 = vld [vmem:[%s2 + $0x1c] sm:$0xf]
        %v665 = vld [vmem:[%s2 + $0x20] sm:$0xf]
        %v666 = vld [vmem:[%s2 + $0x24] sm:$0xf]
        %v667 = vld [vmem:[%s2 + $0x28] sm:$0xf]
        %v668 = vld [vmem:[%s2 + $0x2c] sm:$0xf]
        %v669 = vld [vmem:[%s2 + $0x30] sm:$0xf]
        %v670 = vld [vmem:[%s2 + $0x34] sm:$0xf]
        %v671 = vld [vmem:[%s2 + $0x38] sm:$0xf]
        %v672 = vld [vmem:[%s2 + $0x3c] sm:$0xf]
        %v689 = vunpack.c.l.b16 %v657
        %v690 = vunpack.c.l.b16 %v658
        %v691 = vunpack.c.l.b16 %v659
        %v692 = vunpack.c.l.b16 %v660
        %v693 = vunpack.c.l.b16 %v661
        %v694 = vunpack.c.l.b16 %v662
        %v695 = vunpack.c.l.b16 %v663
        %v696 = vunpack.c.l.b16 %v664
        %v697 = vunpack.c.l.b16 %v665
        %v698 = vunpack.c.l.b16 %v666
        %v699 = vunpack.c.l.b16 %v667
        %v700 = vunpack.c.l.b16 %v668
        %v701 = vunpack.c.l.b16 %v669
        %v702 = vunpack.c.l.b16 %v670
        %v703 = vunpack.c.l.b16 %v671
        %v704 = vunpack.c.l.b16 %v672
        %v705 = vpack.c.b16 %v690, %v689
        %v706 = vpack.c.b16 %v692, %v691
        %v707 = vpack.c.b16 %v694, %v693
        %v708 = vpack.c.b16 %v696, %v695
        %v709 = vpack.c.b16 %v698, %v697
        %v710 = vpack.c.b16 %v700, %v699
        %v711 = vpack.c.b16 %v702, %v701
        %v712 = vpack.c.b16 %v704, %v703
        %721 = vmatprep.subr.bf16.mxu0 0
        %722 = vmatpush1.bf16.msra.mxu0 %v705
        %723 = vmatprep.subr.bf16.mxu0 0
        %724 = vmatpush1.bf16.msra.mxu0 %v706
        %725 = vmatprep.subr.bf16.mxu0 0
        %726 = vmatpush1.bf16.msra.mxu0 %v707
        %727 = vmatprep.subr.bf16.mxu0 0
        %728 = vmatpush1.bf16.msra.mxu0 %v708
        %729 = vmatprep.subr.bf16.mxu0 0
        %730 = vmatpush1.bf16.msra.mxu0 %v709
        %731 = vmatprep.subr.bf16.mxu0 0
        %732 = vmatpush1.bf16.msra.mxu0 %v710
        %733 = vmatprep.subr.bf16.mxu0 0
        %734 = vmatpush1.bf16.msra.mxu0 %v711
        %735 = vmatprep.subr.bf16.mxu0 0
        %736 = vmatpush1.bf16.msra.mxu0 %v712
        %737 = vmatprep.subr.bf16.mxu0 0
        %738 = vmatpush1.bf16.msra.mxu0 0
        %739 = vmatprep.subr.bf16.mxu0 0
        %740 = vmatpush1.bf16.msra.mxu0 0
        %741 = vmatprep.subr.bf16.mxu0 0
        %742 = vmatpush1.bf16.msra.mxu0 0
        %743 = vmatprep.subr.bf16.mxu0 0
        %744 = vmatpush1.bf16.msra.mxu0 0
        %745 = vmatprep.subr.bf16.mxu0 0
        %746 = vmatpush1.bf16.msra.mxu0 0
        %747 = vmatprep.subr.bf16.mxu0 0
        %748 = vmatpush1.bf16.msra.mxu0 0
        %749 = vmatprep.subr.bf16.mxu0 0
        %750 = vmatpush1.bf16.msra.mxu0 0
        %751 = vmatprep.subr.bf16.mxu0 0
        %752 = vmatpush1.bf16.msra.mxu0 0
        %753 = vmatprep.mubr.bf16.mxu0 0
        %754 = vmatmul.mubr.bf16.gmra.mrb[0].mxu0 %v648
        %v755 = vpop.f32.mrb[0].mxu0
        %v756 = vadd.f32 0.0, %v755
        %v757 = vpop.f32.mrb[0].mxu0
        %v758 = vpop.f32.mrb[0].mxu0
        %v759 = vadd.f32 0.0, %v758
        %v760 = vpop.f32.mrb[0].mxu0
        %761 = vmatprep.mubr.bf16.mxu0 0
        %762 = vmatmul.mubr.bf16.gmra.mrb[0].mxu0 %v649
        %v763 = vpop.f32.mrb[0].mxu0
        %v764 = vadd.f32 0.0, %v763
        %v765 = vpop.f32.mrb[0].mxu0
        %v766 = vpop.f32.mrb[0].mxu0
        %v767 = vadd.f32 0.0, %v766
        %v768 = vpop.f32.mrb[0].mxu0
        %769 = vmatprep.mubr.bf16.mxu0 0
        %770 = vmatmul.mubr.bf16.gmra.mrb[0].mxu0 %v650
        %v771 = vpop.f32.mrb[0].mxu0
        %v772 = vadd.f32 0.0, %v771
        %v773 = vpop.f32.mrb[0].mxu0
        %v774 = vpop.f32.mrb[0].mxu0
        %v775 = vadd.f32 0.0, %v774
        %v776 = vpop.f32.mrb[0].mxu0
        %777 = vmatprep.mubr.bf16.mxu0 0
        %778 = vmatmul.mubr.bf16.gmra.mrb[0].mxu0 %v651
        %v779 = vpop.f32.mrb[0].mxu0
        %v780 = vadd.f32 0.0, %v779
        %v781 = vpop.f32.mrb[0].mxu0
        %v782 = vpop.f32.mrb[0].mxu0
        %v783 = vadd.f32 0.0, %v782
        %v784 = vpop.f32.mrb[0].mxu0
        %785 = vmatprep.mubr.bf16.mxu0 0
        %786 = vmatmul.mubr.bf16.gmra.mrb[0].mxu0 %v652
        %v787 = vpop.f32.mrb[0].mxu0
        %v788 = vadd.f32 0.0, %v787
        %v789 = vpop.f32.mrb[0].mxu0
        %v790 = vpop.f32.mrb[0].mxu0
        %v791 = vadd.f32 0.0, %v790
        %v792 = vpop.f32.mrb[0].mxu0
        %793 = vmatprep.mubr.bf16.mxu0 0
        %794 = vmatmul.mubr.bf16.gmra.mrb[0].mxu0 %v653
        %v795 = vpop.f32.mrb[0].mxu0
        %v796 = vadd.f32 0.0, %v795
        %v797 = vpop.f32.mrb[0].mxu0
        %v798 = vpop.f32.mrb[0].mxu0
        %v799 = vadd.f32 0.0, %v798
        %v800 = vpop.f32.mrb[0].mxu0
        %801 = vmatprep.mubr.bf16.mxu0 0
        %802 = vmatmul.mubr.bf16.gmra.mrb[0].mxu0 %v654
        %v803 = vpop.f32.mrb[0].mxu0
        %v804 = vadd.f32 0.0, %v803
        %v805 = vpop.f32.mrb[0].mxu0
        %v806 = vpop.f32.mrb[0].mxu0
        %v807 = vadd.f32 0.0, %v806
        %v808 = vpop.f32.mrb[0].mxu0
        %809 = vmatprep.mubr.bf16.mxu0 0
        %810 = vmatmul.mubr.bf16.gmra.mrb[0].mxu0 %v655
        %v811 = vpop.f32.mrb[0].mxu0
        %v812 = vadd.f32 0.0, %v811
        %v813 = vpop.f32.mrb[0].mxu0
        %v814 = vpop.f32.mrb[0].mxu0
        %v815 = vadd.f32 0.0, %v814
        %v816 = vpop.f32.mrb[0].mxu0
        %817 = vmatprep.mubr.bf16.mxu0 0
        %818 = vmatmul.mubr.bf16.gmra.mrb[0].mxu0 %v656
        %v819 = vpop.f32.mrb[0].mxu0
        %v820 = vadd.f32 0.0, %v819
        %v821 = vpop.f32.mrb[0].mxu0
        %v822 = vpop.f32.mrb[0].mxu0
        %v823 = vadd.f32 0.0, %v822
        %v824 = vpop.f32.mrb[0].mxu0
        %825 = vdwg.mxu0
        %v826 = vlaneseq
        %v827 = vshrl.u32 %v826, 7
        %v828 = vsub.s32 2, %v827
        %v829 = vrot.slane %v324, %v828
        %v830 = vmul.f32 %v756, %v829
        %v831 = vmul.f32 %v759, %v829
        %v832 = vmul.f32 %v764, %v829
        %v833 = vmul.f32 %v767, %v829
        %v834 = vmul.f32 %v772, %v829
        %v835 = vmul.f32 %v775, %v829
        %v836 = vmul.f32 %v780, %v829
        %v837 = vmul.f32 %v783, %v829
        %v838 = vmul.f32 %v788, %v829
        %v839 = vmul.f32 %v791, %v829
        %v840 = vmul.f32 %v796, %v829
        %v841 = vmul.f32 %v799, %v829
        %v842 = vmul.f32 %v804, %v829
        %v843 = vmul.f32 %v807, %v829
        %v844 = vmul.f32 %v812, %v829
        %v845 = vmul.f32 %v815, %v829
        %v846 = vmul.f32 %v820, %v829
        %v847 = vmul.f32 %v823, %v829
        %v848 = vlaneseq
        %v849 = vshrl.u32 %v848, 7
        %v850 = vsub.s32 3, %v849
        %v851 = vrot.slane %v324, %v850
        %v852 = vadd.f32 %v830, %v851
        %v853 = vadd.f32 %v831, %v851
        %v854 = vadd.f32 %v832, %v851
        %v855 = vadd.f32 %v833, %v851
        %v856 = vadd.f32 %v834, %v851
        %v857 = vadd.f32 %v835, %v851
        %v858 = vadd.f32 %v836, %v851
        %v859 = vadd.f32 %v837, %v851
        %v860 = vadd.f32 %v838, %v851
        %v861 = vadd.f32 %v839, %v851
        %v862 = vadd.f32 %v840, %v851
        %v863 = vadd.f32 %v841, %v851
        %v864 = vadd.f32 %v842, %v851
        %v865 = vadd.f32 %v843, %v851
        %v866 = vadd.f32 %v844, %v851
        %v867 = vadd.f32 %v845, %v851
        %v868 = vadd.f32 %v846, %v851
        %v869 = vadd.f32 %v847, %v851
        %v870 = vld [vmem:[%s5] sm:$0xf]
        %v871 = vld [vmem:[%s5 + $0x4] sm:$0xf]
        %v872 = vld [vmem:[%s5 + $0x8] sm:$0xf]
        %v873 = vld [vmem:[%s5 + $0xc] sm:$0xf]
        %v874 = vld [vmem:[%s5 + $0x10] sm:$0xf]
        %v875 = vld [vmem:[%s5 + $0x14] sm:$0xf]
        %v876 = vld [vmem:[%s5 + $0x18] sm:$0xf]
        %v877 = vld [vmem:[%s5 + $0x1c] sm:$0xf]
        %v878 = vld [vmem:[%s5 + $0x20] sm:$0xf]
        %v879 = vld [vmem:[%s5 + $0x24] sm:$0xf]
        %v880 = vld [vmem:[%s5 + $0x28] sm:$0xf]
        %v881 = vld [vmem:[%s5 + $0x2c] sm:$0xf]
        %v882 = vld [vmem:[%s5 + $0x30] sm:$0xf]
        %v883 = vld [vmem:[%s5 + $0x34] sm:$0xf]
        %v884 = vld [vmem:[%s5 + $0x38] sm:$0xf]
        %v885 = vld [vmem:[%s5 + $0x3c] sm:$0xf]
        %v902 = vunpack.c.l.b16 %v870
        %v903 = vunpack.c.l.b16 %v871
        %v904 = vunpack.c.l.b16 %v872
        %v905 = vunpack.c.l.b16 %v873
        %v906 = vunpack.c.l.b16 %v874
        %v907 = vunpack.c.l.b16 %v875
        %v908 = vunpack.c.l.b16 %v876
        %v909 = vunpack.c.l.b16 %v877
        %v910 = vunpack.c.l.b16 %v878
        %v911 = vunpack.c.l.b16 %v879
        %v912 = vunpack.c.l.b16 %v880
        %v913 = vunpack.c.l.b16 %v881
        %v914 = vunpack.c.l.b16 %v882
        %v915 = vunpack.c.l.b16 %v883
        %v916 = vunpack.c.l.b16 %v884
        %v917 = vunpack.c.l.b16 %v885
        %v918 = vpack.c.b16 %v903, %v902
        %v919 = vpack.c.b16 %v905, %v904
        %v920 = vpack.c.b16 %v907, %v906
        %v921 = vpack.c.b16 %v909, %v908
        %v922 = vpack.c.b16 %v911, %v910
        %v923 = vpack.c.b16 %v913, %v912
        %v924 = vpack.c.b16 %v915, %v914
        %v925 = vpack.c.b16 %v917, %v916
        %934 = vmatprep.subr.bf16.mxu0 0
        %935 = vmatpush1.bf16.msra.mxu0 %v918
        %936 = vmatprep.subr.bf16.mxu0 0
        %937 = vmatpush1.bf16.msra.mxu0 %v919
        %938 = vmatprep.subr.bf16.mxu0 0
        %939 = vmatpush1.bf16.msra.mxu0 %v920
        %940 = vmatprep.subr.bf16.mxu0 0
        %941 = vmatpush1.bf16.msra.mxu0 %v921
        %942 = vmatprep.subr.bf16.mxu0 0
        %943 = vmatpush1.bf16.msra.mxu0 %v922
        %944 = vmatprep.subr.bf16.mxu0 0
        %945 = vmatpush1.bf16.msra.mxu0 %v923
        %946 = vmatprep.subr.bf16.mxu0 0
        %947 = vmatpush1.bf16.msra.mxu0 %v924
        %948 = vmatprep.subr.bf16.mxu0 0
        %949 = vmatpush1.bf16.msra.mxu0 %v925
        %950 = vmatprep.subr.bf16.mxu0 0
        %951 = vmatpush1.bf16.msra.mxu0 0
        %952 = vmatprep.subr.bf16.mxu0 0
        %953 = vmatpush1.bf16.msra.mxu0 0
        %954 = vmatprep.subr.bf16.mxu0 0
        %955 = vmatpush1.bf16.msra.mxu0 0
        %956 = vmatprep.subr.bf16.mxu0 0
        %957 = vmatpush1.bf16.msra.mxu0 0
        %958 = vmatprep.subr.bf16.mxu0 0
        %959 = vmatpush1.bf16.msra.mxu0 0
        %960 = vmatprep.subr.bf16.mxu0 0
        %961 = vmatpush1.bf16.msra.mxu0 0
        %962 = vmatprep.subr.bf16.mxu0 0
        %963 = vmatpush1.bf16.msra.mxu0 0
        %964 = vmatprep.subr.bf16.mxu0 0
        %965 = vmatpush1.bf16.msra.mxu0 0
        %966 = vmatprep.mubr.bf16.mxu0 0
        %967 = vmatmul.mubr.bf16.gmra.mrb[0].mxu0 %v377
        %v968 = vpop.f32.mrb[0].mxu0
        %v969 = vadd.f32 0.0, %v968
        %v970 = vpop.f32.mrb[0].mxu0
        %v971 = vpop.f32.mrb[0].mxu0
        %v972 = vadd.f32 0.0, %v971
        %v973 = vpop.f32.mrb[0].mxu0
        %974 = vmatprep.mubr.bf16.mxu0 0
        %975 = vmatmul.mubr.bf16.gmra.mrb[0].mxu0 %v378
        %v976 = vpop.f32.mrb[0].mxu0
        %v977 = vadd.f32 0.0, %v976
        %v978 = vpop.f32.mrb[0].mxu0
        %v979 = vpop.f32.mrb[0].mxu0
        %v980 = vadd.f32 0.0, %v979
        %v981 = vpop.f32.mrb[0].mxu0
        %982 = vmatprep.mubr.bf16.mxu0 0
        %983 = vmatmul.mubr.bf16.gmra.mrb[0].mxu0 %v379
        %v984 = vpop.f32.mrb[0].mxu0
        %v985 = vadd.f32 0.0, %v984
        %v986 = vpop.f32.mrb[0].mxu0
        %v987 = vpop.f32.mrb[0].mxu0
        %v988 = vadd.f32 0.0, %v987
        %v989 = vpop.f32.mrb[0].mxu0
        %990 = vmatprep.mubr.bf16.mxu0 0
        %991 = vmatmul.mubr.bf16.gmra.mrb[0].mxu0 %v380
        %v992 = vpop.f32.mrb[0].mxu0
        %v993 = vadd.f32 0.0, %v992
        %v994 = vpop.f32.mrb[0].mxu0
        %v995 = vpop.f32.mrb[0].mxu0
        %v996 = vadd.f32 0.0, %v995
        %v997 = vpop.f32.mrb[0].mxu0
        %998 = vmatprep.mubr.bf16.mxu0 0
        %999 = vmatmul.mubr.bf16.gmra.mrb[0].mxu0 %v381
        %v1000 = vpop.f32.mrb[0].mxu0
        %v1001 = vadd.f32 0.0, %v1000
        %v1002 = vpop.f32.mrb[0].mxu0
        %v1003 = vpop.f32.mrb[0].mxu0
        %v1004 = vadd.f32 0.0, %v1003
        %v1005 = vpop.f32.mrb[0].mxu0
        %1006 = vmatprep.mubr.bf16.mxu0 0
        %1007 = vmatmul.mubr.bf16.gmra.mrb[0].mxu0 %v382
        %v1008 = vpop.f32.mrb[0].mxu0
        %v1009 = vadd.f32 0.0, %v1008
        %v1010 = vpop.f32.mrb[0].mxu0
        %v1011 = vpop.f32.mrb[0].mxu0
        %v1012 = vadd.f32 0.0, %v1011
        %v1013 = vpop.f32.mrb[0].mxu0
        %1014 = vmatprep.mubr.bf16.mxu0 0
        %1015 = vmatmul.mubr.bf16.gmra.mrb[0].mxu0 %v383
        %v1016 = vpop.f32.mrb[0].mxu0
        %v1017 = vadd.f32 0.0, %v1016
        %v1018 = vpop.f32.mrb[0].mxu0
        %v1019 = vpop.f32.mrb[0].mxu0
        %v1020 = vadd.f32 0.0, %v1019
        %v1021 = vpop.f32.mrb[0].mxu0
        %1022 = vmatprep.mubr.bf16.mxu0 0
        %1023 = vmatmul.mubr.bf16.gmra.mrb[0].mxu0 %v384
        %v1024 = vpop.f32.mrb[0].mxu0
        %v1025 = vadd.f32 0.0, %v1024
        %v1026 = vpop.f32.mrb[0].mxu0
        %v1027 = vpop.f32.mrb[0].mxu0
        %v1028 = vadd.f32 0.0, %v1027
        %v1029 = vpop.f32.mrb[0].mxu0
        %1030 = vmatprep.mubr.bf16.mxu0 0
        %1031 = vmatmul.mubr.bf16.gmra.mrb[0].mxu0 %v385
        %v1032 = vpop.f32.mrb[0].mxu0
        %v1033 = vadd.f32 0.0, %v1032
        %v1034 = vpop.f32.mrb[0].mxu0
        %v1035 = vpop.f32.mrb[0].mxu0
        %v1036 = vadd.f32 0.0, %v1035
        %v1037 = vpop.f32.mrb[0].mxu0
        %1038 = vdwg.mxu0
        %v1039 = vadd.f32 %v852, %v969
        %v1040 = vadd.f32 %v853, %v972
        %v1041 = vadd.f32 %v854, %v977
        %v1042 = vadd.f32 %v855, %v980
        %v1043 = vadd.f32 %v856, %v985
        %v1044 = vadd.f32 %v857, %v988
        %v1045 = vadd.f32 %v858, %v993
        %v1046 = vadd.f32 %v859, %v996
        %v1047 = vadd.f32 %v860, %v1001
        %v1048 = vadd.f32 %v861, %v1004
        %v1049 = vadd.f32 %v862, %v1009
        %v1050 = vadd.f32 %v863, %v1012
        %v1051 = vadd.f32 %v864, %v1017
        %v1052 = vadd.f32 %v865, %v1020
        %v1053 = vadd.f32 %v866, %v1025
        %v1054 = vadd.f32 %v867, %v1028
        %v1055 = vadd.f32 %v868, %v1033
        %v1056 = vadd.f32 %v869, %v1036
        %s1057 = sld [smem:[#allocation3 + $0x1]]
        %vm1058 = vcmp.ge.f32.partialorder %v1039, 0.0
        %vm1059 = vcmp.ge.f32.partialorder %v1040, 0.0
        %vm1060 = vcmp.ge.f32.partialorder %v1041, 0.0
        %vm1061 = vcmp.ge.f32.partialorder %v1042, 0.0
        %vm1062 = vcmp.ge.f32.partialorder %v1043, 0.0
        %vm1063 = vcmp.ge.f32.partialorder %v1044, 0.0
        %vm1064 = vcmp.ge.f32.partialorder %v1045, 0.0
        %vm1065 = vcmp.ge.f32.partialorder %v1046, 0.0
        %vm1066 = vcmp.ge.f32.partialorder %v1047, 0.0
        %vm1067 = vcmp.ge.f32.partialorder %v1048, 0.0
        %vm1068 = vcmp.ge.f32.partialorder %v1049, 0.0
        %vm1069 = vcmp.ge.f32.partialorder %v1050, 0.0
        %vm1070 = vcmp.ge.f32.partialorder %v1051, 0.0
        %vm1071 = vcmp.ge.f32.partialorder %v1052, 0.0
        %vm1072 = vcmp.ge.f32.partialorder %v1053, 0.0
        %vm1073 = vcmp.ge.f32.partialorder %v1054, 0.0
        %vm1074 = vcmp.ge.f32.partialorder %v1055, 0.0
        %vm1075 = vcmp.ge.f32.partialorder %v1056, 0.0
        %v1076 = vstv %s1057
        %v1077 = vmul.f32 %v1076, %v1039
        %v1078 = vmul.f32 %v1076, %v1040
        %v1079 = vmul.f32 %v1076, %v1041
        %v1080 = vmul.f32 %v1076, %v1042
        %v1081 = vmul.f32 %v1076, %v1043
        %v1082 = vmul.f32 %v1076, %v1044
        %v1083 = vmul.f32 %v1076, %v1045
        %v1084 = vmul.f32 %v1076, %v1046
        %v1085 = vmul.f32 %v1076, %v1047
        %v1086 = vmul.f32 %v1076, %v1048
        %v1087 = vmul.f32 %v1076, %v1049
        %v1088 = vmul.f32 %v1076, %v1050
        %v1089 = vmul.f32 %v1076, %v1051
        %v1090 = vmul.f32 %v1076, %v1052
        %v1091 = vmul.f32 %v1076, %v1053
        %v1092 = vmul.f32 %v1076, %v1054
        %v1093 = vmul.f32 %v1076, %v1055
        %v1094 = vmul.f32 %v1076, %v1056
        %v1095 = vsel %vm1058, %v1039, %v1077
        %v1096 = vsel %vm1059, %v1040, %v1078
        %v1097 = vsel %vm1060, %v1041, %v1079
        %v1098 = vsel %vm1061, %v1042, %v1080
        %v1099 = vsel %vm1062, %v1043, %v1081
        %v1100 = vsel %vm1063, %v1044, %v1082
        %v1101 = vsel %vm1064, %v1045, %v1083
        %v1102 = vsel %vm1065, %v1046, %v1084
        %v1103 = vsel %vm1066, %v1047, %v1085
        %v1104 = vsel %vm1067, %v1048, %v1086
        %v1105 = vsel %vm1068, %v1049, %v1087
        %v1106 = vsel %vm1069, %v1050, %v1088
        %v1107 = vsel %vm1070, %v1051, %v1089
        %v1108 = vsel %vm1071, %v1052, %v1090
        %v1109 = vsel %vm1072, %v1053, %v1091
        %v1110 = vsel %vm1073, %v1054, %v1092
        %v1111 = vsel %vm1074, %v1055, %v1093
        %v1112 = vsel %vm1075, %v1056, %v1094
        %1113 = vst [vmem:[#allocation2] sm:$0xff] %v1095
        %1114 = vst [vmem:[#allocation2 + $0x8] sm:$0xff] %v1096
        %1115 = vst [vmem:[#allocation2 + $0x10] sm:$0xff] %v1097
        %1116 = vst [vmem:[#allocation2 + $0x18] sm:$0xff] %v1098
        %1117 = vst [vmem:[#allocation2 + $0x20] sm:$0xff] %v1099
        %1118 = vst [vmem:[#allocation2 + $0x28] sm:$0xff] %v1100
        %1119 = vst [vmem:[#allocation2 + $0x30] sm:$0xff] %v1101
        %1120 = vst [vmem:[#allocation2 + $0x38] sm:$0xff] %v1102
        %1121 = vst [vmem:[#allocation2 + $0x40] sm:$0xff] %v1103
        %1122 = vst [vmem:[#allocation2 + $0x48] sm:$0xff] %v1104
        %1123 = vst [vmem:[#allocation2 + $0x50] sm:$0xff] %v1105
        %1124 = vst [vmem:[#allocation2 + $0x58] sm:$0xff] %v1106
        %1125 = vst [vmem:[#allocation2 + $0x60] sm:$0xff] %v1107
        %1126 = vst [vmem:[#allocation2 + $0x68] sm:$0xff] %v1108
        %1127 = vst [vmem:[#allocation2 + $0x70] sm:$0xff] %v1109
        %1128 = vst [vmem:[#allocation2 + $0x78] sm:$0xff] %v1110
        %1129 = vst [vmem:[#allocation2 + $0x80] sm:$0xff] %v1111
        %1130 = vst [vmem:[#allocation2 + $0x88] sm:$0xff] %v1112
        %v1131 = vld [vmem:[#allocation2] ss:$3 sm:$0xff]
        %s1132 = scalar_lea.vmem [#allocation2], 24
        %v1133 = vld [vmem:[%s1132] ss:$3 sm:$0xff]
        %s1134 = scalar_lea.vmem [#allocation2], 48
        %v1135 = vld [vmem:[%s1134] ss:$3 sm:$0xff]
        %s1136 = scalar_lea.vmem [#allocation2], 72
        %v1137 = vld [vmem:[%s1136] ss:$3 sm:$0xff]
        %s1138 = scalar_lea.vmem [#allocation2], 96
        %v1139 = vld [vmem:[%s1138] ss:$3 sm:$0xff]
        %s1140 = scalar_lea.vmem [#allocation2], 120
        %v1141 = vld [vmem:[%s1140] ss:$3 sm:$0xff]
        %s1142 = scalar_lea.vmem [#allocation2], 1
        %v1143 = vld [vmem:[%s1142] ss:$3 sm:$0xff]
        %s1144 = scalar_lea.vmem [#allocation2], 25
        %v1145 = vld [vmem:[%s1144] ss:$3 sm:$0xff]
        %s1146 = scalar_lea.vmem [#allocation2], 49
        %v1147 = vld [vmem:[%s1146] ss:$3 sm:$0xff]
        %s1148 = scalar_lea.vmem [#allocation2], 73
        %v1149 = vld [vmem:[%s1148] ss:$3 sm:$0xff]
        %s1150 = scalar_lea.vmem [#allocation2], 97
        %v1151 = vld [vmem:[%s1150] ss:$3 sm:$0xff]
        %s1152 = scalar_lea.vmem [#allocation2], 121
        %v1153 = vld [vmem:[%s1152] ss:$3 sm:$0xff]
        %s1154 = scalar_lea.vmem [#allocation2], 2
        %v1155 = vld [vmem:[%s1154] ss:$3 sm:$0xff]
        %s1156 = scalar_lea.vmem [#allocation2], 26
        %v1157 = vld [vmem:[%s1156] ss:$3 sm:$0xff]
        %s1158 = scalar_lea.vmem [#allocation2], 50
        %v1159 = vld [vmem:[%s1158] ss:$3 sm:$0xff]
        %s1160 = scalar_lea.vmem [#allocation2], 74
        %v1161 = vld [vmem:[%s1160] ss:$3 sm:$0xff]
        %s1162 = scalar_lea.vmem [#allocation2], 98
        %v1163 = vld [vmem:[%s1162] ss:$3 sm:$0xff]
        %s1164 = scalar_lea.vmem [#allocation2], 122
        %v1165 = vld [vmem:[%s1164] ss:$3 sm:$0xff]
        %v1166 = vmax.f32 %v1131, %v1143
        %v1167 = vmax.f32 %v1133, %v1145
        %v1168 = vmax.f32 %v1135, %v1147
        %v1169 = vmax.f32 %v1137, %v1149
        %v1170 = vmax.f32 %v1139, %v1151
        %v1171 = vmax.f32 %v1141, %v1153
        %v1172 = vmax.f32 %v1166, %v1155
        %v1173 = vmax.f32 %v1167, %v1157
        %v1174 = vmax.f32 %v1168, %v1159
        %v1175 = vmax.f32 %v1169, %v1161
        %v1176 = vmax.f32 %v1170, %v1163
        %v1177 = vmax.f32 %v1171, %v1165
        %1178 = vst [vmem:[%s303] sm:$0xff] %v1172
        %1179 = vst [vmem:[%s303 + $0x8] sm:$0xff] %v1173
        %1180 = vst [vmem:[%s303 + $0x10] sm:$0xff] %v1174
        %1181 = vst [vmem:[%s303 + $0x18] sm:$0xff] %v1175
        %1182 = vst [vmem:[%s303 + $0x20] sm:$0xff] %v1176
        %1183 = vst [vmem:[%s303 + $0x28] sm:$0xff] %v1177
        %s1184 = smul.u32 6, %s23
        %p1185 = scmp.lt.s32.totalorder %s22, 1
        %s1186 = scalar_select %p1185, %s22, 1
        %p1187 = scmp.lt.s32.totalorder %s1184, 5
        %s1188 = scalar_select %p1187, %s1184, 5
        %s1189 = smul.addr %s1186, 6
        %s1190 = sadd.s32 %s1188, %s1189
        %s1191 = smul.addr %s1190, 8
        %s1192 = scalar_lea.vmem %s6, %s1191
        // Predicated region
        $region49: #{_resblock_impl.3} parent=43 // pred_check
          %p1193 = pneg %p183
        $region50: #{_resblock_impl.3} parent=43 // pred_check_branch
          %1195 = sbr.rel (%p1193) target = $region52
        $region51: #{_resblock_impl.3} parent=43 // pred_region
          %s1196 = smul.u32 6, %s23
        $region52: #{_resblock_impl.3} parent=43 // pred_fallthru
          _
      $region44: #{_resblock_impl.3} parent=5 // pred_fallthru
        _
      %p1197 = scmp.le.s32.totalorder 2, %s13
      // Predicated region
      $region53: #{_resblock_impl.3} parent=5 // pred_check
        %p1198 = pneg %p1197
      $region54: #{_resblock_impl.3} parent=5 // pred_check_branch
        %1200 = sbr.rel (%p1198) target = $region56
      $region55: #{_resblock_impl.3} parent=5 // pred_region
        %s1201 = ssub.s32 %s13, 2
        // Predicated region
        $region57: #{_resblock_impl.3} parent=55 // pred_check
          %p1202 = pneg %p189
        $region58: #{_resblock_impl.3} parent=55 // pred_check_branch
          %1204 = sbr.rel (%p1202) target = $region60
        $region59: #{_resblock_impl.3} parent=55 // pred_region
          %s1205 = smul.u32 6, %s25
          %p1206 = scmp.lt.s32.totalorder %s24, 1
          %s1207 = scalar_select %p1206, %s24, 1
          %p1208 = scmp.lt.s32.totalorder %s1205, 5
          %s1209 = scalar_select %p1208, %s1205, 5
          %s1210 = smul.addr %s1207, 6
          %s1211 = sadd.s32 %s1209, %s1210
          %s1212 = smul.addr %s1211, 8
          %s1213 = scalar_lea.vmem %s6, %s1212
        $region60: #{_resblock_impl.3} parent=55 // pred_fallthru
          _
      $region56: #{_resblock_impl.3} parent=5 // pred_fallthru
        _
    $region6: #{_resblock_impl.3} parent=1 // loop_footer
      %s17 = sadd.s32 1, %s13
    $region7: #{_resblock_impl.3} parent=1 // loop_footer_branch
      %12 = sbr.rel target = $region3
    $region8: #{_resblock_impl.3} parent=1 // loop_exit
      _
    %1214 = vsyncpa [#allocation4], 1
    %s1215 = scalar_lea.sflag [#allocation4], 1
    %1216 = vsyncpa %s1215, 1

// kernel: _resblock_impl.2
$region0: #{_resblock_impl.2}
  #allocation0 [shape = 'u32[]', space=smem, size = 0x4, offset = 0x4, fixed_abs, tag = 'smem constant byte address 0x4 - core index']
  #allocation1 [shape = 'u32[144,128]{1,0:T(1,128)}', space=vmem, size = 0x12000, scoped, tag = 'internal scratch']
  #allocation2 [shape = 'f32[1,128]{1,0:T(1,128)}', space=vmem, size = 0x200, scoped, tag = 'scratch operand']
  #allocation3 [shape = 'f32[1,128]{1,0:T(1,128)}', space=vmem, size = 0x200, scoped, tag = 'scratch operand']
  #allocation4 [shape = 'f32[1,128]{1,0:T(1,128)}', space=vmem, size = 0x200, scoped, tag = 'scratch operand']
  #allocation5 [shape = 'f32[1,128]{1,0:T(1,128)}', space=vmem, size = 0x200, scoped, tag = 'scratch operand']
  #allocation6 [shape = 'f32[2,128]{1,0:T(2,128)}', space=vmem, size = 0x400, scoped, tag = 'scratch operand']
  %s0 = inlined_call_operand.vmem [shape: bf16[2,144,128], index: 0, kind: input, shape index: {}]
  %s1 = inlined_call_operand.vmem [shape: bf16[128,128], index: 1, kind: input, shape index: {}]
  %s2 = inlined_call_operand.vmem [shape: bf16[128,128], index: 2, kind: input, shape index: {}]
  %s3 = inlined_call_operand.vmem [shape: f32[4,128], index: 3, kind: input, shape index: {}]
  %s4 = inlined_call_operand.vmem [shape: f32[2], index: 4, kind: input, shape index: {}]
  %s5 = inlined_call_operand.vmem [shape: f32[4,128], index: 5, kind: output, shape index: {}]
  %s6 = sld [smem:[#allocation0]]
  $region85: #{_resblock_impl.2} parent=0
    _
  %s8 = ssub.s32 1, %s6
  %s9 = scalar_select 0, %s8, %s6
  $region1: #{_resblock_impl.2} parent=0
    #allocation7 [shape = 'u8[512]{0}', space=smem, size = 0x200, scoped, tag = 'input window, operand 4, single buffered']
    #allocation8 [shape = 's32[2]{0}', space=sflag, size = 0x8, scoped, tag = 'scoped memory for _resblock_impl.2']
    %10 = vsyncpa [#allocation8], 0
    loop: start=0, step=1, limit=6
    $region2: #{_resblock_impl.2} parent=1 // loop_pre_header
      _
    $region3: #{_resblock_impl.2} parent=1 // loop_header
      %s12 = sphi 0, %s16
      %p13 = scmp.ge.s32.totalorder %s12, 6
      %s19 = sphi 0, %s38
      %s20 = sphi 0, %s34
      %s21 = sphi 0, %s30
      %s22 = sphi 0, %s19
      %s23 = sphi 0, %s20
      %s24 = sphi 0, %s21
      %s25 = sphi 0, %s22
      %s26 = sphi 0, %s23
      %s27 = sphi 0, %s24
      %s43 = sphi 0, %s45
      %s46 = sphi 0, %s43
      %s47 = sphi 0, %s46
      %s63 = sphi 0, %s47
      %s67 = sphi 0, %s67
      %s69 = sphi 0, %s67
      %s70 = sphi 0, %s69
      %s84 = sphi 0, %s70
      %s88 = sphi 0, %s88
      %s90 = sphi 0, %s88
      %s91 = sphi 0, %s90
      %s105 = sphi 0, %s91
      %s109 = sphi 0, %s109
      %s111 = sphi 0, %s109
      %s112 = sphi 0, %s111
      %s126 = sphi 0, %s112
      %s130 = sphi 0, %s130
      %s132 = sphi 0, %s130
      %s133 = sphi 0, %s132
      %s147 = sphi 0, %s133
      %s151 = sphi 0, %s151
      %s153 = sphi 0, %s151
      %s154 = sphi 0, %s153
      %s168 = sphi 0, %s154
    $region4: #{_resblock_impl.2} parent=1 // loop_header_branch
      %15 = sbr.rel (%p13) target = $region8
    $region5: #{_resblock_impl.2} parent=1 // loop_body
      %s17 = ssub.s32 %s12, 1
      %s18 = ssub.s32 %s12, 2
      %s28 = sadd.s32 1, %s21
      %p29 = scmp.ge.s32.totalorder %s28, 1
      %s30 = scalar_select %p29, 0, %s28
      %s31 = sadd.s32 1, %s20
      %s32 = scalar_select %p29, %s31, %s20
      %p33 = scmp.ge.s32.totalorder %s32, 2
      %s34 = scalar_select %p33, 0, %s32
      %s35 = sadd.s32 1, %s19
      %s36 = scalar_select %p33, %s35, %s19
      %p37 = scmp.ge.s32.totalorder %s36, 2
      %s38 = scalar_select %p37, 0, %s36
      %s39 = ssub.s32 %s20, %s34
      %s40 = ssub.s32 %s21, %s30
      %s41 = sor.u32 %s39, %s40
      %p42 = scmp.eq.s32.totalorder %s41, 0
      %s44 = sadd.s32 %s43, 1
      %s45 = scalar_select %p42, %s43, %s44
      %p48 = pneg %p42
      %p49 = scmp.eq.s32.totalorder %s12, 3
      %p50 = por %p48, %p49
      %p51 = scmp.ne.s32.totalorder %s43, %s46
      %p52 = scmp.eq.s32.totalorder %s12, 0
      %p53 = por %p51, %p52
      %p54 = scmp.ne.s32.totalorder %s43, %s46
      %p55 = scmp.eq.s32.totalorder %s17, 3
      %p56 = por %p54, %p55
      %p57 = scmp.ne.s32.totalorder %s46, %s47
      %p58 = scmp.eq.s32.totalorder %s17, 0
      %p59 = por %p57, %p58
      %p60 = scmp.ne.s32.totalorder %s46, %s47
      %p61 = scmp.eq.s32.totalorder %s18, 3
      %p62 = por %p60, %p61
      %p64 = scmp.ne.s32.totalorder %s47, %s63
      %p65 = scmp.eq.s32.totalorder %s18, 0
      %p66 = por %p64, %p65
      %s68 = sadd.s32 %s67, 1
      %p71 = scmp.eq.s32.totalorder %s12, 3
      %p72 = scmp.ne.s32.totalorder %s67, %s69
      %p73 = scmp.eq.s32.totalorder %s12, 0
      %p74 = por %p72, %p73
      %p75 = scmp.ne.s32.totalorder %s67, %s69
      %p76 = scmp.eq.s32.totalorder %s17, 3
      %p77 = por %p75, %p76
      %p78 = scmp.ne.s32.totalorder %s69, %s70
      %p79 = scmp.eq.s32.totalorder %s17, 0
      %p80 = por %p78, %p79
      %p81 = scmp.ne.s32.totalorder %s69, %s70
      %p82 = scmp.eq.s32.totalorder %s18, 3
      %p83 = por %p81, %p82
      %p85 = scmp.ne.s32.totalorder %s70, %s84
      %p86 = scmp.eq.s32.totalorder %s18, 0
      %p87 = por %p85, %p86
      %s89 = sadd.s32 %s88, 1
      %p92 = scmp.eq.s32.totalorder %s12, 3
      %p93 = scmp.ne.s32.totalorder %s88, %s90
      %p94 = scmp.eq.s32.totalorder %s12, 0
      %p95 = por %p93, %p94
      %p96 = scmp.ne.s32.totalorder %s88, %s90
      %p97 = scmp.eq.s32.totalorder %s17, 3
      %p98 = por %p96, %p97
      %p99 = scmp.ne.s32.totalorder %s90, %s91
      %p100 = scmp.eq.s32.totalorder %s17, 0
      %p101 = por %p99, %p100
      %p102 = scmp.ne.s32.totalorder %s90, %s91
      %p103 = scmp.eq.s32.totalorder %s18, 3
      %p104 = por %p102, %p103
      %p106 = scmp.ne.s32.totalorder %s91, %s105
      %p107 = scmp.eq.s32.totalorder %s18, 0
      %p108 = por %p106, %p107
      %s110 = sadd.s32 %s109, 1
      %p113 = scmp.eq.s32.totalorder %s12, 3
      %p114 = scmp.ne.s32.totalorder %s109, %s111
      %p115 = scmp.eq.s32.totalorder %s12, 0
      %p116 = por %p114, %p115
      %p117 = scmp.ne.s32.totalorder %s109, %s111
      %p118 = scmp.eq.s32.totalorder %s17, 3
      %p119 = por %p117, %p118
      %p120 = scmp.ne.s32.totalorder %s111, %s112
      %p121 = scmp.eq.s32.totalorder %s17, 0
      %p122 = por %p120, %p121
      %p123 = scmp.ne.s32.totalorder %s111, %s112
      %p124 = scmp.eq.s32.totalorder %s18, 3
      %p125 = por %p123, %p124
      %p127 = scmp.ne.s32.totalorder %s112, %s126
      %p128 = scmp.eq.s32.totalorder %s18, 0
      %p129 = por %p127, %p128
      %s131 = sadd.s32 %s130, 1
      %p134 = scmp.eq.s32.totalorder %s12, 3
      %p135 = scmp.ne.s32.totalorder %s130, %s132
      %p136 = scmp.eq.s32.totalorder %s12, 0
      %p137 = por %p135, %p136
      %p138 = scmp.ne.s32.totalorder %s130, %s132
      %p139 = scmp.eq.s32.totalorder %s17, 3
      %p140 = por %p138, %p139
      %p141 = scmp.ne.s32.totalorder %s132, %s133
      %p142 = scmp.eq.s32.totalorder %s17, 0
      %p143 = por %p141, %p142
      %p144 = scmp.ne.s32.totalorder %s132, %s133
      %p145 = scmp.eq.s32.totalorder %s18, 3
      %p146 = por %p144, %p145
      %p148 = scmp.ne.s32.totalorder %s133, %s147
      %p149 = scmp.eq.s32.totalorder %s18, 0
      %p150 = por %p148, %p149
      %s152 = sadd.s32 %s151, 1
      %p155 = scmp.eq.s32.totalorder %s12, 3
      %p156 = scmp.ne.s32.totalorder %s151, %s153
      %p157 = scmp.eq.s32.totalorder %s12, 0
      %p158 = por %p156, %p157
      %p159 = scmp.ne.s32.totalorder %s151, %s153
      %p160 = scmp.eq.s32.totalorder %s17, 3
      %p161 = por %p159, %p160
      %p162 = scmp.ne.s32.totalorder %s153, %s154
      %p163 = scmp.eq.s32.totalorder %s17, 0
      %p164 = por %p162, %p163
      %p165 = scmp.ne.s32.totalorder %s153, %s154
      %p166 = scmp.eq.s32.totalorder %s18, 3
      %p167 = por %p165, %p166
      %p169 = scmp.ne.s32.totalorder %s154, %s168
      %p170 = scmp.eq.s32.totalorder %s18, 0
      %p171 = por %p169, %p170
      %p172 = scmp.le.s32.totalorder 1, %s12
      %p173 = scmp.lt.s32.totalorder %s12, 5
      %p174 = pnand %p172, %p173
      %p175 = pneg %p174
      // Predicated region
      $region9: #{_resblock_impl.2} parent=5 // pred_check
        _
      $region10: #{_resblock_impl.2} parent=5 // pred_check_branch
        %177 = sbr.rel (%p174) target = $region12
      $region11: #{_resblock_impl.2} parent=5 // pred_region
        %s178 = ssub.s32 %s12, 1
        // Predicated region
        $region13: #{_resblock_impl.2} parent=11 // pred_check
          %p179 = pneg %p80
        $region14: #{_resblock_impl.2} parent=11 // pred_check_branch
          %181 = sbr.rel (%p179) target = $region16
        $region15: #{_resblock_impl.2} parent=11 // pred_region
          _
        $region16: #{_resblock_impl.2} parent=11 // pred_fallthru
          _
        // Predicated region
        $region17: #{_resblock_impl.2} parent=11 // pred_check
          %p182 = pneg %p101
        $region18: #{_resblock_impl.2} parent=11 // pred_check_branch
          %184 = sbr.rel (%p182) target = $region20
        $region19: #{_resblock_impl.2} parent=11 // pred_region
          _
        $region20: #{_resblock_impl.2} parent=11 // pred_fallthru
          _
        // Predicated region
        $region21: #{_resblock_impl.2} parent=11 // pred_check
          %p185 = pneg %p122
        $region22: #{_resblock_impl.2} parent=11 // pred_check_branch
          %187 = sbr.rel (%p185) target = $region24
        $region23: #{_resblock_impl.2} parent=11 // pred_region
          _
        $region24: #{_resblock_impl.2} parent=11 // pred_fallthru
          _
        // Predicated region
        $region25: #{_resblock_impl.2} parent=11 // pred_check
          %p188 = pneg %p143
        $region26: #{_resblock_impl.2} parent=11 // pred_check_branch
          %190 = sbr.rel (%p188) target = $region28
        $region27: #{_resblock_impl.2} parent=11 // pred_region
          %s192 = ssub.s32 16, 16
          %193 = vsyncadd [#allocation8], %s192
          %s195 = sshll.u32 %s4, 4
          %s196 = int_to_ptr.vmem [resolvable:$true] %s195
          %198 = dma.vmem_to_smem %s196, 16, [#allocation7], [#allocation8]
        $region28: #{_resblock_impl.2} parent=11 // pred_fallthru
          _
      $region12: #{_resblock_impl.2} parent=5 // pred_fallthru
        _
      %p199 = scmp.lt.s32.totalorder %s12, 4
      // Predicated region
      $region29: #{_resblock_impl.2} parent=5 // pred_check
        %p200 = pneg %p199
      $region30: #{_resblock_impl.2} parent=5 // pred_check_branch
        %202 = sbr.rel (%p200) target = $region32
      $region31: #{_resblock_impl.2} parent=5 // pred_region
        // Predicated region
        $region33: #{_resblock_impl.2} parent=31 // pred_check
          %p203 = pneg %p53
        $region34: #{_resblock_impl.2} parent=31 // pred_check_branch
          %205 = sbr.rel (%p203) target = $region36
        $region35: #{_resblock_impl.2} parent=31 // pred_region
          %s206 = smul.u32 18, %s21
          %p207 = scmp.lt.s32.totalorder %s20, 1
          %s208 = scalar_select %p207, %s20, 1
          %p209 = scmp.lt.s32.totalorder %s206, 17
          %s210 = scalar_select %p209, %s206, 17
          %s211 = smul.addr %s208, 18
          %s212 = sadd.s32 %s210, %s211
          %s213 = smul.addr %s212, 4
          %s214 = scalar_lea.vmem %s0, %s213
          %s215 = smul.u32 18, %s21
        $region36: #{_resblock_impl.2} parent=31 // pred_fallthru
          _
      $region32: #{_resblock_impl.2} parent=5 // pred_fallthru
        _
      %p216 = scmp.le.s32.totalorder 1, %s12
      %p217 = scmp.lt.s32.totalorder %s12, 5
      %p218 = pnand %p216, %p217
      %p219 = pneg %p218
      // Predicated region
      $region37: #{_resblock_impl.2} parent=5 // pred_check
        _
      $region38: #{_resblock_impl.2} parent=5 // pred_check_branch
        %221 = sbr.rel (%p218) target = $region40
      $region39: #{_resblock_impl.2} parent=5 // pred_region
        %s222 = ssub.s32 %s12, 1
        // Predicated region
        $region41: #{_resblock_impl.2} parent=39 // pred_check
          %p223 = pneg %p143
        $region42: #{_resblock_impl.2} parent=39 // pred_check_branch
          %225 = sbr.rel (%p223) target = $region44
        $region43: #{_resblock_impl.2} parent=39 // pred_region
          %226 = dma.done [#allocation8], 16
        $region44: #{_resblock_impl.2} parent=39 // pred_fallthru
          _
        %227 = sfence
        %s228 = smul.u32 18, %s24
        %p229 = scmp.lt.s32.totalorder %s23, 1
        %s230 = scalar_select %p229, %s23, 1
        %p231 = scmp.lt.s32.totalorder %s228, 17
        %s232 = scalar_select %p231, %s228, 17
        %s233 = smul.addr %s230, 18
        %s234 = sadd.s32 %s232, %s233
        %s235 = smul.addr %s234, 4
        %s236 = scalar_lea.vmem %s0, %s235
        %p237 = pneg %p59
        %p238 = pneg %p56
        %p239 = pneg %p80
        %p240 = pneg %p77
        %p241 = pneg %p101
        %p242 = pneg %p98
        %p243 = pneg %p122
        %p244 = pneg %p119
        %p245 = pneg %p143
        %p246 = pneg %p140
        %p247 = pneg %p164
        %p248 = pneg %p161
        %s249 = smul.u32 18, %s24
        %p250 = scmp.lt.s32.totalorder %s23, 1
        %s251 = scalar_select %p250, %s23, 1
        %p252 = scmp.lt.s32.totalorder %s249, 17
        %s253 = scalar_select %p252, %s249, 17
        %s254 = smul.addr %s251, 18
        %s255 = sadd.s32 %s253, %s254
        %s256 = smul.addr %s255, 4
        %s257 = scalar_lea.vmem %s0, %s256
        %s258 = smul.u32 18, %s24
        %p260 = scmp.eq.s32.totalorder %s22, 0
        %p261 = scmp.eq.s32.totalorder %s23, 0
        %p262 = pnand %p260, %p261
        %p263 = pneg %p262
        %p264 = scmp.eq.s32.totalorder %s24, 0
        %p265 = pnand %p263, %p264
        %p266 = pneg %p265
        // Predicated region
        $region45: #{_resblock_impl.2} parent=39 // pred_check
          _
        $region46: #{_resblock_impl.2} parent=39 // pred_check_branch
          %268 = sbr.rel (%p265) target = $region48
        $region47: #{_resblock_impl.2} parent=39 // pred_region
          %269 = vst [vmem:[#allocation2] sm:$0x1] 0.0
          %270 = vst [vmem:[#allocation3] sm:$0x1] 0.0
          %271 = vst [vmem:[#allocation4] sm:$0x1] 0.0
          %272 = vst [vmem:[#allocation5] sm:$0x1] 0.0
        $region48: #{_resblock_impl.2} parent=39 // pred_fallthru
          _
        %v273 = vld [vmem:[%s257] sm:$0xf]
        %v274 = vld [vmem:[%s257 + $0x4] sm:$0xf]
        %v275 = vld [vmem:[%s257 + $0x8] sm:$0xf]
        %v276 = vld [vmem:[%s257 + $0xc] sm:$0xf]
        %v277 = vld [vmem:[%s257 + $0x10] sm:$0xf]
        %v278 = vld [vmem:[%s257 + $0x14] sm:$0xf]
        %v279 = vld [vmem:[%s257 + $0x18] sm:$0xf]
        %v280 = vld [vmem:[%s257 + $0x1c] sm:$0xf]
        %v281 = vld [vmem:[%s257 + $0x20] sm:$0xf]
        %v282 = vld [vmem:[%s257 + $0x24] sm:$0xf]
        %v283 = vld [vmem:[%s257 + $0x28] sm:$0xf]
        %v284 = vld [vmem:[%s257 + $0x2c] sm:$0xf]
        %v285 = vld [vmem:[%s257 + $0x30] sm:$0xf]
        %v286 = vld [vmem:[%s257 + $0x34] sm:$0xf]
        %v287 = vld [vmem:[%s257 + $0x38] sm:$0xf]
        %v288 = vld [vmem:[%s257 + $0x3c] sm:$0xf]
        %v289 = vld [vmem:[%s257 + $0x40] sm:$0xf]
        %v290 = vld [vmem:[%s257 + $0x44] sm:$0xf]
        %v291 = vld [vmem:[%s1] sm:$0xf]
        %v292 = vld [vmem:[%s1 + $0x4] sm:$0xf]
        %v293 = vld [vmem:[%s1 + $0x8] sm:$0xf]
        %v294 = vld [vmem:[%s1 + $0xc] sm:$0xf]
        %v295 = vld [vmem:[%s1 + $0x10] sm:$0xf]
        %v296 = vld [vmem:[%s1 + $0x14] sm:$0xf]
        %v297 = vld [vmem:[%s1 + $0x18] sm:$0xf]
        %v298 = vld [vmem:[%s1 + $0x1c] sm:$0xf]
        %v299 = vld [vmem:[%s1 + $0x20] sm:$0xf]
        %v300 = vld [vmem:[%s1 + $0x24] sm:$0xf]
        %v301 = vld [vmem:[%s1 + $0x28] sm:$0xf]
        %v302 = vld [vmem:[%s1 + $0x2c] sm:$0xf]
        %v303 = vld [vmem:[%s1 + $0x30] sm:$0xf]
        %v304 = vld [vmem:[%s1 + $0x34] sm:$0xf]
        %v305 = vld [vmem:[%s1 + $0x38] sm:$0xf]
        %v306 = vld [vmem:[%s1 + $0x3c] sm:$0xf]
        %v325 = vunpack.c.l.b16 %v273
        %v326 = vunpack.c.l.b16 %v274
        %v327 = vunpack.c.l.b16 %v275
        %v328 = vunpack.c.l.b16 %v276
        %v329 = vunpack.c.l.b16 %v277
        %v330 = vunpack.c.l.b16 %v278
        %v331 = vunpack.c.l.b16 %v279
        %v332 = vunpack.c.l.b16 %v280
        %v333 = vunpack.c.l.b16 %v281
        %v334 = vunpack.c.l.b16 %v282
        %v335 = vunpack.c.l.b16 %v283
        %v336 = vunpack.c.l.b16 %v284
        %v337 = vunpack.c.l.b16 %v285
        %v338 = vunpack.c.l.b16 %v286
        %v339 = vunpack.c.l.b16 %v287
        %v340 = vunpack.c.l.b16 %v288
        %v341 = vunpack.c.l.b16 %v289
        %v342 = vunpack.c.l.b16 %v290
        %v343 = vpack.c.b16 %v326, %v325
        %v344 = vpack.c.b16 %v328, %v327
        %v345 = vpack.c.b16 %v330, %v329
        %v346 = vpack.c.b16 %v332, %v331
        %v347 = vpack.c.b16 %v334, %v333
        %v348 = vpack.c.b16 %v336, %v335
        %v349 = vpack.c.b16 %v338, %v337
        %v350 = vpack.c.b16 %v340, %v339
        %v351 = vpack.c.b16 %v342, %v341
        %v377 = vunpack.c.l.b16 %v291
        %v378 = vunpack.c.l.b16 %v292
        %v379 = vunpack.c.l.b16 %v293
        %v380 = vunpack.c.l.b16 %v294
        %v381 = vunpack.c.l.b16 %v295
        %v382 = vunpack.c.l.b16 %v296
        %v383 = vunpack.c.l.b16 %v297
        %v384 = vunpack.c.l.b16 %v298
        %v385 = vunpack.c.l.b16 %v299
        %v386 = vunpack.c.l.b16 %v300
        %v387 = vunpack.c.l.b16 %v301
        %v388 = vunpack.c.l.b16 %v302
        %v389 = vunpack.c.l.b16 %v303
        %v390 = vunpack.c.l.b16 %v304
        %v391 = vunpack.c.l.b16 %v305
        %v392 = vunpack.c.l.b16 %v306
        %v393 = vpack.c.b16 %v378, %v377
        %v394 = vpack.c.b16 %v380, %v379
        %v395 = vpack.c.b16 %v382, %v381
        %v396 = vpack.c.b16 %v384, %v383
        %v397 = vpack.c.b16 %v386, %v385
        %v398 = vpack.c.b16 %v388, %v387
        %v399 = vpack.c.b16 %v390, %v389
        %v400 = vpack.c.b16 %v392, %v391
        %409 = vmatprep.subr.bf16.mxu0 0
        %410 = vmatpush1.bf16.msra.mxu0 %v393
        %411 = vmatprep.subr.bf16.mxu0 0
        %412 = vmatpush1.bf16.msra.mxu0 %v394
        %413 = vmatprep.subr.bf16.mxu0 0
        %414 = vmatpush1.bf16.msra.mxu0 %v395
        %415 = vmatprep.subr.bf16.mxu0 0
        %416 = vmatpush1.bf16.msra.mxu0 %v396
        %417 = vmatprep.subr.bf16.mxu0 0
        %418 = vmatpush1.bf16.msra.mxu0 %v397
        %419 = vmatprep.subr.bf16.mxu0 0
        %420 = vmatpush1.bf16.msra.mxu0 %v398
        %421 = vmatprep.subr.bf16.mxu0 0
        %422 = vmatpush1.bf16.msra.mxu0 %v399
        %423 = vmatprep.subr.bf16.mxu0 0
        %424 = vmatpush1.bf16.msra.mxu0 %v400
        %425 = vmatprep.subr.bf16.mxu0 0
        %426 = vmatpush1.bf16.msra.mxu0 0
        %427 = vmatprep.subr.bf16.mxu0 0
        %428 = vmatpush1.bf16.msra.mxu0 0
        %429 = vmatprep.subr.bf16.mxu0 0
        %430 = vmatpush1.bf16.msra.mxu0 0
        %431 = vmatprep.subr.bf16.mxu0 0
        %432 = vmatpush1.bf16.msra.mxu0 0
        %433 = vmatprep.subr.bf16.mxu0 0
        %434 = vmatpush1.bf16.msra.mxu0 0
        %435 = vmatprep.subr.bf16.mxu0 0
        %436 = vmatpush1.bf16.msra.mxu0 0
        %437 = vmatprep.subr.bf16.mxu0 0
        %438 = vmatpush1.bf16.msra.mxu0 0
        %439 = vmatprep.subr.bf16.mxu0 0
        %440 = vmatpush1.bf16.msra.mxu0 0
        %441 = vmatprep.mubr.bf16.mxu0 0
        %442 = vmatmul.mubr.bf16.gmra.mrb[0].mxu0 %v343
        %v443 = vpop.f32.mrb[0].mxu0
        %v444 = vadd.f32 0.0, %v443
        %v445 = vpop.f32.mrb[0].mxu0
        %v446 = vpop.f32.mrb[0].mxu0
        %v447 = vadd.f32 0.0, %v446
        %v448 = vpop.f32.mrb[0].mxu0
        %449 = vmatprep.mubr.bf16.mxu0 0
        %450 = vmatmul.mubr.bf16.gmra.mrb[0].mxu0 %v344
        %v451 = vpop.f32.mrb[0].mxu0
        %v452 = vadd.f32 0.0, %v451
        %v453 = vpop.f32.mrb[0].mxu0
        %v454 = vpop.f32.mrb[0].mxu0
        %v455 = vadd.f32 0.0, %v454
        %v456 = vpop.f32.mrb[0].mxu0
        %457 = vmatprep.mubr.bf16.mxu0 0
        %458 = vmatmul.mubr.bf16.gmra.mrb[0].mxu0 %v345
        %v459 = vpop.f32.mrb[0].mxu0
        %v460 = vadd.f32 0.0, %v459
        %v461 = vpop.f32.mrb[0].mxu0
        %v462 = vpop.f32.mrb[0].mxu0
        %v463 = vadd.f32 0.0, %v462
        %v464 = vpop.f32.mrb[0].mxu0
        %465 = vmatprep.mubr.bf16.mxu0 0
        %466 = vmatmul.mubr.bf16.gmra.mrb[0].mxu0 %v346
        %v467 = vpop.f32.mrb[0].mxu0
        %v468 = vadd.f32 0.0, %v467
        %v469 = vpop.f32.mrb[0].mxu0
        %v470 = vpop.f32.mrb[0].mxu0
        %v471 = vadd.f32 0.0, %v470
        %v472 = vpop.f32.mrb[0].mxu0
        %473 = vmatprep.mubr.bf16.mxu0 0
        %474 = vmatmul.mubr.bf16.gmra.mrb[0].mxu0 %v347
        %v475 = vpop.f32.mrb[0].mxu0
        %v476 = vadd.f32 0.0, %v475
        %v477 = vpop.f32.mrb[0].mxu0
        %v478 = vpop.f32.mrb[0].mxu0
        %v479 = vadd.f32 0.0, %v478
        %v480 = vpop.f32.mrb[0].mxu0
        %481 = vmatprep.mubr.bf16.mxu0 0
        %482 = vmatmul.mubr.bf16.gmra.mrb[0].mxu0 %v348
        %v483 = vpop.f32.mrb[0].mxu0
        %v484 = vadd.f32 0.0, %v483
        %v485 = vpop.f32.mrb[0].mxu0
        %v486 = vpop.f32.mrb[0].mxu0
        %v487 = vadd.f32 0.0, %v486
        %v488 = vpop.f32.mrb[0].mxu0
        %489 = vmatprep.mubr.bf16.mxu0 0
        %490 = vmatmul.mubr.bf16.gmra.mrb[0].mxu0 %v349
        %v491 = vpop.f32.mrb[0].mxu0
        %v492 = vadd.f32 0.0, %v491
        %v493 = vpop.f32.mrb[0].mxu0
        %v494 = vpop.f32.mrb[0].mxu0
        %v495 = vadd.f32 0.0, %v494
        %v496 = vpop.f32.mrb[0].mxu0
        %497 = vmatprep.mubr.bf16.mxu0 0
        %498 = vmatmul.mubr.bf16.gmra.mrb[0].mxu0 %v350
        %v499 = vpop.f32.mrb[0].mxu0
        %v500 = vadd.f32 0.0, %v499
        %v501 = vpop.f32.mrb[0].mxu0
        %v502 = vpop.f32.mrb[0].mxu0
        %v503 = vadd.f32 0.0, %v502
        %v504 = vpop.f32.mrb[0].mxu0
        %505 = vmatprep.mubr.bf16.mxu0 0
        %506 = vmatmul.mubr.bf16.gmra.mrb[0].mxu0 %v351
        %v507 = vpop.f32.mrb[0].mxu0
        %v508 = vadd.f32 0.0, %v507
        %v509 = vpop.f32.mrb[0].mxu0
        %v510 = vpop.f32.mrb[0].mxu0
        %v511 = vadd.f32 0.0, %v510
        %v512 = vpop.f32.mrb[0].mxu0
        %513 = vdwg.mxu0
        // Predicated region
        $region49: #{_resblock_impl.2} parent=39 // pred_check
          %p514 = pneg %p260
        $region50: #{_resblock_impl.2} parent=39 // pred_check_branch
          %516 = sbr.rel (%p514) target = $region52
        $region51: #{_resblock_impl.2} parent=39 // pred_region
          %v517 = vld [vmem:[#allocation2] sm:$0x1]
          %v518 = vadd.f32 %v444, %v447
          %v519 = vadd.f32 %v518, %v452
          %v520 = vadd.f32 %v519, %v455
          %v521 = vadd.f32 %v520, %v460
          %v522 = vadd.f32 %v521, %v463
          %v523 = vadd.f32 %v522, %v468
          %v524 = vadd.f32 %v523, %v471
          %v525 = vadd.f32 %v524, %v476
          %v526 = vadd.f32 %v525, %v479
          %v527 = vadd.f32 %v526, %v484
          %v528 = vadd.f32 %v527, %v487
          %v529 = vadd.f32 %v528, %v492
          %v530 = vadd.f32 %v529, %v495
          %v531 = vadd.f32 %v530, %v500
          %v532 = vadd.f32 %v531, %v503
          %v533 = vadd.f32 %v532, %v508
          %v534 = vadd.f32 %v533, %v511
          %v535 = vrot.slane %v534, 4
          %v536 = vadd.f32 %v534, %v535
          %v537 = vrot.slane %v536, 2
          %v538 = vadd.f32 %v536, %v537
          %v539 = vrot.slane %v538, 1
          %v540 = vadd.f32 %v538, %v539
          %v541 = vadd.f32 %v517, %v540
          %542 = vst [vmem:[#allocation2] sm:$0x1] %v541
          %v543 = vld [vmem:[#allocation3] sm:$0x1]
          %v544 = vmul.f32 %v444, %v444
          %v545 = vmul.f32 %v447, %v447
          %v546 = vmul.f32 %v452, %v452
          %v547 = vmul.f32 %v455, %v455
          %v548 = vmul.f32 %v460, %v460
          %v549 = vmul.f32 %v463, %v463
          %v550 = vmul.f32 %v468, %v468
          %v551 = vmul.f32 %v471, %v471
          %v552 = vmul.f32 %v476, %v476
          %v553 = vmul.f32 %v479, %v479
          %v554 = vmul.f32 %v484, %v484
          %v555 = vmul.f32 %v487, %v487
          %v556 = vmul.f32 %v492, %v492
          %v557 = vmul.f32 %v495, %v495
          %v558 = vmul.f32 %v500, %v500
          %v559 = vmul.f32 %v503, %v503
          %v560 = vmul.f32 %v508, %v508
          %v561 = vmul.f32 %v511, %v511
          %v562 = vadd.f32 %v544, %v545
          %v563 = vadd.f32 %v562, %v546
          %v564 = vadd.f32 %v563, %v547
          %v565 = vadd.f32 %v564, %v548
          %v566 = vadd.f32 %v565, %v549
          %v567 = vadd.f32 %v566, %v550
          %v568 = vadd.f32 %v567, %v551
          %v569 = vadd.f32 %v568, %v552
          %v570 = vadd.f32 %v569, %v553
          %v571 = vadd.f32 %v570, %v554
          %v572 = vadd.f32 %v571, %v555
          %v573 = vadd.f32 %v572, %v556
          %v574 = vadd.f32 %v573, %v557
          %v575 = vadd.f32 %v574, %v558
          %v576 = vadd.f32 %v575, %v559
          %v577 = vadd.f32 %v576, %v560
          %v578 = vadd.f32 %v577, %v561
          %v579 = vrot.slane %v578, 4
          %v580 = vadd.f32 %v578, %v579
          %v581 = vrot.slane %v580, 2
          %v582 = vadd.f32 %v580, %v581
          %v583 = vrot.slane %v582, 1
          %v584 = vadd.f32 %v582, %v583
          %v585 = vadd.f32 %v543, %v584
          %586 = vst [vmem:[#allocation3] sm:$0x1] %v585
        $region52: #{_resblock_impl.2} parent=39 // pred_fallthru
          _
        %p587 = scmp.eq.s32.totalorder %s22, 1
        %p588 = pnand %p587, %p261
        %p589 = pneg %p588
        %p590 = pnand %p589, %p264
        %p591 = pneg %p590
        // Predicated region
        $region53: #{_resblock_impl.2} parent=39 // pred_check
          _
        $region54: #{_resblock_impl.2} parent=39 // pred_check_branch
          %593 = sbr.rel (%p590) target = $region56
        $region55: #{_resblock_impl.2} parent=39 // pred_region
          %v594 = vld [vmem:[%s3] sm:$0xf]
          %v595 = vld [vmem:[#allocation2] sm:$0x1]
          %v596 = vld [vmem:[#allocation3] sm:$0x1]
          %v597 = vmul.f32 %v595, 0.005
          %v598 = vmul.f32 %v596, 0.005
          %v599 = vmul.f32 %v597, %v597
          %v600 = vsub.f32 %v598, %v599
          %v601 = vmax.f32 %v600, 0.0
          %v602 = vadd.f32 %v601, 1e-05
          %v603 = vrsqrt.pop %v602
          %v604 = vmul.f32 %v594, %v603
          %v605 = vmul.f32 %v597, %v604
          %v607 = vlaneseq
          %v608 = vshrl.u32 %v607, 7
          %v609 = vsub.s32 0, %v608
          %v610 = vrot.slane %v605, %v609
          %v612 = vsub.f32 %v594, %v610
          %vm613 = vcmask 1040384
          %v614 = vsel %vm613, %v604, %v612
          %615 = vst [vmem:[#allocation6] sm:$0x3] %v614
        $region56: #{_resblock_impl.2} parent=39 // pred_fallthru
          _
        // Predicated region
        $region57: #{_resblock_impl.2} parent=39 // pred_check
          %p616 = pneg %p587
        $region58: #{_resblock_impl.2} parent=39 // pred_check_branch
          %618 = sbr.rel (%p616) target = $region60
        $region59: #{_resblock_impl.2} parent=39 // pred_region
          %v619 = vld [vmem:[#allocation6] sm:$0x1]
          %v620 = vlaneseq
          %v621 = vshrl.u32 %v620, 7
          %v622 = vsub.s32 0, %v621
          %v623 = vrot.slane %v619, %v622
          %v624 = vmul.f32 %v444, %v623
          %v625 = vmul.f32 %v447, %v623
          %v626 = vmul.f32 %v452, %v623
          %v627 = vmul.f32 %v455, %v623
          %v628 = vmul.f32 %v460, %v623
          %v629 = vmul.f32 %v463, %v623
          %v630 = vmul.f32 %v468, %v623
          %v631 = vmul.f32 %v471, %v623
          %v632 = vmul.f32 %v476, %v623
          %v633 = vmul.f32 %v479, %v623
          %v634 = vmul.f32 %v484, %v623
          %v635 = vmul.f32 %v487, %v623
          %v636 = vmul.f32 %v492, %v623
          %v637 = vmul.f32 %v495, %v623
          %v638 = vmul.f32 %v500, %v623
          %v639 = vmul.f32 %v503, %v623
          %v640 = vmul.f32 %v508, %v623
          %v641 = vmul.f32 %v511, %v623
          %v642 = vld [vmem:[#allocation6 + $0x1] sm:$0x1]
          %v643 = vlaneseq
          %v644 = vshrl.u32 %v643, 7
          %v645 = vsub.s32 0, %v644
          %v646 = vrot.slane %v642, %v645
          %v647 = vadd.f32 %v624, %v646
          %v648 = vadd.f32 %v625, %v646
          %v649 = vadd.f32 %v626, %v646
          %v650 = vadd.f32 %v627, %v646
          %v651 = vadd.f32 %v628, %v646
          %v652 = vadd.f32 %v629, %v646
          %v653 = vadd.f32 %v630, %v646
          %v654 = vadd.f32 %v631, %v646
          %v655 = vadd.f32 %v632, %v646
          %v656 = vadd.f32 %v633, %v646
          %v657 = vadd.f32 %v634, %v646
          %v658 = vadd.f32 %v635, %v646
          %v659 = vadd.f32 %v636, %v646
          %v660 = vadd.f32 %v637, %v646
          %v661 = vadd.f32 %v638, %v646
          %v662 = vadd.f32 %v639, %v646
          %v663 = vadd.f32 %v640, %v646
          %v664 = vadd.f32 %v641, %v646
          %s665 = sld [smem:[#allocation7]]
          %vm666 = vcmp.ge.f32.partialorder %v647, 0.0
          %vm667 = vcmp.ge.f32.partialorder %v648, 0.0
          %vm668 = vcmp.ge.f32.partialorder %v649, 0.0
          %vm669 = vcmp.ge.f32.partialorder %v650, 0.0
          %vm670 = vcmp.ge.f32.partialorder %v651, 0.0
          %vm671 = vcmp.ge.f32.partialorder %v652, 0.0
          %vm672 = vcmp.ge.f32.partialorder %v653, 0.0
          %vm673 = vcmp.ge.f32.partialorder %v654, 0.0
          %vm674 = vcmp.ge.f32.partialorder %v655, 0.0
          %vm675 = vcmp.ge.f32.partialorder %v656, 0.0
          %vm676 = vcmp.ge.f32.partialorder %v657, 0.0
          %vm677 = vcmp.ge.f32.partialorder %v658, 0.0
          %vm678 = vcmp.ge.f32.partialorder %v659, 0.0
          %vm679 = vcmp.ge.f32.partialorder %v660, 0.0
          %vm680 = vcmp.ge.f32.partialorder %v661, 0.0
          %vm681 = vcmp.ge.f32.partialorder %v662, 0.0
          %vm682 = vcmp.ge.f32.partialorder %v663, 0.0
          %vm683 = vcmp.ge.f32.partialorder %v664, 0.0
          %v684 = vstv %s665
          %v685 = vmul.f32 %v684, %v647
          %v686 = vmul.f32 %v684, %v648
          %v687 = vmul.f32 %v684, %v649
          %v688 = vmul.f32 %v684, %v650
          %v689 = vmul.f32 %v684, %v651
          %v690 = vmul.f32 %v684, %v652
          %v691 = vmul.f32 %v684, %v653
          %v692 = vmul.f32 %v684, %v654
          %v693 = vmul.f32 %v684, %v655
          %v694 = vmul.f32 %v684, %v656
          %v695 = vmul.f32 %v684, %v657
          %v696 = vmul.f32 %v684, %v658
          %v697 = vmul.f32 %v684, %v659
          %v698 = vmul.f32 %v684, %v660
          %v699 = vmul.f32 %v684, %v661
          %v700 = vmul.f32 %v684, %v662
          %v701 = vmul.f32 %v684, %v663
          %v702 = vmul.f32 %v684, %v664
          %v703 = vsel %vm666, %v647, %v685
          %v704 = vsel %vm667, %v648, %v686
          %v705 = vsel %vm668, %v649, %v687
          %v706 = vsel %vm669, %v650, %v688
          %v707 = vsel %vm670, %v651, %v689
          %v708 = vsel %vm671, %v652, %v690
          %v709 = vsel %vm672, %v653, %v691
          %v710 = vsel %vm673, %v654, %v692
          %v711 = vsel %vm674, %v655, %v693
          %v712 = vsel %vm675, %v656, %v694
          %v713 = vsel %vm676, %v657, %v695
          %v714 = vsel %vm677, %v658, %v696
          %v715 = vsel %vm678, %v659, %v697
          %v716 = vsel %vm679, %v660, %v698
          %v717 = vsel %vm680, %v661, %v699
          %v718 = vsel %vm681, %v662, %v700
          %v719 = vsel %vm682, %v663, %v701
          %v720 = vsel %vm683, %v664, %v702
          %p721 = scmp.lt.s32.totalorder %s24, 0
          // Predicated region
          $region61: #{_resblock_impl.2} parent=59 // pred_check
            %p722 = pneg %p721
          $region62: #{_resblock_impl.2} parent=59 // pred_check_branch
            %724 = sbr.rel (%p722) target = $region64
          $region63: #{_resblock_impl.2} parent=59 // pred_region
            %v725 = vpack.c.bf16 %v704, %v703
            %v726 = vpack.c.bf16 %v706, %v705
            %v727 = vpack.c.bf16 %v708, %v707
            %v728 = vpack.c.bf16 %v710, %v709
            %v729 = vpack.c.bf16 %v712, %v711
            %v730 = vpack.c.bf16 %v714, %v713
            %v731 = vpack.c.bf16 %v716, %v715
            %v732 = vpack.c.bf16 %v718, %v717
            %v733 = vpack.c.bf16 %v720, %v719
            %v734 = vld [vmem:[%s2] sm:$0xf]
            %v735 = vld [vmem:[%s2 + $0x4] sm:$0xf]
            %v736 = vld [vmem:[%s2 + $0x8] sm:$0xf]
            %v737 = vld [vmem:[%s2 + $0xc] sm:$0xf]
            %v738 = vld [vmem:[%s2 + $0x10] sm:$0xf]
            %v739 = vld [vmem:[%s2 + $0x14] sm:$0xf]
            %v740 = vld [vmem:[%s2 + $0x18] sm:$0xf]
            %v741 = vld [vmem:[%s2 + $0x1c] sm:$0xf]
            %v742 = vld [vmem:[%s2 + $0x20] sm:$0xf]
            %v743 = vld [vmem:[%s2 + $0x24] sm:$0xf]
            %v744 = vld [vmem:[%s2 + $0x28] sm:$0xf]
            %v745 = vld [vmem:[%s2 + $0x2c] sm:$0xf]
            %v746 = vld [vmem:[%s2 + $0x30] sm:$0xf]
            %v747 = vld [vmem:[%s2 + $0x34] sm:$0xf]
            %v748 = vld [vmem:[%s2 + $0x38] sm:$0xf]
            %v749 = vld [vmem:[%s2 + $0x3c] sm:$0xf]
            %v766 = vunpack.c.l.b16 %v734
            %v767 = vunpack.c.l.b16 %v735
            %v768 = vunpack.c.l.b16 %v736
            %v769 = vunpack.c.l.b16 %v737
            %v770 = vunpack.c.l.b16 %v738
            %v771 = vunpack.c.l.b16 %v739
            %v772 = vunpack.c.l.b16 %v740
            %v773 = vunpack.c.l.b16 %v741
            %v774 = vunpack.c.l.b16 %v742
            %v775 = vunpack.c.l.b16 %v743
            %v776 = vunpack.c.l.b16 %v744
            %v777 = vunpack.c.l.b16 %v745
            %v778 = vunpack.c.l.b16 %v746
            %v779 = vunpack.c.l.b16 %v747
            %v780 = vunpack.c.l.b16 %v748
            %v781 = vunpack.c.l.b16 %v749
            %v782 = vpack.c.b16 %v767, %v766
            %v783 = vpack.c.b16 %v769, %v768
            %v784 = vpack.c.b16 %v771, %v770
            %v785 = vpack.c.b16 %v773, %v772
            %v786 = vpack.c.b16 %v775, %v774
            %v787 = vpack.c.b16 %v777, %v776
            %v788 = vpack.c.b16 %v779, %v778
            %v789 = vpack.c.b16 %v781, %v780
            %798 = vmatprep.subr.bf16.mxu0 0
            %799 = vmatpush1.bf16.msra.mxu0 %v782
            %800 = vmatprep.subr.bf16.mxu0 0
            %801 = vmatpush1.bf16.msra.mxu0 %v783
            %802 = vmatprep.subr.bf16.mxu0 0
            %803 = vmatpush1.bf16.msra.mxu0 %v784
            %804 = vmatprep.subr.bf16.mxu0 0
            %805 = vmatpush1.bf16.msra.mxu0 %v785
            %806 = vmatprep.subr.bf16.mxu0 0
            %807 = vmatpush1.bf16.msra.mxu0 %v786
            %808 = vmatprep.subr.bf16.mxu0 0
            %809 = vmatpush1.bf16.msra.mxu0 %v787
            %810 = vmatprep.subr.bf16.mxu0 0
            %811 = vmatpush1.bf16.msra.mxu0 %v788
            %812 = vmatprep.subr.bf16.mxu0 0
            %813 = vmatpush1.bf16.msra.mxu0 %v789
            %814 = vmatprep.subr.bf16.mxu0 0
            %815 = vmatpush1.bf16.msra.mxu0 0
            %816 = vmatprep.subr.bf16.mxu0 0
            %817 = vmatpush1.bf16.msra.mxu0 0
            %818 = vmatprep.subr.bf16.mxu0 0
            %819 = vmatpush1.bf16.msra.mxu0 0
            %820 = vmatprep.subr.bf16.mxu0 0
            %821 = vmatpush1.bf16.msra.mxu0 0
            %822 = vmatprep.subr.bf16.mxu0 0
            %823 = vmatpush1.bf16.msra.mxu0 0
            %824 = vmatprep.subr.bf16.mxu0 0
            %825 = vmatpush1.bf16.msra.mxu0 0
            %826 = vmatprep.subr.bf16.mxu0 0
            %827 = vmatpush1.bf16.msra.mxu0 0
            %828 = vmatprep.subr.bf16.mxu0 0
            %829 = vmatpush1.bf16.msra.mxu0 0
            %830 = vmatprep.mubr.bf16.mxu0 0
            %831 = vmatmul.mubr.bf16.gmra.mrb[0].mxu0 %v725
            %v832 = vpop.f32.mrb[0].mxu0
            %v833 = vadd.f32 0.0, %v832
            %v834 = vpop.f32.mrb[0].mxu0
            %v835 = vpop.f32.mrb[0].mxu0
            %v836 = vadd.f32 0.0, %v835
            %v837 = vpop.f32.mrb[0].mxu0
            %838 = vmatprep.mubr.bf16.mxu0 0
            %839 = vmatmul.mubr.bf16.gmra.mrb[0].mxu0 %v726
            %v840 = vpop.f32.mrb[0].mxu0
            %v841 = vadd.f32 0.0, %v840
            %v842 = vpop.f32.mrb[0].mxu0
            %v843 = vpop.f32.mrb[0].mxu0
            %v844 = vadd.f32 0.0, %v843
            %v845 = vpop.f32.mrb[0].mxu0
            %846 = vmatprep.mubr.bf16.mxu0 0
            %847 = vmatmul.mubr.bf16.gmra.mrb[0].mxu0 %v727
            %v848 = vpop.f32.mrb[0].mxu0
            %v849 = vadd.f32 0.0, %v848
            %v850 = vpop.f32.mrb[0].mxu0
            %v851 = vpop.f32.mrb[0].mxu0
            %v852 = vadd.f32 0.0, %v851
            %v853 = vpop.f32.mrb[0].mxu0
            %854 = vmatprep.mubr.bf16.mxu0 0
            %855 = vmatmul.mubr.bf16.gmra.mrb[0].mxu0 %v728
            %v856 = vpop.f32.mrb[0].mxu0
            %v857 = vadd.f32 0.0, %v856
            %v858 = vpop.f32.mrb[0].mxu0
            %v859 = vpop.f32.mrb[0].mxu0
            %v860 = vadd.f32 0.0, %v859
            %v861 = vpop.f32.mrb[0].mxu0
            %862 = vmatprep.mubr.bf16.mxu0 0
            %863 = vmatmul.mubr.bf16.gmra.mrb[0].mxu0 %v729
            %v864 = vpop.f32.mrb[0].mxu0
            %v865 = vadd.f32 0.0, %v864
            %v866 = vpop.f32.mrb[0].mxu0
            %v867 = vpop.f32.mrb[0].mxu0
            %v868 = vadd.f32 0.0, %v867
            %v869 = vpop.f32.mrb[0].mxu0
            %870 = vmatprep.mubr.bf16.mxu0 0
            %871 = vmatmul.mubr.bf16.gmra.mrb[0].mxu0 %v730
            %v872 = vpop.f32.mrb[0].mxu0
            %v873 = vadd.f32 0.0, %v872
            %v874 = vpop.f32.mrb[0].mxu0
            %v875 = vpop.f32.mrb[0].mxu0
            %v876 = vadd.f32 0.0, %v875
            %v877 = vpop.f32.mrb[0].mxu0
            %878 = vmatprep.mubr.bf16.mxu0 0
            %879 = vmatmul.mubr.bf16.gmra.mrb[0].mxu0 %v731
            %v880 = vpop.f32.mrb[0].mxu0
            %v881 = vadd.f32 0.0, %v880
            %v882 = vpop.f32.mrb[0].mxu0
            %v883 = vpop.f32.mrb[0].mxu0
            %v884 = vadd.f32 0.0, %v883
            %v885 = vpop.f32.mrb[0].mxu0
            %886 = vmatprep.mubr.bf16.mxu0 0
            %887 = vmatmul.mubr.bf16.gmra.mrb[0].mxu0 %v732
            %v888 = vpop.f32.mrb[0].mxu0
            %v889 = vadd.f32 0.0, %v888
            %v890 = vpop.f32.mrb[0].mxu0
            %v891 = vpop.f32.mrb[0].mxu0
            %v892 = vadd.f32 0.0, %v891
            %v893 = vpop.f32.mrb[0].mxu0
            %894 = vmatprep.mubr.bf16.mxu0 0
            %895 = vmatmul.mubr.bf16.gmra.mrb[0].mxu0 %v733
            %v896 = vpop.f32.mrb[0].mxu0
            %v897 = vadd.f32 0.0, %v896
            %v898 = vpop.f32.mrb[0].mxu0
            %v899 = vpop.f32.mrb[0].mxu0
            %v900 = vadd.f32 0.0, %v899
            %v901 = vpop.f32.mrb[0].mxu0
            %902 = vdwg.mxu0
            %v903 = vld [vmem:[#allocation4] sm:$0x1]
            %v904 = vadd.f32 %v833, %v836
            %v905 = vadd.f32 %v904, %v841
            %v906 = vadd.f32 %v905, %v844
            %v907 = vadd.f32 %v906, %v849
            %v908 = vadd.f32 %v907, %v852
            %v909 = vadd.f32 %v908, %v857
            %v910 = vadd.f32 %v909, %v860
            %v911 = vadd.f32 %v910, %v865
            %v912 = vadd.f32 %v911, %v868
            %v913 = vadd.f32 %v912, %v873
            %v914 = vadd.f32 %v913, %v876
            %v915 = vadd.f32 %v914, %v881
            %v916 = vadd.f32 %v915, %v884
            %v917 = vadd.f32 %v916, %v889
            %v918 = vadd.f32 %v917, %v892
            %v919 = vadd.f32 %v918, %v897
            %v920 = vadd.f32 %v919, %v900
            %v921 = vrot.slane %v920, 4
            %v922 = vadd.f32 %v920, %v921
            %v923 = vrot.slane %v922, 2
            %v924 = vadd.f32 %v922, %v923
            %v925 = vrot.slane %v924, 1
            %v926 = vadd.f32 %v924, %v925
            %v927 = vadd.f32 %v903, %v926
            %928 = vst [vmem:[#allocation4] sm:$0x1] %v927
            %v929 = vld [vmem:[#allocation5] sm:$0x1]
            %v930 = vmul.f32 %v833, %v833
            %v931 = vmul.f32 %v836, %v836
            %v932 = vmul.f32 %v841, %v841
            %v933 = vmul.f32 %v844, %v844
            %v934 = vmul.f32 %v849, %v849
            %v935 = vmul.f32 %v852, %v852
            %v936 = vmul.f32 %v857, %v857
            %v937 = vmul.f32 %v860, %v860
            %v938 = vmul.f32 %v865, %v865
            %v939 = vmul.f32 %v868, %v868
            %v940 = vmul.f32 %v873, %v873
            %v941 = vmul.f32 %v876, %v876
            %v942 = vmul.f32 %v881, %v881
            %v943 = vmul.f32 %v884, %v884
            %v944 = vmul.f32 %v889, %v889
            %v945 = vmul.f32 %v892, %v892
            %v946 = vmul.f32 %v897, %v897
            %v947 = vmul.f32 %v900, %v900
            %v948 = vadd.f32 %v930, %v931
            %v949 = vadd.f32 %v948, %v932
            %v950 = vadd.f32 %v949, %v933
            %v951 = vadd.f32 %v950, %v934
            %v952 = vadd.f32 %v951, %v935
            %v953 = vadd.f32 %v952, %v936
            %v954 = vadd.f32 %v953, %v937
            %v955 = vadd.f32 %v954, %v938
            %v956 = vadd.f32 %v955, %v939
            %v957 = vadd.f32 %v956, %v940
            %v958 = vadd.f32 %v957, %v941
            %v959 = vadd.f32 %v958, %v942
            %v960 = vadd.f32 %v959, %v943
            %v961 = vadd.f32 %v960, %v944
            %v962 = vadd.f32 %v961, %v945
            %v963 = vadd.f32 %v962, %v946
            %v964 = vadd.f32 %v963, %v947
            %v965 = vrot.slane %v964, 4
            %v966 = vadd.f32 %v964, %v965
            %v967 = vrot.slane %v966, 2
            %v968 = vadd.f32 %v966, %v967
            %v969 = vrot.slane %v968, 1
            %v970 = vadd.f32 %v968, %v969
            %v971 = vadd.f32 %v929, %v970
            %972 = vst [vmem:[#allocation5] sm:$0x1] %v971
          $region64: #{_resblock_impl.2} parent=59 // pred_fallthru
            _
          // Predicated region
          $region65: #{_resblock_impl.2} parent=59 // pred_check
            %p973 = pneg %p264
          $region66: #{_resblock_impl.2} parent=59 // pred_check_branch
            %975 = sbr.rel (%p973) target = $region68
          $region67: #{_resblock_impl.2} parent=59 // pred_region
            %v976 = vlaneseq
            %v977 = vshrl.u32 %v976, 7
            %v978 = vadd.s32 %v977, 8
            %v979 = vadd.s32 %v977, 16
            %v980 = vadd.s32 %v977, 24
            %v981 = vadd.s32 %v977, 32
            %v982 = vadd.s32 %v977, 40
            %v983 = vadd.s32 %v977, 48
            %v984 = vadd.s32 %v977, 56
            %v985 = vadd.s32 %v977, 64
            %v986 = vadd.s32 %v977, 72
            %v987 = vadd.s32 %v977, 80
            %v988 = vadd.s32 %v977, 88
            %v989 = vadd.s32 %v977, 96
            %v990 = vadd.s32 %v977, 104
            %v991 = vadd.s32 %v977, 112
            %v992 = vadd.s32 %v977, 120
            %v993 = vadd.s32 %v977, 128
            %v994 = vadd.s32 %v977, 136
            %s995 = smul.u32 %s24, 144
            %v996 = vstv %s995
            %v997 = vadd.s32 %v977, %v996
            %v998 = vadd.s32 %v978, %v996
            %v999 = vadd.s32 %v979, %v996
            %v1000 = vadd.s32 %v980, %v996
            %v1001 = vadd.s32 %v981, %v996
            %v1002 = vadd.s32 %v982, %v996
            %v1003 = vadd.s32 %v983, %v996
            %v1004 = vadd.s32 %v984, %v996
            %v1005 = vadd.s32 %v985, %v996
            %v1006 = vadd.s32 %v986, %v996
            %v1007 = vadd.s32 %v987, %v996
            %v1008 = vadd.s32 %v988, %v996
            %v1009 = vadd.s32 %v989, %v996
            %v1010 = vadd.s32 %v990, %v996
            %v1011 = vadd.s32 %v991, %v996
            %v1012 = vadd.s32 %v992, %v996
            %v1013 = vadd.s32 %v993, %v996
            %v1014 = vadd.s32 %v994, %v996
            %vm1015 = vcmp.lt.s32.totalorder %v997, 100
            %vm1016 = vcmp.lt.s32.totalorder %v998, 100
            %vm1017 = vcmp.lt.s32.totalorder %v999, 100
            %vm1018 = vcmp.lt.s32.totalorder %v1000, 100
            %vm1019 = vcmp.lt.s32.totalorder %v1001, 100
            %vm1020 = vcmp.lt.s32.totalorder %v1002, 100
            %vm1021 = vcmp.lt.s32.totalorder %v1003, 100
            %vm1022 = vcmp.lt.s32.totalorder %v1004, 100
            %vm1023 = vcmp.lt.s32.totalorder %v1005, 100
            %vm1024 = vcmp.lt.s32.totalorder %v1006, 100
            %vm1025 = vcmp.lt.s32.totalorder %v1007, 100
            %vm1026 = vcmp.lt.s32.totalorder %v1008, 100
            %vm1027 = vcmp.lt.s32.totalorder %v1009, 100
            %vm1028 = vcmp.lt.s32.totalorder %v1010, 100
            %vm1029 = vcmp.lt.s32.totalorder %v1011, 100
            %vm1030 = vcmp.lt.s32.totalorder %v1012, 100
            %vm1031 = vcmp.lt.s32.totalorder %v1013, 100
            %vm1032 = vcmp.lt.s32.totalorder %v1014, 100
            %v1033 = vsel %vm1015, 1, 0
            %v1034 = vsel %vm1016, 1, 0
            %v1035 = vsel %vm1017, 1, 0
            %v1036 = vsel %vm1018, 1, 0
            %v1037 = vsel %vm1019, 1, 0
            %v1038 = vsel %vm1020, 1, 0
            %v1039 = vsel %vm1021, 1, 0
            %v1040 = vsel %vm1022, 1, 0
            %v1041 = vsel %vm1023, 1, 0
            %v1042 = vsel %vm1024, 1, 0
            %v1043 = vsel %vm1025, 1, 0
            %v1044 = vsel %vm1026, 1, 0
            %v1045 = vsel %vm1027, 1, 0
            %v1046 = vsel %vm1028, 1, 0
            %v1047 = vsel %vm1029, 1, 0
            %v1048 = vsel %vm1030, 1, 0
            %v1049 = vsel %vm1031, 1, 0
            %v1050 = vsel %vm1032, 1, 0
            %vm1051 = vcmp.eq.s32.totalorder %v1033, 1
            %vm1052 = vcmp.eq.s32.totalorder %v1034, 1
            %vm1053 = vcmp.eq.s32.totalorder %v1035, 1
            %vm1054 = vcmp.eq.s32.totalorder %v1036, 1
            %vm1055 = vcmp.eq.s32.totalorder %v1037, 1
            %vm1056 = vcmp.eq.s32.totalorder %v1038, 1
            %vm1057 = vcmp.eq.s32.totalorder %v1039, 1
            %vm1058 = vcmp.eq.s32.totalorder %v1040, 1
            %vm1059 = vcmp.eq.s32.totalorder %v1041, 1
            %vm1060 = vcmp.eq.s32.totalorder %v1042, 1
            %vm1061 = vcmp.eq.s32.totalorder %v1043, 1
            %vm1062 = vcmp.eq.s32.totalorder %v1044, 1
            %vm1063 = vcmp.eq.s32.totalorder %v1045, 1
            %vm1064 = vcmp.eq.s32.totalorder %v1046, 1
            %vm1065 = vcmp.eq.s32.totalorder %v1047, 1
            %vm1066 = vcmp.eq.s32.totalorder %v1048, 1
            %vm1067 = vcmp.eq.s32.totalorder %v1049, 1
            %vm1068 = vcmp.eq.s32.totalorder %v1050, 1
            %v1069 = vsel %vm1051, %v703, 0.0
            %v1070 = vsel %vm1052, %v704, 0.0
            %v1071 = vsel %vm1053, %v705, 0.0
            %v1072 = vsel %vm1054, %v706, 0.0
            %v1073 = vsel %vm1055, %v707, 0.0
            %v1074 = vsel %vm1056, %v708, 0.0
            %v1075 = vsel %vm1057, %v709, 0.0
            %v1076 = vsel %vm1058, %v710, 0.0
            %v1077 = vsel %vm1059, %v711, 0.0
            %v1078 = vsel %vm1060, %v712, 0.0
            %v1079 = vsel %vm1061, %v713, 0.0
            %v1080 = vsel %vm1062, %v714, 0.0
            %v1081 = vsel %vm1063, %v715, 0.0
            %v1082 = vsel %vm1064, %v716, 0.0
            %v1083 = vsel %vm1065, %v717, 0.0
            %v1084 = vsel %vm1066, %v718, 0.0
            %v1085 = vsel %vm1067, %v719, 0.0
            %v1086 = vsel %vm1068, %v720, 0.0
            %v1087 = vpack.c.bf16 %v1070, %v1069
            %v1088 = vpack.c.bf16 %v1072, %v1071
            %v1089 = vpack.c.bf16 %v1074, %v1073
            %v1090 = vpack.c.bf16 %v1076, %v1075
            %v1091 = vpack.c.bf16 %v1078, %v1077
            %v1092 = vpack.c.bf16 %v1080, %v1079
            %v1093 = vpack.c.bf16 %v1082, %v1081
            %v1094 = vpack.c.bf16 %v1084, %v1083
            %v1095 = vpack.c.bf16 %v1086, %v1085
            %v1096 = vld [vmem:[%s2] sm:$0xf]
            %v1097 = vld [vmem:[%s2 + $0x4] sm:$0xf]
            %v1098 = vld [vmem:[%s2 + $0x8] sm:$0xf]
            %v1099 = vld [vmem:[%s2 + $0xc] sm:$0xf]
            %v1100 = vld [vmem:[%s2 + $0x10] sm:$0xf]
            %v1101 = vld [vmem:[%s2 + $0x14] sm:$0xf]
            %v1102 = vld [vmem:[%s2 + $0x18] sm:$0xf]
            %v1103 = vld [vmem:[%s2 + $0x1c] sm:$0xf]
            %v1104 = vld [vmem:[%s2 + $0x20] sm:$0xf]
            %v1105 = vld [vmem:[%s2 + $0x24] sm:$0xf]
            %v1106 = vld [vmem:[%s2 + $0x28] sm:$0xf]
            %v1107 = vld [vmem:[%s2 + $0x2c] sm:$0xf]
            %v1108 = vld [vmem:[%s2 + $0x30] sm:$0xf]
            %v1109 = vld [vmem:[%s2 + $0x34] sm:$0xf]
            %v1110 = vld [vmem:[%s2 + $0x38] sm:$0xf]
            %v1111 = vld [vmem:[%s2 + $0x3c] sm:$0xf]
            %v1128 = vunpack.c.l.b16 %v1096
            %v1129 = vunpack.c.l.b16 %v1097
            %v1130 = vunpack.c.l.b16 %v1098
            %v1131 = vunpack.c.l.b16 %v1099
            %v1132 = vunpack.c.l.b16 %v1100
            %v1133 = vunpack.c.l.b16 %v1101
            %v1134 = vunpack.c.l.b16 %v1102
            %v1135 = vunpack.c.l.b16 %v1103
            %v1136 = vunpack.c.l.b16 %v1104
            %v1137 = vunpack.c.l.b16 %v1105
            %v1138 = vunpack.c.l.b16 %v1106
            %v1139 = vunpack.c.l.b16 %v1107
            %v1140 = vunpack.c.l.b16 %v1108
            %v1141 = vunpack.c.l.b16 %v1109
            %v1142 = vunpack.c.l.b16 %v1110
            %v1143 = vunpack.c.l.b16 %v1111
            %v1144 = vpack.c.b16 %v1129, %v1128
            %v1145 = vpack.c.b16 %v1131, %v1130
            %v1146 = vpack.c.b16 %v1133, %v1132
            %v1147 = vpack.c.b16 %v1135, %v1134
            %v1148 = vpack.c.b16 %v1137, %v1136
            %v1149 = vpack.c.b16 %v1139, %v1138
            %v1150 = vpack.c.b16 %v1141, %v1140
            %v1151 = vpack.c.b16 %v1143, %v1142
            %1160 = vmatprep.subr.bf16.mxu0 0
            %1161 = vmatpush1.bf16.msra.mxu0 %v1144
            %1162 = vmatprep.subr.bf16.mxu0 0
            %1163 = vmatpush1.bf16.msra.mxu0 %v1145
            %1164 = vmatprep.subr.bf16.mxu0 0
            %1165 = vmatpush1.bf16.msra.mxu0 %v1146
            %1166 = vmatprep.subr.bf16.mxu0 0
            %1167 = vmatpush1.bf16.msra.mxu0 %v1147
            %1168 = vmatprep.subr.bf16.mxu0 0
            %1169 = vmatpush1.bf16.msra.mxu0 %v1148
            %1170 = vmatprep.subr.bf16.mxu0 0
            %1171 = vmatpush1.bf16.msra.mxu0 %v1149
            %1172 = vmatprep.subr.bf16.mxu0 0
            %1173 = vmatpush1.bf16.msra.mxu0 %v1150
            %1174 = vmatprep.subr.bf16.mxu0 0
            %1175 = vmatpush1.bf16.msra.mxu0 %v1151
            %1176 = vmatprep.subr.bf16.mxu0 0
            %1177 = vmatpush1.bf16.msra.mxu0 0
            %1178 = vmatprep.subr.bf16.mxu0 0
            %1179 = vmatpush1.bf16.msra.mxu0 0
            %1180 = vmatprep.subr.bf16.mxu0 0
            %1181 = vmatpush1.bf16.msra.mxu0 0
            %1182 = vmatprep.subr.bf16.mxu0 0
            %1183 = vmatpush1.bf16.msra.mxu0 0
            %1184 = vmatprep.subr.bf16.mxu0 0
            %1185 = vmatpush1.bf16.msra.mxu0 0
            %1186 = vmatprep.subr.bf16.mxu0 0
            %1187 = vmatpush1.bf16.msra.mxu0 0
            %1188 = vmatprep.subr.bf16.mxu0 0
            %1189 = vmatpush1.bf16.msra.mxu0 0
            %1190 = vmatprep.subr.bf16.mxu0 0
            %1191 = vmatpush1.bf16.msra.mxu0 0
            %1192 = vmatprep.mubr.bf16.mxu0 0
            %1193 = vmatmul.mubr.bf16.gmra.mrb[0].mxu0 %v1087
            %v1194 = vpop.f32.mrb[0].mxu0
            %v1195 = vadd.f32 0.0, %v1194
            %v1196 = vpop.f32.mrb[0].mxu0
            %v1197 = vpop.f32.mrb[0].mxu0
            %v1198 = vadd.f32 0.0, %v1197
            %v1199 = vpop.f32.mrb[0].mxu0
            %1200 = vmatprep.mubr.bf16.mxu0 0
            %1201 = vmatmul.mubr.bf16.gmra.mrb[0].mxu0 %v1088
            %v1202 = vpop.f32.mrb[0].mxu0
            %v1203 = vadd.f32 0.0, %v1202
            %v1204 = vpop.f32.mrb[0].mxu0
            %v1205 = vpop.f32.mrb[0].mxu0
            %v1206 = vadd.f32 0.0, %v1205
            %v1207 = vpop.f32.mrb[0].mxu0
            %1208 = vmatprep.mubr.bf16.mxu0 0
            %1209 = vmatmul.mubr.bf16.gmra.mrb[0].mxu0 %v1089
            %v1210 = vpop.f32.mrb[0].mxu0
            %v1211 = vadd.f32 0.0, %v1210
            %v1212 = vpop.f32.mrb[0].mxu0
            %v1213 = vpop.f32.mrb[0].mxu0
            %v1214 = vadd.f32 0.0, %v1213
            %v1215 = vpop.f32.mrb[0].mxu0
            %1216 = vmatprep.mubr.bf16.mxu0 0
            %1217 = vmatmul.mubr.bf16.gmra.mrb[0].mxu0 %v1090
            %v1218 = vpop.f32.mrb[0].mxu0
            %v1219 = vadd.f32 0.0, %v1218
            %v1220 = vpop.f32.mrb[0].mxu0
            %v1221 = vpop.f32.mrb[0].mxu0
            %v1222 = vadd.f32 0.0, %v1221
            %v1223 = vpop.f32.mrb[0].mxu0
            %1224 = vmatprep.mubr.bf16.mxu0 0
            %1225 = vmatmul.mubr.bf16.gmra.mrb[0].mxu0 %v1091
            %v1226 = vpop.f32.mrb[0].mxu0
            %v1227 = vadd.f32 0.0, %v1226
            %v1228 = vpop.f32.mrb[0].mxu0
            %v1229 = vpop.f32.mrb[0].mxu0
            %v1230 = vadd.f32 0.0, %v1229
            %v1231 = vpop.f32.mrb[0].mxu0
            %1232 = vmatprep.mubr.bf16.mxu0 0
            %1233 = vmatmul.mubr.bf16.gmra.mrb[0].mxu0 %v1092
            %v1234 = vpop.f32.mrb[0].mxu0
            %v1235 = vadd.f32 0.0, %v1234
            %v1236 = vpop.f32.mrb[0].mxu0
            %v1237 = vpop.f32.mrb[0].mxu0
            %v1238 = vadd.f32 0.0, %v1237
            %v1239 = vpop.f32.mrb[0].mxu0
            %1240 = vmatprep.mubr.bf16.mxu0 0
            %1241 = vmatmul.mubr.bf16.gmra.mrb[0].mxu0 %v1093
            %v1242 = vpop.f32.mrb[0].mxu0
            %v1243 = vadd.f32 0.0, %v1242
            %v1244 = vpop.f32.mrb[0].mxu0
            %v1245 = vpop.f32.mrb[0].mxu0
            %v1246 = vadd.f32 0.0, %v1245
            %v1247 = vpop.f32.mrb[0].mxu0
            %1248 = vmatprep.mubr.bf16.mxu0 0
            %1249 = vmatmul.mubr.bf16.gmra.mrb[0].mxu0 %v1094
            %v1250 = vpop.f32.mrb[0].mxu0
            %v1251 = vadd.f32 0.0, %v1250
            %v1252 = vpop.f32.mrb[0].mxu0
            %v1253 = vpop.f32.mrb[0].mxu0
            %v1254 = vadd.f32 0.0, %v1253
            %v1255 = vpop.f32.mrb[0].mxu0
            %1256 = vmatprep.mubr.bf16.mxu0 0
            %1257 = vmatmul.mubr.bf16.gmra.mrb[0].mxu0 %v1095
            %v1258 = vpop.f32.mrb[0].mxu0
            %v1259 = vadd.f32 0.0, %v1258
            %v1260 = vpop.f32.mrb[0].mxu0
            %v1261 = vpop.f32.mrb[0].mxu0
            %v1262 = vadd.f32 0.0, %v1261
            %v1263 = vpop.f32.mrb[0].mxu0
            %1264 = vdwg.mxu0
            %v1265 = vld [vmem:[#allocation4] sm:$0x1]
            %v1266 = vadd.f32 %v1195, %v1198
            %v1267 = vadd.f32 %v1266, %v1203
            %v1268 = vadd.f32 %v1267, %v1206
            %v1269 = vadd.f32 %v1268, %v1211
            %v1270 = vadd.f32 %v1269, %v1214
            %v1271 = vadd.f32 %v1270, %v1219
            %v1272 = vadd.f32 %v1271, %v1222
            %v1273 = vadd.f32 %v1272, %v1227
            %v1274 = vadd.f32 %v1273, %v1230
            %v1275 = vadd.f32 %v1274, %v1235
            %v1276 = vadd.f32 %v1275, %v1238
            %v1277 = vadd.f32 %v1276, %v1243
            %v1278 = vadd.f32 %v1277, %v1246
            %v1279 = vadd.f32 %v1278, %v1251
            %v1280 = vadd.f32 %v1279, %v1254
            %v1281 = vadd.f32 %v1280, %v1259
            %v1282 = vadd.f32 %v1281, %v1262
            %v1283 = vrot.slane %v1282, 4
            %v1284 = vadd.f32 %v1282, %v1283
            %v1285 = vrot.slane %v1284, 2
            %v1286 = vadd.f32 %v1284, %v1285
            %v1287 = vrot.slane %v1286, 1
            %v1288 = vadd.f32 %v1286, %v1287
            %v1289 = vadd.f32 %v1265, %v1288
            %1290 = vst [vmem:[#allocation4] sm:$0x1] %v1289
            %v1291 = vld [vmem:[#allocation5] sm:$0x1]
            %v1292 = vmul.f32 %v1195, %v1195
            %v1293 = vmul.f32 %v1198, %v1198
            %v1294 = vmul.f32 %v1203, %v1203
            %v1295 = vmul.f32 %v1206, %v1206
            %v1296 = vmul.f32 %v1211, %v1211
            %v1297 = vmul.f32 %v1214, %v1214
            %v1298 = vmul.f32 %v1219, %v1219
            %v1299 = vmul.f32 %v1222, %v1222
            %v1300 = vmul.f32 %v1227, %v1227
            %v1301 = vmul.f32 %v1230, %v1230
            %v1302 = vmul.f32 %v1235, %v1235
            %v1303 = vmul.f32 %v1238, %v1238
            %v1304 = vmul.f32 %v1243, %v1243
            %v1305 = vmul.f32 %v1246, %v1246
            %v1306 = vmul.f32 %v1251, %v1251
            %v1307 = vmul.f32 %v1254, %v1254
            %v1308 = vmul.f32 %v1259, %v1259
            %v1309 = vmul.f32 %v1262, %v1262
            %v1310 = vadd.f32 %v1292, %v1293
            %v1311 = vadd.f32 %v1310, %v1294
            %v1312 = vadd.f32 %v1311, %v1295
            %v1313 = vadd.f32 %v1312, %v1296
            %v1314 = vadd.f32 %v1313, %v1297
            %v1315 = vadd.f32 %v1314, %v1298
            %v1316 = vadd.f32 %v1315, %v1299
            %v1317 = vadd.f32 %v1316, %v1300
            %v1318 = vadd.f32 %v1317, %v1301
            %v1319 = vadd.f32 %v1318, %v1302
            %v1320 = vadd.f32 %v1319, %v1303
            %v1321 = vadd.f32 %v1320, %v1304
            %v1322 = vadd.f32 %v1321, %v1305
            %v1323 = vadd.f32 %v1322, %v1306
            %v1324 = vadd.f32 %v1323, %v1307
            %v1325 = vadd.f32 %v1324, %v1308
            %v1326 = vadd.f32 %v1325, %v1309
            %v1327 = vrot.slane %v1326, 4
            %v1328 = vadd.f32 %v1326, %v1327
            %v1329 = vrot.slane %v1328, 2
            %v1330 = vadd.f32 %v1328, %v1329
            %v1331 = vrot.slane %v1330, 1
            %v1332 = vadd.f32 %v1330, %v1331
            %v1333 = vadd.f32 %v1291, %v1332
            %1334 = vst [vmem:[#allocation5] sm:$0x1] %v1333
          $region68: #{_resblock_impl.2} parent=59 // pred_fallthru
            _
        $region60: #{_resblock_impl.2} parent=39 // pred_fallthru
          _
        %p1335 = scmp.eq.s32.totalorder %s23, 1
        %p1336 = pnand %p587, %p1335
        %p1337 = pneg %p1336
        %p1338 = pnand %p1337, %p264
        %p1339 = pneg %p1338
        // Predicated region
        $region69: #{_resblock_impl.2} parent=39 // pred_check
          _
        $region70: #{_resblock_impl.2} parent=39 // pred_check_branch
          %1341 = sbr.rel (%p1338) target = $region72
        $region71: #{_resblock_impl.2} parent=39 // pred_region
          %v1342 = vld [vmem:[%s3] sm:$0xf]
          %v1343 = vld [vmem:[#allocation4] sm:$0x1]
          %v1344 = vld [vmem:[#allocation5] sm:$0x1]
          %v1345 = vmul.f32 %v1343, 0.005
          %v1346 = vmul.f32 %v1344, 0.005
          %v1347 = vmul.f32 %v1345, %v1345
          %v1348 = vsub.f32 %v1346, %v1347
          %v1349 = vmax.f32 %v1348, 0.0
          %v1350 = vadd.f32 %v1349, 1e-05
          %v1351 = vrsqrt.pop %v1350
          %v1353 = vlaneseq
          %v1354 = vshrl.u32 %v1353, 7
          %v1355 = vsub.s32 0, %v1354
          %v1356 = vrot.slane %v1351, %v1355
          %v1358 = vmul.f32 %v1342, %v1356
          %v1361 = vunpack.c.l.s4 1966171168
          %v1362 = vunpack.c.0.s8 %v1361
          %v1363 = vlaneseq
          %v1364 = vshrl.u32 %v1363, 7
          %v1365 = vsub.s32 %v1362, %v1364
          %v1366 = vrot.slane %v1358, %v1365
          %v1368 = vunpack.c.l.s4 1966171168
          %v1369 = vunpack.c.0.s8 %v1368
          %v1370 = vlaneseq
          %v1371 = vshrl.u32 %v1370, 7
          %v1372 = vsub.s32 %v1369, %v1371
          %v1373 = vrot.slane %v1366, %v1372
          %v1374 = vcombine.high %v1373, %v1373
          %v1376 = vmul.f32 %v1345, %v1374
          %v1378 = vlaneseq
          %v1379 = vshrl.u32 %v1378, 7
          %v1380 = vsub.s32 0, %v1379
          %v1381 = vrot.slane %v1376, %v1380
          %v1383 = vsub.f32 %v1342, %v1381
          %v1384 = vld [vmem:[#allocation6] sm:$0x3]
          %vm1385 = vcmask 1041408
          %v1386 = vsel %vm1385, %v1384, %v1358
          %vm1387 = vcmask 1042432
          %v1388 = vsel %vm1387, %v1386, %v1383
          %1389 = vst [vmem:[%s5] sm:$0xf] %v1388
        $region72: #{_resblock_impl.2} parent=39 // pred_fallthru
          _
        // Predicated region
        $region73: #{_resblock_impl.2} parent=39 // pred_check
          %p1390 = pneg %p161
        $region74: #{_resblock_impl.2} parent=39 // pred_check_branch
          %1392 = sbr.rel (%p1390) target = $region76
        $region75: #{_resblock_impl.2} parent=39 // pred_region
          _
        $region76: #{_resblock_impl.2} parent=39 // pred_fallthru
          _
        // Predicated region
        $region77: #{_resblock_impl.2} parent=39 // pred_check
          %p1393 = pneg %p161
        $region78: #{_resblock_impl.2} parent=39 // pred_check_branch
          %1395 = sbr.rel (%p1393) target = $region80
        $region79: #{_resblock_impl.2} parent=39 // pred_region
          _
        $region80: #{_resblock_impl.2} parent=39 // pred_fallthru
          _
      $region40: #{_resblock_impl.2} parent=5 // pred_fallthru
        _
      %p1396 = scmp.le.s32.totalorder 2, %s12
      // Predicated region
      $region81: #{_resblock_impl.2} parent=5 // pred_check
        %p1397 = pneg %p1396
      $region82: #{_resblock_impl.2} parent=5 // pred_check_branch
        %1399 = sbr.rel (%p1397) target = $region84
      $region83: #{_resblock_impl.2} parent=5 // pred_region
        %s1400 = ssub.s32 %s12, 2
      $region84: #{_resblock_impl.2} parent=5 // pred_fallthru
        _
    $region6: #{_resblock_impl.2} parent=1 // loop_footer
      %s16 = sadd.s32 1, %s12
    $region7: #{_resblock_impl.2} parent=1 // loop_footer_branch
      %11 = sbr.rel target = $region3
    $region8: #{_resblock_impl.2} parent=1 // loop_exit
      _
    %1401 = vsyncpa [#allocation8], 1
    %s1402 = scalar_lea.sflag [#allocation8], 1
    %1403 = vsyncpa %s1402, 1

</llo_original>
